<compile_context>
chip_gen: v7x
topology: tpu7x:2x2x1
jax: 0.10.0
libtpu: 0.0.40
codegen_flags: <defaults>
</compile_context>

<pallas_src>
import math

import jax
import jax.numpy as jnp
from jax.experimental import pallas as pl
from jax.experimental.pallas import tpu as pltpu


# ----------------------------- model config (small, deterministic) -----------------------------
VOCAB = 100
HIDDEN = 32
N_LAYERS = 2
N_HEADS = 2
HEAD_DIM = HIDDEN // N_HEADS
INTERMEDIATE = 64
MAX_POS = 16
TYPE_VOCAB = 2
NUM_LABELS = 2
LN_EPS = 1e-12

# ----------------------------- packed-parameter slab layout -----------------------------
SLAB_W = 3 * HIDDEN                          # 96: widest packed row (fused QKV weight / bias)
# weight slab: rows per layer = qkv_w(32) + ao_w(32) + fi_w(32) + fo_w(64)
LAYER_W_ROWS = 3 * HIDDEN + INTERMEDIATE     # 160
QKV_W_OFF, AO_W_OFF, FI_W_OFF, FO_W_OFF = 0, HIDDEN, 2 * HIDDEN, 3 * HIDDEN
POOL_W_ROW = N_LAYERS * LAYER_W_ROWS         # 320
HEAD_W_ROW = POOL_W_ROW + HIDDEN             # 352
TOTAL_W_ROWS = HEAD_W_ROW + HIDDEN           # 384
# vector slab: emb_ln(2) + per-layer 8 vectors + pooler/head biases(2)
LAYER_V_ROWS = 8
POOL_B_ROW = 2 + N_LAYERS * LAYER_V_ROWS     # 18
HEAD_B_ROW = POOL_B_ROW + 1                  # 19
TOTAL_V_ROWS = HEAD_B_ROW + 1                # 20

_GELU_C = math.sqrt(2.0 / math.pi)


# ----------------------------- fused forward kernel -----------------------------
def _build_fused_kernel(B, S, compute_loss):
    """Single-launch kernel: LN(emb) -> N encoder layers -> pooler -> head [-> CE loss]."""

    def layernorm(x, g, b):
        mean = jnp.mean(x, axis=-1, keepdims=True)
        var = jnp.mean(jnp.square(x - mean), axis=-1, keepdims=True)
        return (x - mean) * jax.lax.rsqrt(var + LN_EPS) * g + b

    def vec(v_ref, row, width):
        # one packed bias / LN vector: (1, width), lane-prefix aligned
        return v_ref[row:row + 1, 0:width]

    def mat(w_ref, row, nrows, ncols):
        # one packed weight matrix: (nrows, ncols), lane-prefix aligned
        return w_ref[row:row + nrows, 0:ncols]

    def kernel(*refs):
        if compute_loss:
            h_ref, m_ref, lb_ref, w_ref, v_ref, logits_ref, loss_ref, ctx_ref = refs
        else:
            h_ref, m_ref, w_ref, v_ref, logits_ref, ctx_ref = refs

        # ---- embeddings LayerNorm ----
        x = layernorm(h_ref[...], vec(v_ref, 0, HIDDEN), vec(v_ref, 1, HIDDEN))   # (B*S, H)

        # HF-style extended additive mask: 0 where attended, -1e9 where masked.
        add_mask = (1.0 - m_ref[...]) * -1e9                                       # (B, S)

        # ---- encoder layers (fully unrolled at trace time) ----
        for l in range(N_LAYERS):
            wbase = l * LAYER_W_ROWS
            vbase = 2 + l * LAYER_V_ROWS

            qkv_w = mat(w_ref, wbase + QKV_W_OFF, HIDDEN, 3 * HIDDEN)
            ao_w = mat(w_ref, wbase + AO_W_OFF, HIDDEN, HIDDEN)
            fi_w = mat(w_ref, wbase + FI_W_OFF, HIDDEN, INTERMEDIATE)
            fo_w = mat(w_ref, wbase + FO_W_OFF, INTERMEDIATE, HIDDEN)

            qkv_b = vec(v_ref, vbase + 0, 3 * HIDDEN)
            ao_b = vec(v_ref, vbase + 1, HIDDEN)
            ln1_g = vec(v_ref, vbase + 2, HIDDEN)
            ln1_b = vec(v_ref, vbase + 3, HIDDEN)
            fi_b = vec(v_ref, vbase + 4, INTERMEDIATE)
            fo_b = vec(v_ref, vbase + 5, HIDDEN)
            ln2_g = vec(v_ref, vbase + 6, HIDDEN)
            ln2_b = vec(v_ref, vbase + 7, HIDDEN)

            # fused Q/K/V projection: one (B*S, H) @ (H, 3H) matmul.
            # 1/sqrt(head_dim) is pre-folded into the Q columns of qkv_w / qkv_b.
            qkv = jnp.dot(x, qkv_w, preferred_element_type=jnp.float32) + qkv_b
            q = qkv[:, 0:HIDDEN]
            k = qkv[:, HIDDEN:2 * HIDDEN]
            v = qkv[:, 2 * HIDDEN:3 * HIDDEN]

            # self-attention per (batch, head); each head's output is stored into
            # the VMEM scratch at its static (row, lane) offset -> no concat trees.
            for b in range(B):
                r0 = b * S
                mask_b = add_mask[b:b + 1, :]                       # (1, S) -> broadcasts over (S, S)
                for hh in range(N_HEADS):
                    c0 = hh * HEAD_DIM
                    qh = q[r0:r0 + S, c0:c0 + HEAD_DIM]             # (S, Dh)
                    kh = k[r0:r0 + S, c0:c0 + HEAD_DIM]
                    vh = v[r0:r0 + S, c0:c0 + HEAD_DIM]
                    # scores: contract last dims, no explicit transpose of kh
                    s = jax.lax.dot_general(
                        qh, kh,
                        dimension_numbers=(((1,), (1,)), ((), ())),
                        preferred_element_type=jnp.float32)         # (S, S)
                    s = s + mask_b
                    mx = jnp.max(s, axis=-1, keepdims=True)         # stable softmax
                    p = jnp.exp(s - mx)
                    denom = jnp.sum(p, axis=-1, keepdims=True)
                    p = p * pl.reciprocal(denom, approx=True)       # EUP divide
                    ctx_ref[r0:r0 + S, c0:c0 + HEAD_DIM] = jnp.dot(
                        p, vh, preferred_element_type=jnp.float32)

            ctx = ctx_ref[...]                                      # (B*S, H)

            # attention output projection + residual + LayerNorm (fused epilogue)
            attn_out = jnp.dot(ctx, ao_w, preferred_element_type=jnp.float32) + ao_b
            x = layernorm(attn_out + x, ln1_g, ln1_b)

            # feed-forward: dense -> GELU -> dense -> residual + LayerNorm
            inter = jnp.dot(x, fi_w, preferred_element_type=jnp.float32) + fi_b
            # TODO(synk): exact erf-GELU replaced by tanh approximation (no guaranteed
            # erf lowering in Mosaic); max abs deviation ~1e-3.
            inter = 0.5 * inter * (
                1.0 + jnp.tanh(_GELU_C * (inter + 0.044715 * inter * inter * inter)))
            ffn = jnp.dot(inter, fo_w, preferred_element_type=jnp.float32) + fo_b
            x = layernorm(ffn + x, ln2_g, ln2_b)

        # ---- pooler: dense(tanh) on the [CLS] token of each sequence ----
        pool_w = mat(w_ref, POOL_W_ROW, HIDDEN, HIDDEN)
        head_w = mat(w_ref, HEAD_W_ROW, HIDDEN, NUM_LABELS)
        pool_b = vec(v_ref, POOL_B_ROW, HIDDEN)
        head_b = vec(v_ref, HEAD_B_ROW, NUM_LABELS)

        ctx_ref[...] = x                                            # reuse scratch as staging buffer
        cls = ctx_ref[pl.ds(0, B, stride=S), :]                     # strided CLS gather, (B, H)
        pooled = jnp.tanh(
            jnp.dot(cls, pool_w, preferred_element_type=jnp.float32) + pool_b)

        # ---- classification head (nn.LazyLinear(2)) ----
        logits = jnp.dot(pooled, head_w, preferred_element_type=jnp.float32) + head_b
        logits_ref[...] = logits.astype(logits_ref.dtype)

        # ---- mean cross-entropy ----
        if compute_loss:
            lb = lb_ref[...]                                        # (B, 1) int32
            mm = jnp.max(logits, axis=-1, keepdims=True)
            lse = mm + jnp.log(jnp.sum(jnp.exp(logits - mm), axis=-1, keepdims=True))
            cls_iota = jax.lax.broadcasted_iota(jnp.int32, logits.shape, 1)
            one_hot = (cls_iota == lb).astype(jnp.float32)
            picked = jnp.sum(one_hot * logits, axis=-1, keepdims=True)
            nll = lse - picked                                      # (B, 1)
            loss_ref[...] = jnp.sum(nll, axis=0, keepdims=True) * (1.0 / B)

    return kernel


# ----------------------------- parameter init (deterministic, synthetic) -----------------------------
def init_params(key):
    keys = iter(jax.random.split(key, 64))

    def dense(fan_in, fan_out):
        w = jax.random.normal(next(keys), (fan_in, fan_out), jnp.float32) * 0.02
        b = jnp.zeros((1, fan_out), jnp.float32)
        return w, b

    p = {
        "word_emb": jax.random.normal(next(keys), (VOCAB, HIDDEN), jnp.float32) * 0.02,
        "pos_emb": jax.random.normal(next(keys), (MAX_POS, HIDDEN), jnp.float32) * 0.02,
        "type_emb": jax.random.normal(next(keys), (TYPE_VOCAB, HIDDEN), jnp.float32) * 0.02,
        "emb_ln_g": jnp.ones((1, HIDDEN), jnp.float32),
        "emb_ln_b": jnp.zeros((1, HIDDEN), jnp.float32),
        "layers": [],
    }
    for _ in range(N_LAYERS):
        qw, qb = dense(HIDDEN, HIDDEN)
        kw, kb = dense(HIDDEN, HIDDEN)
        vw, vb = dense(HIDDEN, HIDDEN)
        ao_w, ao_b = dense(HIDDEN, HIDDEN)
        fi_w, fi_b = dense(HIDDEN, INTERMEDIATE)
        fo_w, fo_b = dense(INTERMEDIATE, HIDDEN)
        layer = {
            # Q/K/V fused into a single (H, 3H) weight + (1, 3H) bias
            "qkv_w": jnp.concatenate([qw, kw, vw], axis=1),
            "qkv_b": jnp.concatenate([qb, kb, vb], axis=1),
            "ao_w": ao_w, "ao_b": ao_b,
            "ln1_g": jnp.ones((1, HIDDEN), jnp.float32),
            "ln1_b": jnp.zeros((1, HIDDEN), jnp.float32),
            "fi_w": fi_w, "fi_b": fi_b,
            "fo_w": fo_w, "fo_b": fo_b,
            "ln2_g": jnp.ones((1, HIDDEN), jnp.float32),
            "ln2_b": jnp.zeros((1, HIDDEN), jnp.float32),
        }
        p["layers"].append(layer)
    pw, pb = dense(HIDDEN, HIDDEN)
    hw, hb = dense(HIDDEN, NUM_LABELS)
    p["pool_w"], p["pool_b"] = pw, pb
    p["head_w"], p["head_b"] = hw, hb
    return p


def _pack_params(params):
    """Pack all weights into one (TOTAL_W_ROWS, 96) slab and all vectors into one
    (TOTAL_V_ROWS, 96) slab (lane-prefix aligned, zero padded) -> 2 DMAs total."""
    q_scale = 1.0 / math.sqrt(HEAD_DIM)

    def pad_cols(a):
        return jnp.pad(a, ((0, 0), (0, SLAB_W - a.shape[1])))

    w_rows, v_rows = [], []
    v_rows += [pad_cols(params["emb_ln_g"]), pad_cols(params["emb_ln_b"])]
    for layer in params["layers"]:
        # fold 1/sqrt(head_dim) into the Q columns of the fused QKV projection
        qkv_w = layer["qkv_w"].at[:, :HIDDEN].multiply(q_scale)
        qkv_b = layer["qkv_b"].at[:, :HIDDEN].multiply(q_scale)
        w_rows += [pad_cols(qkv_w), pad_cols(layer["ao_w"]),
                   pad_cols(layer["fi_w"]), pad_cols(layer["fo_w"])]
        v_rows += [pad_cols(qkv_b), pad_cols(layer["ao_b"]),
                   pad_cols(layer["ln1_g"]), pad_cols(layer["ln1_b"]),
                   pad_cols(layer["fi_b"]), pad_cols(layer["fo_b"]),
                   pad_cols(layer["ln2_g"]), pad_cols(layer["ln2_b"])]
    w_rows += [pad_cols(params["pool_w"]), pad_cols(params["head_w"])]
    v_rows += [pad_cols(params["pool_b"]), pad_cols(params["head_b"])]

    w_slab = jnp.concatenate(w_rows, axis=0)
    v_slab = jnp.concatenate(v_rows, axis=0)
    assert w_slab.shape == (TOTAL_W_ROWS, SLAB_W)
    assert v_slab.shape == (TOTAL_V_ROWS, SLAB_W)
    return w_slab, v_slab


# ----------------------------- forward pass (matches Model.forward semantics) -----------------------------
def model_forward(params, input_ids, attention_mask, labels=None):
    B, S = input_ids.shape

    # --- embeddings (dynamic row gather stays in plain JAX glue) ---
    # TODO(synk): embedding gather not fused into the kernel (dynamic gather); negligible cost here.
    word = jnp.take(params["word_emb"], input_ids, axis=0)              # (B, S, H)
    pos = params["pos_emb"][:S][None, :, :]                             # (1, S, H)
    typ = params["type_emb"][0][None, None, :]                          # token_type_ids = 0
    hidden0 = (word + pos + typ).reshape(B * S, HIDDEN).astype(jnp.float32)
    mask_f = attention_mask.astype(jnp.float32)                         # (B, S)
    # TODO(synk): dropout omitted (inference / eval-mode identity).

    w_slab, v_slab = _pack_params(params)

    compute_loss = labels is not None
    inputs = [hidden0, mask_f]
    if compute_loss:
        inputs.append(labels.astype(jnp.int32)[:, None])                # (B, 1)
    inputs += [w_slab, v_slab]

    out_shapes = [jax.ShapeDtypeStruct((B, NUM_LABELS), jnp.float32)]
    if compute_loss:
        out_shapes.append(jax.ShapeDtypeStruct((1, 1), jnp.float32))

    kernel = _build_fused_kernel(B, S, compute_loss)
    # No grid: single-program kernel, whole (tiny) operands resident in VMEM.
    outs = pl.pallas_call(
        kernel,
        out_shape=tuple(out_shapes),
        scratch_shapes=[pltpu.VMEM((B * S, HIDDEN), jnp.float32)],
    )(*inputs)

    logits = outs[0]
    if compute_loss:
        return {"loss": outs[1][0, 0], "logits": logits}
    return {"logits": logits}


# ----------------------------- main -----------------------------
if __name__ == "__main__":
    key = jax.random.PRNGKey(0)
    k_param, k_ids, k_labels = jax.random.split(key, 3)

    params = init_params(k_param)

    B, S = 2, 8
    input_ids = jax.random.randint(k_ids, (B, S), 0, VOCAB, dtype=jnp.int32)
    attention_mask = jnp.array([[1, 1, 1, 1, 1, 1, 0, 0],
                                [1, 1, 1, 1, 1, 1, 1, 1]], dtype=jnp.int32)
    labels = jax.random.randint(k_labels, (B,), 0, NUM_LABELS, dtype=jnp.int32)

    out = model_forward(params, input_ids, attention_mask, labels)
    jax.block_until_ready(out)

    assert out["logits"].shape == (B, NUM_LABELS)
    assert out["loss"].shape == ()
    print("KERNEL_OK")
</pallas_src>

<mosaic_0001>
module attributes {stable_mosaic.version = 11 : i64} {
  func.func @kernel(%arg0: memref<16x32xf32, #tpu.memory_space<vmem>>, %arg1: memref<2x8xf32, #tpu.memory_space<vmem>>, %arg2: memref<2x1xi32, #tpu.memory_space<vmem>>, %arg3: memref<384x96xf32, #tpu.memory_space<vmem>>, %arg4: memref<20x96xf32, #tpu.memory_space<vmem>>, %arg5: memref<2x2xf32, #tpu.memory_space<vmem>>, %arg6: memref<1x1xf32, #tpu.memory_space<vmem>>, %arg7: memref<16x32xf32, #tpu.memory_space<vmem>>) attributes {dimension_semantics = [], scalar_prefetch = 0 : i64, scratch_operands = 1 : i64, tpu.core_type = #tpu.core_type<tc>} {
    %c0 = arith.constant 0 : index
    %c0_0 = arith.constant 0 : index
    %0 = vector.load %arg0[%c0, %c0_0] : memref<16x32xf32, #tpu.memory_space<vmem>>, vector<16x32xf32>
    %c0_1 = arith.constant 0 : index
    %c0_2 = arith.constant 0 : index
    %1 = vector.load %arg4[%c0_1, %c0_2] : memref<20x96xf32, #tpu.memory_space<vmem>>, vector<1x32xf32>
    %c1 = arith.constant 1 : index
    %c0_3 = arith.constant 0 : index
    %2 = vector.load %arg4[%c1, %c0_3] : memref<20x96xf32, #tpu.memory_space<vmem>>, vector<1x32xf32>
    %cst = arith.constant dense<0.000000e+00> : vector<16xf32>
    %3 = vector.multi_reduction <add>, %0, %cst [1] : vector<16x32xf32> to vector<16xf32>
    %4 = vector.shape_cast %3 : vector<16xf32> to vector<16x1xf32>
    %cst_4 = arith.constant 3.200000e+01 : f32
    %5 = vector.broadcast %cst_4 : f32 to vector<16x1xf32>
    %6 = arith.divf %4, %5 : vector<16x1xf32>
    %7 = vector.broadcast %6 : vector<16x1xf32> to vector<16x32xf32>
    %8 = arith.subf %0, %7 : vector<16x32xf32>
    %9 = arith.mulf %8, %8 : vector<16x32xf32>
    %cst_5 = arith.constant dense<0.000000e+00> : vector<16xf32>
    %10 = vector.multi_reduction <add>, %9, %cst_5 [1] : vector<16x32xf32> to vector<16xf32>
    %11 = vector.shape_cast %10 : vector<16xf32> to vector<16x1xf32>
    %cst_6 = arith.constant 3.200000e+01 : f32
    %12 = vector.broadcast %cst_6 : f32 to vector<16x1xf32>
    %13 = arith.divf %11, %12 : vector<16x1xf32>
    %14 = vector.broadcast %6 : vector<16x1xf32> to vector<16x32xf32>
    %15 = arith.subf %0, %14 : vector<16x32xf32>
    %cst_7 = arith.constant 9.99999996E-13 : f32
    %16 = vector.broadcast %cst_7 : f32 to vector<16x1xf32>
    %17 = arith.addf %13, %16 : vector<16x1xf32>
    %18 = math.rsqrt %17 : vector<16x1xf32>
    %19 = vector.broadcast %18 : vector<16x1xf32> to vector<16x32xf32>
    %20 = arith.mulf %15, %19 : vector<16x32xf32>
    %21 = vector.broadcast %1 : vector<1x32xf32> to vector<16x32xf32>
    %22 = arith.mulf %20, %21 : vector<16x32xf32>
    %23 = vector.broadcast %2 : vector<1x32xf32> to vector<16x32xf32>
    %24 = arith.addf %22, %23 : vector<16x32xf32>
    %c0_8 = arith.constant 0 : index
    %c0_9 = arith.constant 0 : index
    %25 = vector.load %arg1[%c0_8, %c0_9] : memref<2x8xf32, #tpu.memory_space<vmem>>, vector<2x8xf32>
    %cst_10 = arith.constant 1.000000e+00 : f32
    %26 = vector.broadcast %cst_10 : f32 to vector<2x8xf32>
    %27 = arith.subf %26, %25 : vector<2x8xf32>
    %cst_11 = arith.constant -1.000000e+09 : f32
    %28 = vector.broadcast %cst_11 : f32 to vector<2x8xf32>
    %29 = arith.mulf %27, %28 : vector<2x8xf32>
    %c0_12 = arith.constant 0 : index
    %c0_13 = arith.constant 0 : index
    %30 = vector.load %arg3[%c0_12, %c0_13] : memref<384x96xf32, #tpu.memory_space<vmem>>, vector<32x96xf32>
    %c32 = arith.constant 32 : index
    %c0_14 = arith.constant 0 : index
    %31 = vector.load %arg3[%c32, %c0_14] : memref<384x96xf32, #tpu.memory_space<vmem>>, vector<32x32xf32>
    %c64 = arith.constant 64 : index
    %c0_15 = arith.constant 0 : index
    %32 = vector.load %arg3[%c64, %c0_15] : memref<384x96xf32, #tpu.memory_space<vmem>>, vector<32x64xf32>
    %c96 = arith.constant 96 : index
    %c0_16 = arith.constant 0 : index
    %33 = vector.load %arg3[%c96, %c0_16] : memref<384x96xf32, #tpu.memory_space<vmem>>, vector<64x32xf32>
    %c2 = arith.constant 2 : index
    %c0_17 = arith.constant 0 : index
    %34 = vector.load %arg4[%c2, %c0_17] : memref<20x96xf32, #tpu.memory_space<vmem>>, vector<1x96xf32>
    %c3 = arith.constant 3 : index
    %c0_18 = arith.constant 0 : index
    %35 = vector.load %arg4[%c3, %c0_18] : memref<20x96xf32, #tpu.memory_space<vmem>>, vector<1x32xf32>
    %c4 = arith.constant 4 : index
    %c0_19 = arith.constant 0 : index
    %36 = vector.load %arg4[%c4, %c0_19] : memref<20x96xf32, #tpu.memory_space<vmem>>, vector<1x32xf32>
    %c5 = arith.constant 5 : index
    %c0_20 = arith.constant 0 : index
    %37 = vector.load %arg4[%c5, %c0_20] : memref<20x96xf32, #tpu.memory_space<vmem>>, vector<1x32xf32>
    %c6 = arith.constant 6 : index
    %c0_21 = arith.constant 0 : index
    %38 = vector.load %arg4[%c6, %c0_21] : memref<20x96xf32, #tpu.memory_space<vmem>>, vector<1x64xf32>
    %c7 = arith.constant 7 : index
    %c0_22 = arith.constant 0 : index
    %39 = vector.load %arg4[%c7, %c0_22] : memref<20x96xf32, #tpu.memory_space<vmem>>, vector<1x32xf32>
    %c8 = arith.constant 8 : index
    %c0_23 = arith.constant 0 : index
    %40 = vector.load %arg4[%c8, %c0_23] : memref<20x96xf32, #tpu.memory_space<vmem>>, vector<1x32xf32>
    %c9 = arith.constant 9 : index
    %c0_24 = arith.constant 0 : index
    %41 = vector.load %arg4[%c9, %c0_24] : memref<20x96xf32, #tpu.memory_space<vmem>>, vector<1x32xf32>
    %cst_25 = arith.constant dense<0.000000e+00> : vector<16x96xf32>
    %42 = tpu.matmul %24, %30, %cst_25 {dimension_numbers = #tpu.dot_dimension_numbers<[1], [0], [0], [1], [0, 0, 1, 1], [], []>} : vector<16x32xf32>, vector<32x96xf32>, vector<16x96xf32> -> vector<16x96xf32>
    %43 = vector.broadcast %34 : vector<1x96xf32> to vector<16x96xf32>
    %44 = arith.addf %42, %43 : vector<16x96xf32>
    %45 = vector.extract_strided_slice %44 {offsets = [0, 0], sizes = [16, 32], strides = [1, 1]} : vector<16x96xf32> to vector<16x32xf32>
    %46 = vector.extract_strided_slice %44 {offsets = [0, 32], sizes = [16, 32], strides = [1, 1]} : vector<16x96xf32> to vector<16x32xf32>
    %47 = vector.extract_strided_slice %44 {offsets = [0, 64], sizes = [16, 32], strides = [1, 1]} : vector<16x96xf32> to vector<16x32xf32>
    %48 = vector.extract_strided_slice %29 {offsets = [0, 0], sizes = [1, 8], strides = [1, 1]} : vector<2x8xf32> to vector<1x8xf32>
    %49 = vector.extract_strided_slice %45 {offsets = [0, 0], sizes = [8, 16], strides = [1, 1]} : vector<16x32xf32> to vector<8x16xf32>
    %50 = vector.extract_strided_slice %46 {offsets = [0, 0], sizes = [8, 16], strides = [1, 1]} : vector<16x32xf32> to vector<8x16xf32>
    %51 = vector.extract_strided_slice %47 {offsets = [0, 0], sizes = [8, 16], strides = [1, 1]} : vector<16x32xf32> to vector<8x16xf32>
    %cst_26 = arith.constant dense<0.000000e+00> : vector<8x8xf32>
    %52 = tpu.matmul %49, %50, %cst_26 {dimension_numbers = #tpu.dot_dimension_numbers<[1], [1], [0], [0], [0, 0, 1, 0], [], []>} : vector<8x16xf32>, vector<8x16xf32>, vector<8x8xf32> -> vector<8x8xf32>
    %53 = vector.broadcast %48 : vector<1x8xf32> to vector<8x8xf32>
    %54 = arith.addf %52, %53 : vector<8x8xf32>
    %cst_27 = arith.constant dense<0xFF800000> : vector<8xf32>
    %55 = vector.multi_reduction <maximumf>, %54, %cst_27 [1] : vector<8x8xf32> to vector<8xf32>
    %56 = vector.shape_cast %55 : vector<8xf32> to vector<8x1xf32>
    %57 = vector.broadcast %56 : vector<8x1xf32> to vector<8x8xf32>
    %58 = arith.subf %54, %57 : vector<8x8xf32>
    %59 = math.exp %58 : vector<8x8xf32>
    %cst_28 = arith.constant dense<0.000000e+00> : vector<8xf32>
    %60 = vector.multi_reduction <add>, %59, %cst_28 [1] : vector<8x8xf32> to vector<8xf32>
    %61 = vector.shape_cast %60 : vector<8xf32> to vector<8x1xf32>
    %62 = tpu.reciprocal %61 {approx = true} : vector<8x1xf32> -> vector<8x1xf32>
    %63 = vector.broadcast %62 : vector<8x1xf32> to vector<8x8xf32>
    %64 = arith.mulf %59, %63 : vector<8x8xf32>
    %cst_29 = arith.constant dense<0.000000e+00> : vector<8x16xf32>
    %65 = tpu.matmul %64, %51, %cst_29 {dimension_numbers = #tpu.dot_dimension_numbers<[1], [0], [0], [1], [0, 0, 1, 1], [], []>} : vector<8x8xf32>, vector<8x16xf32>, vector<8x16xf32> -> vector<8x16xf32>
    %c0_30 = arith.constant 0 : index
    %c0_31 = arith.constant 0 : index
    %66 = vector.load %arg7[%c0_30, %c0_31] : memref<16x32xf32, #tpu.memory_space<vmem>>, vector<8x16xf32>
    tpu.vector_store %arg7[%c0_30, %c0_31], %65 {strides = array<i32>} : memref<16x32xf32, #tpu.memory_space<vmem>>, vector<8x16xf32>,
    %67 = vector.extract_strided_slice %45 {offsets = [0, 16], sizes = [8, 16], strides = [1, 1]} : vector<16x32xf32> to vector<8x16xf32>
    %68 = vector.extract_strided_slice %46 {offsets = [0, 16], sizes = [8, 16], strides = [1, 1]} : vector<16x32xf32> to vector<8x16xf32>
    %69 = vector.extract_strided_slice %47 {offsets = [0, 16], sizes = [8, 16], strides = [1, 1]} : vector<16x32xf32> to vector<8x16xf32>
    %cst_32 = arith.constant dense<0.000000e+00> : vector<8x8xf32>
    %70 = tpu.matmul %67, %68, %cst_32 {dimension_numbers = #tpu.dot_dimension_numbers<[1], [1], [0], [0], [0, 0, 1, 0], [], []>} : vector<8x16xf32>, vector<8x16xf32>, vector<8x8xf32> -> vector<8x8xf32>
    %71 = vector.broadcast %48 : vector<1x8xf32> to vector<8x8xf32>
    %72 = arith.addf %70, %71 : vector<8x8xf32>
    %cst_33 = arith.constant dense<0xFF800000> : vector<8xf32>
    %73 = vector.multi_reduction <maximumf>, %72, %cst_33 [1] : vector<8x8xf32> to vector<8xf32>
    %74 = vector.shape_cast %73 : vector<8xf32> to vector<8x1xf32>
    %75 = vector.broadcast %74 : vector<8x1xf32> to vector<8x8xf32>
    %76 = arith.subf %72, %75 : vector<8x8xf32>
    %77 = math.exp %76 : vector<8x8xf32>
    %cst_34 = arith.constant dense<0.000000e+00> : vector<8xf32>
    %78 = vector.multi_reduction <add>, %77, %cst_34 [1] : vector<8x8xf32> to vector<8xf32>
    %79 = vector.shape_cast %78 : vector<8xf32> to vector<8x1xf32>
    %80 = tpu.reciprocal %79 {approx = true} : vector<8x1xf32> -> vector<8x1xf32>
    %81 = vector.broadcast %80 : vector<8x1xf32> to vector<8x8xf32>
    %82 = arith.mulf %77, %81 : vector<8x8xf32>
    %cst_35 = arith.constant dense<0.000000e+00> : vector<8x16xf32>
    %83 = tpu.matmul %82, %69, %cst_35 {dimension_numbers = #tpu.dot_dimension_numbers<[1], [0], [0], [1], [0, 0, 1, 1], [], []>} : vector<8x8xf32>, vector<8x16xf32>, vector<8x16xf32> -> vector<8x16xf32>
    %c0_36 = arith.constant 0 : index
    %c16 = arith.constant 16 : index
    %84 = vector.load %arg7[%c0_36, %c16] : memref<16x32xf32, #tpu.memory_space<vmem>>, vector<8x16xf32>
    tpu.vector_store %arg7[%c0_36, %c16], %83 {strides = array<i32>} : memref<16x32xf32, #tpu.memory_space<vmem>>, vector<8x16xf32>,
    %85 = vector.extract_strided_slice %29 {offsets = [1, 0], sizes = [1, 8], strides = [1, 1]} : vector<2x8xf32> to vector<1x8xf32>
    %86 = vector.extract_strided_slice %45 {offsets = [8, 0], sizes = [8, 16], strides = [1, 1]} : vector<16x32xf32> to vector<8x16xf32>
    %87 = vector.extract_strided_slice %46 {offsets = [8, 0], sizes = [8, 16], strides = [1, 1]} : vector<16x32xf32> to vector<8x16xf32>
    %88 = vector.extract_strided_slice %47 {offsets = [8, 0], sizes = [8, 16], strides = [1, 1]} : vector<16x32xf32> to vector<8x16xf32>
    %cst_37 = arith.constant dense<0.000000e+00> : vector<8x8xf32>
    %89 = tpu.matmul %86, %87, %cst_37 {dimension_numbers = #tpu.dot_dimension_numbers<[1], [1], [0], [0], [0, 0, 1, 0], [], []>} : vector<8x16xf32>, vector<8x16xf32>, vector<8x8xf32> -> vector<8x8xf32>
    %90 = vector.broadcast %85 : vector<1x8xf32> to vector<8x8xf32>
    %91 = arith.addf %89, %90 : vector<8x8xf32>
    %cst_38 = arith.constant dense<0xFF800000> : vector<8xf32>
    %92 = vector.multi_reduction <maximumf>, %91, %cst_38 [1] : vector<8x8xf32> to vector<8xf32>
    %93 = vector.shape_cast %92 : vector<8xf32> to vector<8x1xf32>
    %94 = vector.broadcast %93 : vector<8x1xf32> to vector<8x8xf32>
    %95 = arith.subf %91, %94 : vector<8x8xf32>
    %96 = math.exp %95 : vector<8x8xf32>
    %cst_39 = arith.constant dense<0.000000e+00> : vector<8xf32>
    %97 = vector.multi_reduction <add>, %96, %cst_39 [1] : vector<8x8xf32> to vector<8xf32>
    %98 = vector.shape_cast %97 : vector<8xf32> to vector<8x1xf32>
    %99 = tpu.reciprocal %98 {approx = true} : vector<8x1xf32> -> vector<8x1xf32>
    %100 = vector.broadcast %99 : vector<8x1xf32> to vector<8x8xf32>
    %101 = arith.mulf %96, %100 : vector<8x8xf32>
    %cst_40 = arith.constant dense<0.000000e+00> : vector<8x16xf32>
    %102 = tpu.matmul %101, %88, %cst_40 {dimension_numbers = #tpu.dot_dimension_numbers<[1], [0], [0], [1], [0, 0, 1, 1], [], []>} : vector<8x8xf32>, vector<8x16xf32>, vector<8x16xf32> -> vector<8x16xf32>
    %c8_41 = arith.constant 8 : index
    %c0_42 = arith.constant 0 : index
    %103 = vector.load %arg7[%c8_41, %c0_42] : memref<16x32xf32, #tpu.memory_space<vmem>>, vector<8x16xf32>
    tpu.vector_store %arg7[%c8_41, %c0_42], %102 {strides = array<i32>} : memref<16x32xf32, #tpu.memory_space<vmem>>, vector<8x16xf32>,
    %104 = vector.extract_strided_slice %45 {offsets = [8, 16], sizes = [8, 16], strides = [1, 1]} : vector<16x32xf32> to vector<8x16xf32>
    %105 = vector.extract_strided_slice %46 {offsets = [8, 16], sizes = [8, 16], strides = [1, 1]} : vector<16x32xf32> to vector<8x16xf32>
    %106 = vector.extract_strided_slice %47 {offsets = [8, 16], sizes = [8, 16], strides = [1, 1]} : vector<16x32xf32> to vector<8x16xf32>
    %cst_43 = arith.constant dense<0.000000e+00> : vector<8x8xf32>
    %107 = tpu.matmul %104, %105, %cst_43 {dimension_numbers = #tpu.dot_dimension_numbers<[1], [1], [0], [0], [0, 0, 1, 0], [], []>} : vector<8x16xf32>, vector<8x16xf32>, vector<8x8xf32> -> vector<8x8xf32>
    %108 = vector.broadcast %85 : vector<1x8xf32> to vector<8x8xf32>
    %109 = arith.addf %107, %108 : vector<8x8xf32>
    %cst_44 = arith.constant dense<0xFF800000> : vector<8xf32>
    %110 = vector.multi_reduction <maximumf>, %109, %cst_44 [1] : vector<8x8xf32> to vector<8xf32>
    %111 = vector.shape_cast %110 : vector<8xf32> to vector<8x1xf32>
    %112 = vector.broadcast %111 : vector<8x1xf32> to vector<8x8xf32>
    %113 = arith.subf %109, %112 : vector<8x8xf32>
    %114 = math.exp %113 : vector<8x8xf32>
    %cst_45 = arith.constant dense<0.000000e+00> : vector<8xf32>
    %115 = vector.multi_reduction <add>, %114, %cst_45 [1] : vector<8x8xf32> to vector<8xf32>
    %116 = vector.shape_cast %115 : vector<8xf32> to vector<8x1xf32>
    %117 = tpu.reciprocal %116 {approx = true} : vector<8x1xf32> -> vector<8x1xf32>
    %118 = vector.broadcast %117 : vector<8x1xf32> to vector<8x8xf32>
    %119 = arith.mulf %114, %118 : vector<8x8xf32>
    %cst_46 = arith.constant dense<0.000000e+00> : vector<8x16xf32>
    %120 = tpu.matmul %119, %106, %cst_46 {dimension_numbers = #tpu.dot_dimension_numbers<[1], [0], [0], [1], [0, 0, 1, 1], [], []>} : vector<8x8xf32>, vector<8x16xf32>, vector<8x16xf32> -> vector<8x16xf32>
    %c8_47 = arith.constant 8 : index
    %c16_48 = arith.constant 16 : index
    %121 = vector.load %arg7[%c8_47, %c16_48] : memref<16x32xf32, #tpu.memory_space<vmem>>, vector<8x16xf32>
    tpu.vector_store %arg7[%c8_47, %c16_48], %120 {strides = array<i32>} : memref<16x32xf32, #tpu.memory_space<vmem>>, vector<8x16xf32>,
    %c0_49 = arith.constant 0 : index
    %c0_50 = arith.constant 0 : index
    %122 = vector.load %arg7[%c0_49, %c0_50] : memref<16x32xf32, #tpu.memory_space<vmem>>, vector<16x32xf32>
    %cst_51 = arith.constant dense<0.000000e+00> : vector<16x32xf32>
    %123 = tpu.matmul %122, %31, %cst_51 {dimension_numbers = #tpu.dot_dimension_numbers<[1], [0], [0], [1], [0, 0, 1, 1], [], []>} : vector<16x32xf32>, vector<32x32xf32>, vector<16x32xf32> -> vector<16x32xf32>
    %124 = vector.broadcast %35 : vector<1x32xf32> to vector<16x32xf32>
    %125 = arith.addf %123, %124 : vector<16x32xf32>
    %126 = arith.addf %125, %24 : vector<16x32xf32>
    %cst_52 = arith.constant dense<0.000000e+00> : vector<16xf32>
    %127 = vector.multi_reduction <add>, %126, %cst_52 [1] : vector<16x32xf32> to vector<16xf32>
    %128 = vector.shape_cast %127 : vector<16xf32> to vector<16x1xf32>
    %cst_53 = arith.constant 3.200000e+01 : f32
    %129 = vector.broadcast %cst_53 : f32 to vector<16x1xf32>
    %130 = arith.divf %128, %129 : vector<16x1xf32>
    %131 = vector.broadcast %130 : vector<16x1xf32> to vector<16x32xf32>
    %132 = arith.subf %126, %131 : vector<16x32xf32>
    %133 = arith.mulf %132, %132 : vector<16x32xf32>
    %cst_54 = arith.constant dense<0.000000e+00> : vector<16xf32>
    %134 = vector.multi_reduction <add>, %133, %cst_54 [1] : vector<16x32xf32> to vector<16xf32>
    %135 = vector.shape_cast %134 : vector<16xf32> to vector<16x1xf32>
    %cst_55 = arith.constant 3.200000e+01 : f32
    %136 = vector.broadcast %cst_55 : f32 to vector<16x1xf32>
    %137 = arith.divf %135, %136 : vector<16x1xf32>
    %138 = vector.broadcast %130 : vector<16x1xf32> to vector<16x32xf32>
    %139 = arith.subf %126, %138 : vector<16x32xf32>
    %cst_56 = arith.constant 9.99999996E-13 : f32
    %140 = vector.broadcast %cst_56 : f32 to vector<16x1xf32>
    %141 = arith.addf %137, %140 : vector<16x1xf32>
    %142 = math.rsqrt %141 : vector<16x1xf32>
    %143 = vector.broadcast %142 : vector<16x1xf32> to vector<16x32xf32>
    %144 = arith.mulf %139, %143 : vector<16x32xf32>
    %145 = vector.broadcast %36 : vector<1x32xf32> to vector<16x32xf32>
    %146 = arith.mulf %144, %145 : vector<16x32xf32>
    %147 = vector.broadcast %37 : vector<1x32xf32> to vector<16x32xf32>
    %148 = arith.addf %146, %147 : vector<16x32xf32>
    %cst_57 = arith.constant dense<0.000000e+00> : vector<16x64xf32>
    %149 = tpu.matmul %148, %32, %cst_57 {dimension_numbers = #tpu.dot_dimension_numbers<[1], [0], [0], [1], [0, 0, 1, 1], [], []>} : vector<16x32xf32>, vector<32x64xf32>, vector<16x64xf32> -> vector<16x64xf32>
    %150 = vector.broadcast %38 : vector<1x64xf32> to vector<16x64xf32>
    %151 = arith.addf %149, %150 : vector<16x64xf32>
    %cst_58 = arith.constant 5.000000e-01 : f32
    %152 = vector.broadcast %cst_58 : f32 to vector<16x64xf32>
    %153 = arith.mulf %152, %151 : vector<16x64xf32>
    %cst_59 = arith.constant 4.471500e-02 : f32
    %154 = vector.broadcast %cst_59 : f32 to vector<16x64xf32>
    %155 = arith.mulf %154, %151 : vector<16x64xf32>
    %156 = arith.mulf %155, %151 : vector<16x64xf32>
    %157 = arith.mulf %156, %151 : vector<16x64xf32>
    %158 = arith.addf %151, %157 : vector<16x64xf32>
    %cst_60 = arith.constant 0.797884583 : f32
    %159 = vector.broadcast %cst_60 : f32 to vector<16x64xf32>
    %160 = arith.mulf %159, %158 : vector<16x64xf32>
    %161 = math.tanh %160 : vector<16x64xf32>
    %cst_61 = arith.constant 1.000000e+00 : f32
    %162 = vector.broadcast %cst_61 : f32 to vector<16x64xf32>
    %163 = arith.addf %162, %161 : vector<16x64xf32>
    %164 = arith.mulf %153, %163 : vector<16x64xf32>
    %cst_62 = arith.constant dense<0.000000e+00> : vector<16x32xf32>
    %165 = tpu.matmul %164, %33, %cst_62 {dimension_numbers = #tpu.dot_dimension_numbers<[1], [0], [0], [1], [0, 0, 1, 1], [], []>} : vector<16x64xf32>, vector<64x32xf32>, vector<16x32xf32> -> vector<16x32xf32>
    %166 = vector.broadcast %39 : vector<1x32xf32> to vector<16x32xf32>
    %167 = arith.addf %165, %166 : vector<16x32xf32>
    %168 = arith.addf %167, %148 : vector<16x32xf32>
    %cst_63 = arith.constant dense<0.000000e+00> : vector<16xf32>
    %169 = vector.multi_reduction <add>, %168, %cst_63 [1] : vector<16x32xf32> to vector<16xf32>
    %170 = vector.shape_cast %169 : vector<16xf32> to vector<16x1xf32>
    %cst_64 = arith.constant 3.200000e+01 : f32
    %171 = vector.broadcast %cst_64 : f32 to vector<16x1xf32>
    %172 = arith.divf %170, %171 : vector<16x1xf32>
    %173 = vector.broadcast %172 : vector<16x1xf32> to vector<16x32xf32>
    %174 = arith.subf %168, %173 : vector<16x32xf32>
    %175 = arith.mulf %174, %174 : vector<16x32xf32>
    %cst_65 = arith.constant dense<0.000000e+00> : vector<16xf32>
    %176 = vector.multi_reduction <add>, %175, %cst_65 [1] : vector<16x32xf32> to vector<16xf32>
    %177 = vector.shape_cast %176 : vector<16xf32> to vector<16x1xf32>
    %cst_66 = arith.constant 3.200000e+01 : f32
    %178 = vector.broadcast %cst_66 : f32 to vector<16x1xf32>
    %179 = arith.divf %177, %178 : vector<16x1xf32>
    %180 = vector.broadcast %172 : vector<16x1xf32> to vector<16x32xf32>
    %181 = arith.subf %168, %180 : vector<16x32xf32>
    %cst_67 = arith.constant 9.99999996E-13 : f32
    %182 = vector.broadcast %cst_67 : f32 to vector<16x1xf32>
    %183 = arith.addf %179, %182 : vector<16x1xf32>
    %184 = math.rsqrt %183 : vector<16x1xf32>
    %185 = vector.broadcast %184 : vector<16x1xf32> to vector<16x32xf32>
    %186 = arith.mulf %181, %185 : vector<16x32xf32>
    %187 = vector.broadcast %40 : vector<1x32xf32> to vector<16x32xf32>
    %188 = arith.mulf %186, %187 : vector<16x32xf32>
    %189 = vector.broadcast %41 : vector<1x32xf32> to vector<16x32xf32>
    %190 = arith.addf %188, %189 : vector<16x32xf32>
    %c160 = arith.constant 160 : index
    %c0_68 = arith.constant 0 : index
    %191 = vector.load %arg3[%c160, %c0_68] : memref<384x96xf32, #tpu.memory_space<vmem>>, vector<32x96xf32>
    %c192 = arith.constant 192 : index
    %c0_69 = arith.constant 0 : index
    %192 = vector.load %arg3[%c192, %c0_69] : memref<384x96xf32, #tpu.memory_space<vmem>>, vector<32x32xf32>
    %c224 = arith.constant 224 : index
    %c0_70 = arith.constant 0 : index
    %193 = vector.load %arg3[%c224, %c0_70] : memref<384x96xf32, #tpu.memory_space<vmem>>, vector<32x64xf32>
    %c256 = arith.constant 256 : index
    %c0_71 = arith.constant 0 : index
    %194 = vector.load %arg3[%c256, %c0_71] : memref<384x96xf32, #tpu.memory_space<vmem>>, vector<64x32xf32>
    %c10 = arith.constant 10 : index
    %c0_72 = arith.constant 0 : index
    %195 = vector.load %arg4[%c10, %c0_72] : memref<20x96xf32, #tpu.memory_space<vmem>>, vector<1x96xf32>
    %c11 = arith.constant 11 : index
    %c0_73 = arith.constant 0 : index
    %196 = vector.load %arg4[%c11, %c0_73] : memref<20x96xf32, #tpu.memory_space<vmem>>, vector<1x32xf32>
    %c12 = arith.constant 12 : index
    %c0_74 = arith.constant 0 : index
    %197 = vector.load %arg4[%c12, %c0_74] : memref<20x96xf32, #tpu.memory_space<vmem>>, vector<1x32xf32>
    %c13 = arith.constant 13 : index
    %c0_75 = arith.constant 0 : index
    %198 = vector.load %arg4[%c13, %c0_75] : memref<20x96xf32, #tpu.memory_space<vmem>>, vector<1x32xf32>
    %c14 = arith.constant 14 : index
    %c0_76 = arith.constant 0 : index
    %199 = vector.load %arg4[%c14, %c0_76] : memref<20x96xf32, #tpu.memory_space<vmem>>, vector<1x64xf32>
    %c15 = arith.constant 15 : index
    %c0_77 = arith.constant 0 : index
    %200 = vector.load %arg4[%c15, %c0_77] : memref<20x96xf32, #tpu.memory_space<vmem>>, vector<1x32xf32>
    %c16_78 = arith.constant 16 : index
    %c0_79 = arith.constant 0 : index
    %201 = vector.load %arg4[%c16_78, %c0_79] : memref<20x96xf32, #tpu.memory_space<vmem>>, vector<1x32xf32>
    %c17 = arith.constant 17 : index
    %c0_80 = arith.constant 0 : index
    %202 = vector.load %arg4[%c17, %c0_80] : memref<20x96xf32, #tpu.memory_space<vmem>>, vector<1x32xf32>
    %cst_81 = arith.constant dense<0.000000e+00> : vector<16x96xf32>
    %203 = tpu.matmul %190, %191, %cst_81 {dimension_numbers = #tpu.dot_dimension_numbers<[1], [0], [0], [1], [0, 0, 1, 1], [], []>} : vector<16x32xf32>, vector<32x96xf32>, vector<16x96xf32> -> vector<16x96xf32>
    %204 = vector.broadcast %195 : vector<1x96xf32> to vector<16x96xf32>
    %205 = arith.addf %203, %204 : vector<16x96xf32>
    %206 = vector.extract_strided_slice %205 {offsets = [0, 0], sizes = [16, 32], strides = [1, 1]} : vector<16x96xf32> to vector<16x32xf32>
    %207 = vector.extract_strided_slice %205 {offsets = [0, 32], sizes = [16, 32], strides = [1, 1]} : vector<16x96xf32> to vector<16x32xf32>
    %208 = vector.extract_strided_slice %205 {offsets = [0, 64], sizes = [16, 32], strides = [1, 1]} : vector<16x96xf32> to vector<16x32xf32>
    %209 = vector.extract_strided_slice %29 {offsets = [0, 0], sizes = [1, 8], strides = [1, 1]} : vector<2x8xf32> to vector<1x8xf32>
    %210 = vector.extract_strided_slice %206 {offsets = [0, 0], sizes = [8, 16], strides = [1, 1]} : vector<16x32xf32> to vector<8x16xf32>
    %211 = vector.extract_strided_slice %207 {offsets = [0, 0], sizes = [8, 16], strides = [1, 1]} : vector<16x32xf32> to vector<8x16xf32>
    %212 = vector.extract_strided_slice %208 {offsets = [0, 0], sizes = [8, 16], strides = [1, 1]} : vector<16x32xf32> to vector<8x16xf32>
    %cst_82 = arith.constant dense<0.000000e+00> : vector<8x8xf32>
    %213 = tpu.matmul %210, %211, %cst_82 {dimension_numbers = #tpu.dot_dimension_numbers<[1], [1], [0], [0], [0, 0, 1, 0], [], []>} : vector<8x16xf32>, vector<8x16xf32>, vector<8x8xf32> -> vector<8x8xf32>
    %214 = vector.broadcast %209 : vector<1x8xf32> to vector<8x8xf32>
    %215 = arith.addf %213, %214 : vector<8x8xf32>
    %cst_83 = arith.constant dense<0xFF800000> : vector<8xf32>
    %216 = vector.multi_reduction <maximumf>, %215, %cst_83 [1] : vector<8x8xf32> to vector<8xf32>
    %217 = vector.shape_cast %216 : vector<8xf32> to vector<8x1xf32>
    %218 = vector.broadcast %217 : vector<8x1xf32> to vector<8x8xf32>
    %219 = arith.subf %215, %218 : vector<8x8xf32>
    %220 = math.exp %219 : vector<8x8xf32>
    %cst_84 = arith.constant dense<0.000000e+00> : vector<8xf32>
    %221 = vector.multi_reduction <add>, %220, %cst_84 [1] : vector<8x8xf32> to vector<8xf32>
    %222 = vector.shape_cast %221 : vector<8xf32> to vector<8x1xf32>
    %223 = tpu.reciprocal %222 {approx = true} : vector<8x1xf32> -> vector<8x1xf32>
    %224 = vector.broadcast %223 : vector<8x1xf32> to vector<8x8xf32>
    %225 = arith.mulf %220, %224 : vector<8x8xf32>
    %cst_85 = arith.constant dense<0.000000e+00> : vector<8x16xf32>
    %226 = tpu.matmul %225, %212, %cst_85 {dimension_numbers = #tpu.dot_dimension_numbers<[1], [0], [0], [1], [0, 0, 1, 1], [], []>} : vector<8x8xf32>, vector<8x16xf32>, vector<8x16xf32> -> vector<8x16xf32>
    %c0_86 = arith.constant 0 : index
    %c0_87 = arith.constant 0 : index
    %227 = vector.load %arg7[%c0_86, %c0_87] : memref<16x32xf32, #tpu.memory_space<vmem>>, vector<8x16xf32>
    tpu.vector_store %arg7[%c0_86, %c0_87], %226 {strides = array<i32>} : memref<16x32xf32, #tpu.memory_space<vmem>>, vector<8x16xf32>,
    %228 = vector.extract_strided_slice %206 {offsets = [0, 16], sizes = [8, 16], strides = [1, 1]} : vector<16x32xf32> to vector<8x16xf32>
    %229 = vector.extract_strided_slice %207 {offsets = [0, 16], sizes = [8, 16], strides = [1, 1]} : vector<16x32xf32> to vector<8x16xf32>
    %230 = vector.extract_strided_slice %208 {offsets = [0, 16], sizes = [8, 16], strides = [1, 1]} : vector<16x32xf32> to vector<8x16xf32>
    %cst_88 = arith.constant dense<0.000000e+00> : vector<8x8xf32>
    %231 = tpu.matmul %228, %229, %cst_88 {dimension_numbers = #tpu.dot_dimension_numbers<[1], [1], [0], [0], [0, 0, 1, 0], [], []>} : vector<8x16xf32>, vector<8x16xf32>, vector<8x8xf32> -> vector<8x8xf32>
    %232 = vector.broadcast %209 : vector<1x8xf32> to vector<8x8xf32>
    %233 = arith.addf %231, %232 : vector<8x8xf32>
    %cst_89 = arith.constant dense<0xFF800000> : vector<8xf32>
    %234 = vector.multi_reduction <maximumf>, %233, %cst_89 [1] : vector<8x8xf32> to vector<8xf32>
    %235 = vector.shape_cast %234 : vector<8xf32> to vector<8x1xf32>
    %236 = vector.broadcast %235 : vector<8x1xf32> to vector<8x8xf32>
    %237 = arith.subf %233, %236 : vector<8x8xf32>
    %238 = math.exp %237 : vector<8x8xf32>
    %cst_90 = arith.constant dense<0.000000e+00> : vector<8xf32>
    %239 = vector.multi_reduction <add>, %238, %cst_90 [1] : vector<8x8xf32> to vector<8xf32>
    %240 = vector.shape_cast %239 : vector<8xf32> to vector<8x1xf32>
    %241 = tpu.reciprocal %240 {approx = true} : vector<8x1xf32> -> vector<8x1xf32>
    %242 = vector.broadcast %241 : vector<8x1xf32> to vector<8x8xf32>
    %243 = arith.mulf %238, %242 : vector<8x8xf32>
    %cst_91 = arith.constant dense<0.000000e+00> : vector<8x16xf32>
    %244 = tpu.matmul %243, %230, %cst_91 {dimension_numbers = #tpu.dot_dimension_numbers<[1], [0], [0], [1], [0, 0, 1, 1], [], []>} : vector<8x8xf32>, vector<8x16xf32>, vector<8x16xf32> -> vector<8x16xf32>
    %c0_92 = arith.constant 0 : index
    %c16_93 = arith.constant 16 : index
    %245 = vector.load %arg7[%c0_92, %c16_93] : memref<16x32xf32, #tpu.memory_space<vmem>>, vector<8x16xf32>
    tpu.vector_store %arg7[%c0_92, %c16_93], %244 {strides = array<i32>} : memref<16x32xf32, #tpu.memory_space<vmem>>, vector<8x16xf32>,
    %246 = vector.extract_strided_slice %29 {offsets = [1, 0], sizes = [1, 8], strides = [1, 1]} : vector<2x8xf32> to vector<1x8xf32>
    %247 = vector.extract_strided_slice %206 {offsets = [8, 0], sizes = [8, 16], strides = [1, 1]} : vector<16x32xf32> to vector<8x16xf32>
    %248 = vector.extract_strided_slice %207 {offsets = [8, 0], sizes = [8, 16], strides = [1, 1]} : vector<16x32xf32> to vector<8x16xf32>
    %249 = vector.extract_strided_slice %208 {offsets = [8, 0], sizes = [8, 16], strides = [1, 1]} : vector<16x32xf32> to vector<8x16xf32>
    %cst_94 = arith.constant dense<0.000000e+00> : vector<8x8xf32>
    %250 = tpu.matmul %247, %248, %cst_94 {dimension_numbers = #tpu.dot_dimension_numbers<[1], [1], [0], [0], [0, 0, 1, 0], [], []>} : vector<8x16xf32>, vector<8x16xf32>, vector<8x8xf32> -> vector<8x8xf32>
    %251 = vector.broadcast %246 : vector<1x8xf32> to vector<8x8xf32>
    %252 = arith.addf %250, %251 : vector<8x8xf32>
    %cst_95 = arith.constant dense<0xFF800000> : vector<8xf32>
    %253 = vector.multi_reduction <maximumf>, %252, %cst_95 [1] : vector<8x8xf32> to vector<8xf32>
    %254 = vector.shape_cast %253 : vector<8xf32> to vector<8x1xf32>
    %255 = vector.broadcast %254 : vector<8x1xf32> to vector<8x8xf32>
    %256 = arith.subf %252, %255 : vector<8x8xf32>
    %257 = math.exp %256 : vector<8x8xf32>
    %cst_96 = arith.constant dense<0.000000e+00> : vector<8xf32>
    %258 = vector.multi_reduction <add>, %257, %cst_96 [1] : vector<8x8xf32> to vector<8xf32>
    %259 = vector.shape_cast %258 : vector<8xf32> to vector<8x1xf32>
    %260 = tpu.reciprocal %259 {approx = true} : vector<8x1xf32> -> vector<8x1xf32>
    %261 = vector.broadcast %260 : vector<8x1xf32> to vector<8x8xf32>
    %262 = arith.mulf %257, %261 : vector<8x8xf32>
    %cst_97 = arith.constant dense<0.000000e+00> : vector<8x16xf32>
    %263 = tpu.matmul %262, %249, %cst_97 {dimension_numbers = #tpu.dot_dimension_numbers<[1], [0], [0], [1], [0, 0, 1, 1], [], []>} : vector<8x8xf32>, vector<8x16xf32>, vector<8x16xf32> -> vector<8x16xf32>
    %c8_98 = arith.constant 8 : index
    %c0_99 = arith.constant 0 : index
    %264 = vector.load %arg7[%c8_98, %c0_99] : memref<16x32xf32, #tpu.memory_space<vmem>>, vector<8x16xf32>
    tpu.vector_store %arg7[%c8_98, %c0_99], %263 {strides = array<i32>} : memref<16x32xf32, #tpu.memory_space<vmem>>, vector<8x16xf32>,
    %265 = vector.extract_strided_slice %206 {offsets = [8, 16], sizes = [8, 16], strides = [1, 1]} : vector<16x32xf32> to vector<8x16xf32>
    %266 = vector.extract_strided_slice %207 {offsets = [8, 16], sizes = [8, 16], strides = [1, 1]} : vector<16x32xf32> to vector<8x16xf32>
    %267 = vector.extract_strided_slice %208 {offsets = [8, 16], sizes = [8, 16], strides = [1, 1]} : vector<16x32xf32> to vector<8x16xf32>
    %cst_100 = arith.constant dense<0.000000e+00> : vector<8x8xf32>
    %268 = tpu.matmul %265, %266, %cst_100 {dimension_numbers = #tpu.dot_dimension_numbers<[1], [1], [0], [0], [0, 0, 1, 0], [], []>} : vector<8x16xf32>, vector<8x16xf32>, vector<8x8xf32> -> vector<8x8xf32>
    %269 = vector.broadcast %246 : vector<1x8xf32> to vector<8x8xf32>
    %270 = arith.addf %268, %269 : vector<8x8xf32>
    %cst_101 = arith.constant dense<0xFF800000> : vector<8xf32>
    %271 = vector.multi_reduction <maximumf>, %270, %cst_101 [1] : vector<8x8xf32> to vector<8xf32>
    %272 = vector.shape_cast %271 : vector<8xf32> to vector<8x1xf32>
    %273 = vector.broadcast %272 : vector<8x1xf32> to vector<8x8xf32>
    %274 = arith.subf %270, %273 : vector<8x8xf32>
    %275 = math.exp %274 : vector<8x8xf32>
    %cst_102 = arith.constant dense<0.000000e+00> : vector<8xf32>
    %276 = vector.multi_reduction <add>, %275, %cst_102 [1] : vector<8x8xf32> to vector<8xf32>
    %277 = vector.shape_cast %276 : vector<8xf32> to vector<8x1xf32>
    %278 = tpu.reciprocal %277 {approx = true} : vector<8x1xf32> -> vector<8x1xf32>
    %279 = vector.broadcast %278 : vector<8x1xf32> to vector<8x8xf32>
    %280 = arith.mulf %275, %279 : vector<8x8xf32>
    %cst_103 = arith.constant dense<0.000000e+00> : vector<8x16xf32>
    %281 = tpu.matmul %280, %267, %cst_103 {dimension_numbers = #tpu.dot_dimension_numbers<[1], [0], [0], [1], [0, 0, 1, 1], [], []>} : vector<8x8xf32>, vector<8x16xf32>, vector<8x16xf32> -> vector<8x16xf32>
    %c8_104 = arith.constant 8 : index
    %c16_105 = arith.constant 16 : index
    %282 = vector.load %arg7[%c8_104, %c16_105] : memref<16x32xf32, #tpu.memory_space<vmem>>, vector<8x16xf32>
    tpu.vector_store %arg7[%c8_104, %c16_105], %281 {strides = array<i32>} : memref<16x32xf32, #tpu.memory_space<vmem>>, vector<8x16xf32>,
    %c0_106 = arith.constant 0 : index
    %c0_107 = arith.constant 0 : index
    %283 = vector.load %arg7[%c0_106, %c0_107] : memref<16x32xf32, #tpu.memory_space<vmem>>, vector<16x32xf32>
    %cst_108 = arith.constant dense<0.000000e+00> : vector<16x32xf32>
    %284 = tpu.matmul %283, %192, %cst_108 {dimension_numbers = #tpu.dot_dimension_numbers<[1], [0], [0], [1], [0, 0, 1, 1], [], []>} : vector<16x32xf32>, vector<32x32xf32>, vector<16x32xf32> -> vector<16x32xf32>
    %285 = vector.broadcast %196 : vector<1x32xf32> to vector<16x32xf32>
    %286 = arith.addf %284, %285 : vector<16x32xf32>
    %287 = arith.addf %286, %190 : vector<16x32xf32>
    %cst_109 = arith.constant dense<0.000000e+00> : vector<16xf32>
    %288 = vector.multi_reduction <add>, %287, %cst_109 [1] : vector<16x32xf32> to vector<16xf32>
    %289 = vector.shape_cast %288 : vector<16xf32> to vector<16x1xf32>
    %cst_110 = arith.constant 3.200000e+01 : f32
    %290 = vector.broadcast %cst_110 : f32 to vector<16x1xf32>
    %291 = arith.divf %289, %290 : vector<16x1xf32>
    %292 = vector.broadcast %291 : vector<16x1xf32> to vector<16x32xf32>
    %293 = arith.subf %287, %292 : vector<16x32xf32>
    %294 = arith.mulf %293, %293 : vector<16x32xf32>
    %cst_111 = arith.constant dense<0.000000e+00> : vector<16xf32>
    %295 = vector.multi_reduction <add>, %294, %cst_111 [1] : vector<16x32xf32> to vector<16xf32>
    %296 = vector.shape_cast %295 : vector<16xf32> to vector<16x1xf32>
    %cst_112 = arith.constant 3.200000e+01 : f32
    %297 = vector.broadcast %cst_112 : f32 to vector<16x1xf32>
    %298 = arith.divf %296, %297 : vector<16x1xf32>
    %299 = vector.broadcast %291 : vector<16x1xf32> to vector<16x32xf32>
    %300 = arith.subf %287, %299 : vector<16x32xf32>
    %cst_113 = arith.constant 9.99999996E-13 : f32
    %301 = vector.broadcast %cst_113 : f32 to vector<16x1xf32>
    %302 = arith.addf %298, %301 : vector<16x1xf32>
    %303 = math.rsqrt %302 : vector<16x1xf32>
    %304 = vector.broadcast %303 : vector<16x1xf32> to vector<16x32xf32>
    %305 = arith.mulf %300, %304 : vector<16x32xf32>
    %306 = vector.broadcast %197 : vector<1x32xf32> to vector<16x32xf32>
    %307 = arith.mulf %305, %306 : vector<16x32xf32>
    %308 = vector.broadcast %198 : vector<1x32xf32> to vector<16x32xf32>
    %309 = arith.addf %307, %308 : vector<16x32xf32>
    %cst_114 = arith.constant dense<0.000000e+00> : vector<16x64xf32>
    %310 = tpu.matmul %309, %193, %cst_114 {dimension_numbers = #tpu.dot_dimension_numbers<[1], [0], [0], [1], [0, 0, 1, 1], [], []>} : vector<16x32xf32>, vector<32x64xf32>, vector<16x64xf32> -> vector<16x64xf32>
    %311 = vector.broadcast %199 : vector<1x64xf32> to vector<16x64xf32>
    %312 = arith.addf %310, %311 : vector<16x64xf32>
    %cst_115 = arith.constant 5.000000e-01 : f32
    %313 = vector.broadcast %cst_115 : f32 to vector<16x64xf32>
    %314 = arith.mulf %313, %312 : vector<16x64xf32>
    %cst_116 = arith.constant 4.471500e-02 : f32
    %315 = vector.broadcast %cst_116 : f32 to vector<16x64xf32>
    %316 = arith.mulf %315, %312 : vector<16x64xf32>
    %317 = arith.mulf %316, %312 : vector<16x64xf32>
    %318 = arith.mulf %317, %312 : vector<16x64xf32>
    %319 = arith.addf %312, %318 : vector<16x64xf32>
    %cst_117 = arith.constant 0.797884583 : f32
    %320 = vector.broadcast %cst_117 : f32 to vector<16x64xf32>
    %321 = arith.mulf %320, %319 : vector<16x64xf32>
    %322 = math.tanh %321 : vector<16x64xf32>
    %cst_118 = arith.constant 1.000000e+00 : f32
    %323 = vector.broadcast %cst_118 : f32 to vector<16x64xf32>
    %324 = arith.addf %323, %322 : vector<16x64xf32>
    %325 = arith.mulf %314, %324 : vector<16x64xf32>
    %cst_119 = arith.constant dense<0.000000e+00> : vector<16x32xf32>
    %326 = tpu.matmul %325, %194, %cst_119 {dimension_numbers = #tpu.dot_dimension_numbers<[1], [0], [0], [1], [0, 0, 1, 1], [], []>} : vector<16x64xf32>, vector<64x32xf32>, vector<16x32xf32> -> vector<16x32xf32>
    %327 = vector.broadcast %200 : vector<1x32xf32> to vector<16x32xf32>
    %328 = arith.addf %326, %327 : vector<16x32xf32>
    %329 = arith.addf %328, %309 : vector<16x32xf32>
    %cst_120 = arith.constant dense<0.000000e+00> : vector<16xf32>
    %330 = vector.multi_reduction <add>, %329, %cst_120 [1] : vector<16x32xf32> to vector<16xf32>
    %331 = vector.shape_cast %330 : vector<16xf32> to vector<16x1xf32>
    %cst_121 = arith.constant 3.200000e+01 : f32
    %332 = vector.broadcast %cst_121 : f32 to vector<16x1xf32>
    %333 = arith.divf %331, %332 : vector<16x1xf32>
    %334 = vector.broadcast %333 : vector<16x1xf32> to vector<16x32xf32>
    %335 = arith.subf %329, %334 : vector<16x32xf32>
    %336 = arith.mulf %335, %335 : vector<16x32xf32>
    %cst_122 = arith.constant dense<0.000000e+00> : vector<16xf32>
    %337 = vector.multi_reduction <add>, %336, %cst_122 [1] : vector<16x32xf32> to vector<16xf32>
    %338 = vector.shape_cast %337 : vector<16xf32> to vector<16x1xf32>
    %cst_123 = arith.constant 3.200000e+01 : f32
    %339 = vector.broadcast %cst_123 : f32 to vector<16x1xf32>
    %340 = arith.divf %338, %339 : vector<16x1xf32>
    %341 = vector.broadcast %333 : vector<16x1xf32> to vector<16x32xf32>
    %342 = arith.subf %329, %341 : vector<16x32xf32>
    %cst_124 = arith.constant 9.99999996E-13 : f32
    %343 = vector.broadcast %cst_124 : f32 to vector<16x1xf32>
    %344 = arith.addf %340, %343 : vector<16x1xf32>
    %345 = math.rsqrt %344 : vector<16x1xf32>
    %346 = vector.broadcast %345 : vector<16x1xf32> to vector<16x32xf32>
    %347 = arith.mulf %342, %346 : vector<16x32xf32>
    %348 = vector.broadcast %201 : vector<1x32xf32> to vector<16x32xf32>
    %349 = arith.mulf %347, %348 : vector<16x32xf32>
    %350 = vector.broadcast %202 : vector<1x32xf32> to vector<16x32xf32>
    %351 = arith.addf %349, %350 : vector<16x32xf32>
    %c320 = arith.constant 320 : index
    %c0_125 = arith.constant 0 : index
    %352 = vector.load %arg3[%c320, %c0_125] : memref<384x96xf32, #tpu.memory_space<vmem>>, vector<32x32xf32>
    %c352 = arith.constant 352 : index
    %c0_126 = arith.constant 0 : index
    %353 = vector.load %arg3[%c352, %c0_126] : memref<384x96xf32, #tpu.memory_space<vmem>>, vector<32x2xf32>
    %c18 = arith.constant 18 : index
    %c0_127 = arith.constant 0 : index
    %354 = vector.load %arg4[%c18, %c0_127] : memref<20x96xf32, #tpu.memory_space<vmem>>, vector<1x32xf32>
    %c19 = arith.constant 19 : index
    %c0_128 = arith.constant 0 : index
    %355 = vector.load %arg4[%c19, %c0_128] : memref<20x96xf32, #tpu.memory_space<vmem>>, vector<1x2xf32>
    %c0_129 = arith.constant 0 : index
    %c0_130 = arith.constant 0 : index
    %356 = vector.load %arg7[%c0_129, %c0_130] : memref<16x32xf32, #tpu.memory_space<vmem>>, vector<16x32xf32>
    tpu.vector_store %arg7[%c0_129, %c0_130], %351 {strides = array<i32>} : memref<16x32xf32, #tpu.memory_space<vmem>>, vector<16x32xf32>,
    %c0_131 = arith.constant 0 : index
    %c0_132 = arith.constant 0 : index
    %357 = tpu.strided_load %arg7[%c0_131, %c0_132] {strides = array<i32: 8, 1>} : memref<16x32xf32, #tpu.memory_space<vmem>>, vector<2x32xf32>
    %cst_133 = arith.constant dense<0.000000e+00> : vector<2x32xf32>
    %358 = tpu.matmul %357, %352, %cst_133 {dimension_numbers = #tpu.dot_dimension_numbers<[1], [0], [0], [1], [0, 0, 1, 1], [], []>} : vector<2x32xf32>, vector<32x32xf32>, vector<2x32xf32> -> vector<2x32xf32>
    %359 = vector.broadcast %354 : vector<1x32xf32> to vector<2x32xf32>
    %360 = arith.addf %358, %359 : vector<2x32xf32>
    %361 = math.tanh %360 : vector<2x32xf32>
    %cst_134 = arith.constant dense<0.000000e+00> : vector<2x2xf32>
    %362 = tpu.matmul %361, %353, %cst_134 {dimension_numbers = #tpu.dot_dimension_numbers<[1], [0], [0], [1], [0, 0, 1, 1], [], []>} : vector<2x32xf32>, vector<32x2xf32>, vector<2x2xf32> -> vector<2x2xf32>
    %363 = vector.broadcast %355 : vector<1x2xf32> to vector<2x2xf32>
    %364 = arith.addf %362, %363 : vector<2x2xf32>
    %c0_135 = arith.constant 0 : index
    %c0_136 = arith.constant 0 : index
    %365 = vector.load %arg5[%c0_135, %c0_136] : memref<2x2xf32, #tpu.memory_space<vmem>>, vector<2x2xf32>
    tpu.vector_store %arg5[%c0_135, %c0_136], %364 {strides = array<i32>} : memref<2x2xf32, #tpu.memory_space<vmem>>, vector<2x2xf32>,
    %c0_137 = arith.constant 0 : index
    %c0_138 = arith.constant 0 : index
    %366 = vector.load %arg2[%c0_137, %c0_138] : memref<2x1xi32, #tpu.memory_space<vmem>>, vector<2x1xi32>
    %cst_139 = arith.constant dense<0xFF800000> : vector<2xf32>
    %367 = vector.multi_reduction <maximumf>, %364, %cst_139 [1] : vector<2x2xf32> to vector<2xf32>
    %368 = vector.shape_cast %367 : vector<2xf32> to vector<2x1xf32>
    %369 = vector.broadcast %368 : vector<2x1xf32> to vector<2x2xf32>
    %370 = arith.subf %364, %369 : vector<2x2xf32>
    %371 = math.exp %370 : vector<2x2xf32>
    %cst_140 = arith.constant dense<0.000000e+00> : vector<2xf32>
    %372 = vector.multi_reduction <add>, %371, %cst_140 [1] : vector<2x2xf32> to vector<2xf32>
    %373 = vector.shape_cast %372 : vector<2xf32> to vector<2x1xf32>
    %374 = math.log %373 : vector<2x1xf32>
    %375 = arith.addf %368, %374 : vector<2x1xf32>
    %376 = tpu.iota {dimensions = array<i32: 1>} : vector<2x2xi32>
    %377 = vector.broadcast %366 : vector<2x1xi32> to vector<2x2xi32>
    %378 = arith.cmpi eq, %376, %377 : vector<2x2xi32>
    %379 = arith.extui %378 : vector<2x2xi1> to vector<2x2xi32>
    %380 = arith.sitofp %379 : vector<2x2xi32> to vector<2x2xf32>
    %381 = arith.mulf %380, %364 : vector<2x2xf32>
    %cst_141 = arith.constant dense<0.000000e+00> : vector<2xf32>
    %382 = vector.multi_reduction <add>, %381, %cst_141 [1] : vector<2x2xf32> to vector<2xf32>
    %383 = vector.shape_cast %382 : vector<2xf32> to vector<2x1xf32>
    %384 = arith.subf %375, %383 : vector<2x1xf32>
    %cst_142 = arith.constant dense<0.000000e+00> : vector<1xf32>
    %385 = vector.multi_reduction <add>, %384, %cst_142 [0] : vector<2x1xf32> to vector<1xf32>
    %386 = vector.shape_cast %385 : vector<1xf32> to vector<1x1xf32>
    %cst_143 = arith.constant 5.000000e-01 : f32
    %387 = vector.broadcast %cst_143 : f32 to vector<1x1xf32>
    %388 = arith.mulf %386, %387 : vector<1x1xf32>
    %c0_144 = arith.constant 0 : index
    %c0_145 = arith.constant 0 : index
    %389 = vector.load %arg6[%c0_144, %c0_145] : memref<1x1xf32, #tpu.memory_space<vmem>>, vector<1x1xf32>
    tpu.vector_store %arg6[%c0_144, %c0_145], %388 {strides = array<i32>} : memref<1x1xf32, #tpu.memory_space<vmem>>, vector<1x1xf32>,
    return
  }
}

</mosaic_0001>

<llo_original>
// kernel: tpu_custom_call.1
$region0: #{tpu_custom_call.1}
  #allocation0 [shape = 'u32[]', space=smem, size = 0x4, offset = 0x4, fixed_abs, tag = 'smem constant byte address 0x4 - core index']
  #allocation1 [shape = 'u32[144,128]{1,0:T(1,128)}', space=vmem, size = 0x12000, scoped, tag = 'internal scratch']
  #allocation2 [shape = 'f32[16,32]{1,0:T(8,128)}', space=vmem, size = 0x2000, scoped, tag = 'scratch operand']
  %s0 = inlined_call_operand.vmem [shape: f32[16,32], index: 0, kind: input, shape index: {}]
  %s1 = inlined_call_operand.vmem [shape: f32[2,8], index: 1, kind: input, shape index: {}]
  %s2 = inlined_call_operand.vmem [shape: s32[2,1], index: 2, kind: input, shape index: {}]
  %s3 = inlined_call_operand.vmem [shape: f32[384,96], index: 3, kind: input, shape index: {}]
  %s4 = inlined_call_operand.vmem [shape: f32[20,96], index: 4, kind: input, shape index: {}]
  %s5 = inlined_call_operand.hbm [shape: f32[2,2], index: 5, kind: output, shape index: {0}]
  %s6 = inlined_call_operand.hbm [shape: f32[1,1], index: 6, kind: output, shape index: {1}]
  %7 = xla_tuple %s5, %s6
  %s8 = sld [smem:[#allocation0]]
  $region38: #{tpu_custom_call.1} parent=0
    _
  %s10 = ssub.s32 1, %s8
  %s11 = scalar_select 0, %s10, %s8
  $region1: #{tpu_custom_call.1} parent=0
    #allocation3 [shape = 'u8[1024]{0}', space=vmem, size = 0x400, scoped, tag = 'output window, operand 0, single buffered']
    #allocation4 [shape = 's32[1]{0}', space=sflag, size = 0x4, scoped, tag = 'scoped memory for tpu_custom_call.1']
    #allocation5 [shape = 'u8[512]{0}', space=vmem, size = 0x400, scoped, tag = 'output window, operand 1, single buffered']
    #allocation6 [shape = 's32[1]{0}', space=sflag, size = 0x4, scoped, tag = 'scoped memory for tpu_custom_call.1']
    %12 = vsyncpa [#allocation4], 0
    %13 = vsyncpa [#allocation6], 0
    // Predicated region
    $region2: #{tpu_custom_call.1} parent=1 // pred_check
      _
    $region3: #{tpu_custom_call.1} parent=1 // pred_check_branch
      %15 = sbr.rel (0) target = $region5
    $region4: #{tpu_custom_call.1} parent=1 // pred_region
      _
    $region5: #{tpu_custom_call.1} parent=1 // pred_fallthru
      _
    // Predicated region
    $region6: #{tpu_custom_call.1} parent=1 // pred_check
      _
    $region7: #{tpu_custom_call.1} parent=1 // pred_check_branch
      %17 = sbr.rel (0) target = $region9
    $region8: #{tpu_custom_call.1} parent=1 // pred_region
      _
    $region9: #{tpu_custom_call.1} parent=1 // pred_fallthru
      _
    // Predicated region
    $region10: #{tpu_custom_call.1} parent=1 // pred_check
      _
    $region11: #{tpu_custom_call.1} parent=1 // pred_check_branch
      %19 = sbr.rel (0) target = $region13
    $region12: #{tpu_custom_call.1} parent=1 // pred_region
      _
    $region13: #{tpu_custom_call.1} parent=1 // pred_fallthru
      _
    // Predicated region
    $region14: #{tpu_custom_call.1} parent=1 // pred_check
      _
    $region15: #{tpu_custom_call.1} parent=1 // pred_check_branch
      %21 = sbr.rel (0) target = $region17
    $region16: #{tpu_custom_call.1} parent=1 // pred_region
      _
    $region17: #{tpu_custom_call.1} parent=1 // pred_fallthru
      _
    // Predicated region
    $region18: #{tpu_custom_call.1} parent=1 // pred_check
      _
    $region19: #{tpu_custom_call.1} parent=1 // pred_check_branch
      %23 = sbr.rel (0) target = $region21
    $region20: #{tpu_custom_call.1} parent=1 // pred_region
      _
    $region21: #{tpu_custom_call.1} parent=1 // pred_fallthru
      _
    %v24 = vld [vmem:[%s0] sm:$0xff]
    %v25 = vld [vmem:[%s0 + $0x8] sm:$0xff]
    %v26 = vld [vmem:[%s4] sm:$0x1]
    %v27 = vld [vmem:[%s4 + $0x1] sm:$0x1]
    %vm28 = vcmask 261120
    %v29 = vsel %vm28, %v24, 0.0
    %30 = vadd.xlane.f32.xlu0 %v29
    %v31 = vpop.xlane.xlu0 %30
    %v32 = vsel %vm28, %v25, 0.0
    %33 = vadd.xlane.f32.xlu0 %v32
    %v34 = vpop.xlane.xlu0 %33
    %v35 = vrcp.pop 32.0
    %v36 = vmul.f32 %v31, %v35
    %v37 = vmul.f32 %v34, %v35
    %v38 = vsub.f32 %v24, %v36
    %v39 = vsub.f32 %v25, %v37
    %v40 = vmul.f32 %v38, %v38
    %v41 = vmul.f32 %v39, %v39
    %v42 = vsel %vm28, %v40, 0.0
    %43 = vadd.xlane.f32.xlu0 %v42
    %v44 = vpop.xlane.xlu0 %43
    %v45 = vsel %vm28, %v41, 0.0
    %46 = vadd.xlane.f32.xlu0 %v45
    %v47 = vpop.xlane.xlu0 %46
    %v48 = vmul.f32 %v44, %v35
    %v49 = vmul.f32 %v47, %v35
    %v50 = vadd.f32 %v48, 1e-12
    %v51 = vadd.f32 %v49, 1e-12
    %v52 = vrsqrt.pop %v50
    %v53 = vrsqrt.pop %v51
    %v54 = vmul.f32 %v38, %v52
    %v55 = vmul.f32 %v39, %v53
    %v56 = vlaneseq
    %v57 = vshrl.u32 %v56, 7
    %v58 = vsub.s32 0, %v57
    %v59 = vrot.slane %v26, %v58
    %v60 = vmul.f32 %v54, %v59
    %v61 = vmul.f32 %v55, %v59
    %v62 = vlaneseq
    %v63 = vshrl.u32 %v62, 7
    %v64 = vsub.s32 0, %v63
    %v65 = vrot.slane %v27, %v64
    %v66 = vadd.f32 %v60, %v65
    %v67 = vadd.f32 %v61, %v65
    %v68 = vld [vmem:[%s1] sm:$0x3]
    %v69 = vsub.f32 1.0, %v68
    %v70 = vmul.f32 %v69, -1e+09
    %v71 = vld [vmem:[%s3] sm:$0xff]
    %v72 = vld [vmem:[%s3 + $0x8] sm:$0xff]
    %v73 = vld [vmem:[%s3 + $0x10] sm:$0xff]
    %v74 = vld [vmem:[%s3 + $0x18] sm:$0xff]
    %v75 = vld [vmem:[%s3 + $0x20] sm:$0xff]
    %v76 = vld [vmem:[%s3 + $0x28] sm:$0xff]
    %v77 = vld [vmem:[%s3 + $0x30] sm:$0xff]
    %v78 = vld [vmem:[%s3 + $0x38] sm:$0xff]
    %v79 = vld [vmem:[%s3 + $0x40] sm:$0xff]
    %v80 = vld [vmem:[%s3 + $0x48] sm:$0xff]
    %v81 = vld [vmem:[%s3 + $0x50] sm:$0xff]
    %v82 = vld [vmem:[%s3 + $0x58] sm:$0xff]
    %v83 = vld [vmem:[%s3 + $0x60] sm:$0xff]
    %v84 = vld [vmem:[%s3 + $0x68] sm:$0xff]
    %v85 = vld [vmem:[%s3 + $0x70] sm:$0xff]
    %v86 = vld [vmem:[%s3 + $0x78] sm:$0xff]
    %v87 = vld [vmem:[%s3 + $0x80] sm:$0xff]
    %v88 = vld [vmem:[%s3 + $0x88] sm:$0xff]
    %v89 = vld [vmem:[%s3 + $0x90] sm:$0xff]
    %v90 = vld [vmem:[%s3 + $0x98] sm:$0xff]
    %v91 = vld [vmem:[%s4 + $0x2] sm:$0x1]
    %v92 = vld [vmem:[%s4 + $0x3] sm:$0x1]
    %v93 = vld [vmem:[%s4 + $0x4] sm:$0x1]
    %v94 = vld [vmem:[%s4 + $0x5] sm:$0x1]
    %v95 = vld [vmem:[%s4 + $0x6] sm:$0x1]
    %v96 = vld [vmem:[%s4 + $0x7] sm:$0x1]
    %v97 = vld [vmem:[%s4 + $0x8] sm:$0x1]
    %v98 = vld [vmem:[%s4 + $0x9] sm:$0x1]
    %v99 = vlaneseq
    %v100 = vshrl.u32 %v99, 7
    %v101 = vsub.s32 0, %v100
    %v102 = vrot.slane %v91, %v101
    %v104 = vsel %vm28, %v66, 0
    %v107 = vsel %vm28, %v67, 0
    %109 = vmatprep.subr.mxu0 0.0
    %110 = vmatpush1.msra.mxu0 %v71
    %111 = vmatprep.subr.mxu0 0.0
    %112 = vmatpush1.msra.mxu0 %v72
    %113 = vmatprep.subr.mxu0 0.0
    %114 = vmatpush1.msra.mxu0 %v73
    %115 = vmatprep.subr.mxu0 0.0
    %116 = vmatpush1.msra.mxu0 %v74
    %117 = vmatprep.subr.mxu0 0.0
    %118 = vmatpush1.msra.mxu0 0.0
    %119 = vmatprep.subr.mxu0 0.0
    %120 = vmatpush1.msra.mxu0 0.0
    %121 = vmatprep.subr.mxu0 0.0
    %122 = vmatpush1.msra.mxu0 0.0
    %123 = vmatprep.subr.mxu0 0.0
    %124 = vmatpush1.msra.mxu0 0.0
    %125 = vmatprep.subr.mxu0 0.0
    %126 = vmatpush1.msra.mxu0 0.0
    %127 = vmatprep.subr.mxu0 0.0
    %128 = vmatpush1.msra.mxu0 0.0
    %129 = vmatprep.subr.mxu0 0.0
    %130 = vmatpush1.msra.mxu0 0.0
    %131 = vmatprep.subr.mxu0 0.0
    %132 = vmatpush1.msra.mxu0 0.0
    %133 = vmatprep.subr.mxu0 0.0
    %134 = vmatpush1.msra.mxu0 0.0
    %135 = vmatprep.subr.mxu0 0.0
    %136 = vmatpush1.msra.mxu0 0.0
    %137 = vmatprep.subr.mxu0 0.0
    %138 = vmatpush1.msra.mxu0 0.0
    %139 = vmatprep.subr.mxu0 0.0
    %140 = vmatpush1.msra.mxu0 0.0
    %141 = vmatprep.subr.mxu0 0.0
    %142 = vmatpush1.msra.mxu0 0.0
    %143 = vmatprep.subr.mxu0 0.0
    %144 = vmatpush1.msra.mxu0 0.0
    %145 = vmatprep.subr.mxu0 0.0
    %146 = vmatpush1.msra.mxu0 0.0
    %147 = vmatprep.subr.mxu0 0.0
    %148 = vmatpush1.msra.mxu0 0.0
    %149 = vmatprep.subr.mxu0 0.0
    %150 = vmatpush1.msra.mxu0 0.0
    %151 = vmatprep.subr.mxu0 0.0
    %152 = vmatpush1.msra.mxu0 0.0
    %153 = vmatprep.subr.mxu0 0.0
    %154 = vmatpush1.msra.mxu0 0.0
    %155 = vmatprep.subr.mxu0 0.0
    %156 = vmatpush1.msra.mxu0 0.0
    %157 = vmatprep.subr.mxu0 0.0
    %158 = vmatpush1.msra.mxu0 0.0
    %159 = vmatprep.subr.mxu0 0.0
    %160 = vmatpush1.msra.mxu0 0.0
    %161 = vmatprep.subr.mxu0 0.0
    %162 = vmatpush1.msra.mxu0 0.0
    %163 = vmatprep.subr.mxu0 0.0
    %164 = vmatpush1.msra.mxu0 0.0
    %165 = vmatprep.subr.mxu0 0.0
    %166 = vmatpush1.msra.mxu0 0.0
    %167 = vmatprep.subr.mxu0 0.0
    %168 = vmatpush1.msra.mxu0 0.0
    %169 = vmatprep.subr.mxu0 0.0
    %170 = vmatpush1.msra.mxu0 0.0
    %171 = vmatprep.subr.mxu0 0.0
    %172 = vmatpush1.msra.mxu0 0.0
    %173 = vmatprep.mubr.f32.mxu0 0.0
    %174 = vmatmul.mubr.f32.gmra.mrb[0].mxu0 %v104
    %v175 = vpop.f32.mrb[0].mxu0
    %v176 = vadd.f32 %v102, %v175
    %v177 = vpop.f32.mrb[0].mxu0
    %178 = vmatprep.mubr.f32.mxu0 0.0
    %179 = vmatmul.mubr.f32.gmra.mrb[0].mxu0 %v107
    %v180 = vpop.f32.mrb[0].mxu0
    %v181 = vadd.f32 %v102, %v180
    %v182 = vpop.f32.mrb[0].mxu0
    %183 = vdwg.mxu0
    %v184 = vlaneseq
    %v185 = vshrl.u32 %v184, 7
    %v186 = vsub.s32 0, %v185
    %v187 = vrot.slane %v70, %v186
    %189 = vrot.lane.b32.xlu0 %v176, 96
    %v190 = vpop.permute.xlu0 %189
    %vm191 = vcmask 130048
    %v192 = vsel %vm191, %v176, 0
    %v194 = vsel %vm191, %v190, 0
    %196 = vmatprep.subr.mxu0 0.0
    %197 = vmatpush1.xpose.msra.mxu0 %v194
    %198 = vmatprep.subr.mxu0 0.0
    %199 = vmatpush1.xpose.msra.mxu0 0.0
    %200 = vmatprep.subr.mxu0 0.0
    %201 = vmatpush1.xpose.msra.mxu0 0.0
    %202 = vmatprep.subr.mxu0 0.0
    %203 = vmatpush1.xpose.msra.mxu0 0.0
    %204 = vmatprep.subr.mxu0 0.0
    %205 = vmatpush1.xpose.msra.mxu0 0.0
    %206 = vmatprep.subr.mxu0 0.0
    %207 = vmatpush1.xpose.msra.mxu0 0.0
    %208 = vmatprep.subr.mxu0 0.0
    %209 = vmatpush1.xpose.msra.mxu0 0.0
    %210 = vmatprep.subr.mxu0 0.0
    %211 = vmatpush1.xpose.msra.mxu0 0.0
    %212 = vmatprep.subr.mxu0 0.0
    %213 = vmatpush1.xpose.msra.mxu0 0.0
    %214 = vmatprep.subr.mxu0 0.0
    %215 = vmatpush1.xpose.msra.mxu0 0.0
    %216 = vmatprep.subr.mxu0 0.0
    %217 = vmatpush1.xpose.msra.mxu0 0.0
    %218 = vmatprep.subr.mxu0 0.0
    %219 = vmatpush1.xpose.msra.mxu0 0.0
    %220 = vmatprep.subr.mxu0 0.0
    %221 = vmatpush1.xpose.msra.mxu0 0.0
    %222 = vmatprep.subr.mxu0 0.0
    %223 = vmatpush1.xpose.msra.mxu0 0.0
    %224 = vmatprep.subr.mxu0 0.0
    %225 = vmatpush1.xpose.msra.mxu0 0.0
    %226 = vmatprep.subr.mxu0 0.0
    %227 = vmatpush1.xpose.msra.mxu0 0.0
    %228 = vmatprep.subr.mxu0 0.0
    %229 = vmatpush1.xpose.msra.mxu0 0.0
    %230 = vmatprep.subr.mxu0 0.0
    %231 = vmatpush1.xpose.msra.mxu0 0.0
    %232 = vmatprep.subr.mxu0 0.0
    %233 = vmatpush1.xpose.msra.mxu0 0.0
    %234 = vmatprep.subr.mxu0 0.0
    %235 = vmatpush1.xpose.msra.mxu0 0.0
    %236 = vmatprep.subr.mxu0 0.0
    %237 = vmatpush1.xpose.msra.mxu0 0.0
    %238 = vmatprep.subr.mxu0 0.0
    %239 = vmatpush1.xpose.msra.mxu0 0.0
    %240 = vmatprep.subr.mxu0 0.0
    %241 = vmatpush1.xpose.msra.mxu0 0.0
    %242 = vmatprep.subr.mxu0 0.0
    %243 = vmatpush1.xpose.msra.mxu0 0.0
    %244 = vmatprep.subr.mxu0 0.0
    %245 = vmatpush1.xpose.msra.mxu0 0.0
    %246 = vmatprep.subr.mxu0 0.0
    %247 = vmatpush1.xpose.msra.mxu0 0.0
    %248 = vmatprep.subr.mxu0 0.0
    %249 = vmatpush1.xpose.msra.mxu0 0.0
    %250 = vmatprep.subr.mxu0 0.0
    %251 = vmatpush1.xpose.msra.mxu0 0.0
    %252 = vmatprep.subr.mxu0 0.0
    %253 = vmatpush1.xpose.msra.mxu0 0.0
    %254 = vmatprep.subr.mxu0 0.0
    %255 = vmatpush1.xpose.msra.mxu0 0.0
    %256 = vmatprep.subr.mxu0 0.0
    %257 = vmatpush1.xpose.msra.mxu0 0.0
    %258 = vmatprep.subr.mxu0 0.0
    %259 = vmatpush1.xpose.msra.mxu0 0.0
    %260 = vmatprep.mubr.f32.mxu0 0.0
    %261 = vmatmul.mubr.f32.gmra.mrb[0].mxu0 %v192
    %v262 = vpop.f32.mrb[0].mxu0
    %v263 = vadd.f32 %v187, %v262
    %v264 = vpop.f32.mrb[0].mxu0
    %265 = vdwg.mxu0
    %vm266 = vcmask 64512
    %v267 = vsel %vm266, %v263, -inf
    %268 = vmax.xlane.f32.xlu0 %v267
    %v269 = vpop.xlane.xlu0 %268
    %v270 = vsub.f32 %v263, %v269
    %v271 = vmul.f32 %v270, 1.442695
    %v272 = vpow.pop %v271
    %v273 = vsel %vm266, %v272, 0.0
    %274 = vadd.xlane.f32.xlu0 %v273
    %v275 = vpop.xlane.xlu0 %274
    %v276 = vrcp.pop %v275
    %v277 = vmul.f32 %v272, %v276
    %278 = vrot.lane.b32.xlu0 %v176, 64
    %v279 = vpop.permute.xlu0 %278
    %v282 = vsel %vm266, %v277, 0
    %284 = vmatprep.subr.mxu0 0.0
    %285 = vmatpush1.msra.mxu0 %v279
    %286 = vmatprep.subr.mxu0 0.0
    %287 = vmatpush1.msra.mxu0 0.0
    %288 = vmatprep.subr.mxu0 0.0
    %289 = vmatpush1.msra.mxu0 0.0
    %290 = vmatprep.subr.mxu0 0.0
    %291 = vmatpush1.msra.mxu0 0.0
    %292 = vmatprep.subr.mxu0 0.0
    %293 = vmatpush1.msra.mxu0 0.0
    %294 = vmatprep.subr.mxu0 0.0
    %295 = vmatpush1.msra.mxu0 0.0
    %296 = vmatprep.subr.mxu0 0.0
    %297 = vmatpush1.msra.mxu0 0.0
    %298 = vmatprep.subr.mxu0 0.0
    %299 = vmatpush1.msra.mxu0 0.0
    %300 = vmatprep.subr.mxu0 0.0
    %301 = vmatpush1.msra.mxu0 0.0
    %302 = vmatprep.subr.mxu0 0.0
    %303 = vmatpush1.msra.mxu0 0.0
    %304 = vmatprep.subr.mxu0 0.0
    %305 = vmatpush1.msra.mxu0 0.0
    %306 = vmatprep.subr.mxu0 0.0
    %307 = vmatpush1.msra.mxu0 0.0
    %308 = vmatprep.subr.mxu0 0.0
    %309 = vmatpush1.msra.mxu0 0.0
    %310 = vmatprep.subr.mxu0 0.0
    %311 = vmatpush1.msra.mxu0 0.0
    %312 = vmatprep.subr.mxu0 0.0
    %313 = vmatpush1.msra.mxu0 0.0
    %314 = vmatprep.subr.mxu0 0.0
    %315 = vmatpush1.msra.mxu0 0.0
    %316 = vmatprep.subr.mxu0 0.0
    %317 = vmatpush1.msra.mxu0 0.0
    %318 = vmatprep.subr.mxu0 0.0
    %319 = vmatpush1.msra.mxu0 0.0
    %320 = vmatprep.subr.mxu0 0.0
    %321 = vmatpush1.msra.mxu0 0.0
    %322 = vmatprep.subr.mxu0 0.0
    %323 = vmatpush1.msra.mxu0 0.0
    %324 = vmatprep.subr.mxu0 0.0
    %325 = vmatpush1.msra.mxu0 0.0
    %326 = vmatprep.subr.mxu0 0.0
    %327 = vmatpush1.msra.mxu0 0.0
    %328 = vmatprep.subr.mxu0 0.0
    %329 = vmatpush1.msra.mxu0 0.0
    %330 = vmatprep.subr.mxu0 0.0
    %331 = vmatpush1.msra.mxu0 0.0
    %332 = vmatprep.subr.mxu0 0.0
    %333 = vmatpush1.msra.mxu0 0.0
    %334 = vmatprep.subr.mxu0 0.0
    %335 = vmatpush1.msra.mxu0 0.0
    %336 = vmatprep.subr.mxu0 0.0
    %337 = vmatpush1.msra.mxu0 0.0
    %338 = vmatprep.subr.mxu0 0.0
    %339 = vmatpush1.msra.mxu0 0.0
    %340 = vmatprep.subr.mxu0 0.0
    %341 = vmatpush1.msra.mxu0 0.0
    %342 = vmatprep.subr.mxu0 0.0
    %343 = vmatpush1.msra.mxu0 0.0
    %344 = vmatprep.subr.mxu0 0.0
    %345 = vmatpush1.msra.mxu0 0.0
    %346 = vmatprep.subr.mxu0 0.0
    %347 = vmatpush1.msra.mxu0 0.0
    %348 = vmatprep.mubr.f32.mxu0 0.0
    %349 = vmatmul.mubr.f32.gmra.mrb[0].mxu0 %v282
    %v350 = vpop.f32.mrb[0].mxu0
    %v351 = vadd.f32 0.0, %v350
    %v352 = vpop.f32.mrb[0].mxu0
    %353 = vdwg.mxu0
    %354 = vst.msk [vmem:[#allocation2] sm:$0xff] %vm191, %v351
    %355 = vrot.lane.b32.xlu0 %v176, 112
    %v356 = vpop.permute.xlu0 %355
    %357 = vrot.lane.b32.xlu0 %v176, 80
    %v358 = vpop.permute.xlu0 %357
    %v359 = vsel %vm191, %v356, 0
    %v361 = vsel %vm191, %v358, 0
    %363 = vmatprep.subr.mxu0 0.0
    %364 = vmatpush1.xpose.msra.mxu0 %v361
    %365 = vmatprep.subr.mxu0 0.0
    %366 = vmatpush1.xpose.msra.mxu0 0.0
    %367 = vmatprep.subr.mxu0 0.0
    %368 = vmatpush1.xpose.msra.mxu0 0.0
    %369 = vmatprep.subr.mxu0 0.0
    %370 = vmatpush1.xpose.msra.mxu0 0.0
    %371 = vmatprep.subr.mxu0 0.0
    %372 = vmatpush1.xpose.msra.mxu0 0.0
    %373 = vmatprep.subr.mxu0 0.0
    %374 = vmatpush1.xpose.msra.mxu0 0.0
    %375 = vmatprep.subr.mxu0 0.0
    %376 = vmatpush1.xpose.msra.mxu0 0.0
    %377 = vmatprep.subr.mxu0 0.0
    %378 = vmatpush1.xpose.msra.mxu0 0.0
    %379 = vmatprep.subr.mxu0 0.0
    %380 = vmatpush1.xpose.msra.mxu0 0.0
    %381 = vmatprep.subr.mxu0 0.0
    %382 = vmatpush1.xpose.msra.mxu0 0.0
    %383 = vmatprep.subr.mxu0 0.0
    %384 = vmatpush1.xpose.msra.mxu0 0.0
    %385 = vmatprep.subr.mxu0 0.0
    %386 = vmatpush1.xpose.msra.mxu0 0.0
    %387 = vmatprep.subr.mxu0 0.0
    %388 = vmatpush1.xpose.msra.mxu0 0.0
    %389 = vmatprep.subr.mxu0 0.0
    %390 = vmatpush1.xpose.msra.mxu0 0.0
    %391 = vmatprep.subr.mxu0 0.0
    %392 = vmatpush1.xpose.msra.mxu0 0.0
    %393 = vmatprep.subr.mxu0 0.0
    %394 = vmatpush1.xpose.msra.mxu0 0.0
    %395 = vmatprep.subr.mxu0 0.0
    %396 = vmatpush1.xpose.msra.mxu0 0.0
    %397 = vmatprep.subr.mxu0 0.0
    %398 = vmatpush1.xpose.msra.mxu0 0.0
    %399 = vmatprep.subr.mxu0 0.0
    %400 = vmatpush1.xpose.msra.mxu0 0.0
    %401 = vmatprep.subr.mxu0 0.0
    %402 = vmatpush1.xpose.msra.mxu0 0.0
    %403 = vmatprep.subr.mxu0 0.0
    %404 = vmatpush1.xpose.msra.mxu0 0.0
    %405 = vmatprep.subr.mxu0 0.0
    %406 = vmatpush1.xpose.msra.mxu0 0.0
    %407 = vmatprep.subr.mxu0 0.0
    %408 = vmatpush1.xpose.msra.mxu0 0.0
    %409 = vmatprep.subr.mxu0 0.0
    %410 = vmatpush1.xpose.msra.mxu0 0.0
    %411 = vmatprep.subr.mxu0 0.0
    %412 = vmatpush1.xpose.msra.mxu0 0.0
    %413 = vmatprep.subr.mxu0 0.0
    %414 = vmatpush1.xpose.msra.mxu0 0.0
    %415 = vmatprep.subr.mxu0 0.0
    %416 = vmatpush1.xpose.msra.mxu0 0.0
    %417 = vmatprep.subr.mxu0 0.0
    %418 = vmatpush1.xpose.msra.mxu0 0.0
    %419 = vmatprep.subr.mxu0 0.0
    %420 = vmatpush1.xpose.msra.mxu0 0.0
    %421 = vmatprep.subr.mxu0 0.0
    %422 = vmatpush1.xpose.msra.mxu0 0.0
    %423 = vmatprep.subr.mxu0 0.0
    %424 = vmatpush1.xpose.msra.mxu0 0.0
    %425 = vmatprep.subr.mxu0 0.0
    %426 = vmatpush1.xpose.msra.mxu0 0.0
    %427 = vmatprep.mubr.f32.mxu0 0.0
    %428 = vmatmul.mubr.f32.gmra.mrb[0].mxu0 %v359
    %v429 = vpop.f32.mrb[0].mxu0
    %v430 = vadd.f32 %v187, %v429
    %v431 = vpop.f32.mrb[0].mxu0
    %432 = vdwg.mxu0
    %v433 = vsel %vm266, %v430, -inf
    %434 = vmax.xlane.f32.xlu0 %v433
    %v435 = vpop.xlane.xlu0 %434
    %v436 = vsub.f32 %v430, %v435
    %v437 = vmul.f32 %v436, 1.442695
    %v438 = vpow.pop %v437
    %v439 = vsel %vm266, %v438, 0.0
    %440 = vadd.xlane.f32.xlu0 %v439
    %v441 = vpop.xlane.xlu0 %440
    %v442 = vrcp.pop %v441
    %v443 = vmul.f32 %v438, %v442
    %444 = vrot.lane.b32.xlu0 %v176, 48
    %v445 = vpop.permute.xlu0 %444
    %v448 = vsel %vm266, %v443, 0
    %450 = vmatprep.subr.mxu0 0.0
    %451 = vmatpush1.msra.mxu0 %v445
    %452 = vmatprep.subr.mxu0 0.0
    %453 = vmatpush1.msra.mxu0 0.0
    %454 = vmatprep.subr.mxu0 0.0
    %455 = vmatpush1.msra.mxu0 0.0
    %456 = vmatprep.subr.mxu0 0.0
    %457 = vmatpush1.msra.mxu0 0.0
    %458 = vmatprep.subr.mxu0 0.0
    %459 = vmatpush1.msra.mxu0 0.0
    %460 = vmatprep.subr.mxu0 0.0
    %461 = vmatpush1.msra.mxu0 0.0
    %462 = vmatprep.subr.mxu0 0.0
    %463 = vmatpush1.msra.mxu0 0.0
    %464 = vmatprep.subr.mxu0 0.0
    %465 = vmatpush1.msra.mxu0 0.0
    %466 = vmatprep.subr.mxu0 0.0
    %467 = vmatpush1.msra.mxu0 0.0
    %468 = vmatprep.subr.mxu0 0.0
    %469 = vmatpush1.msra.mxu0 0.0
    %470 = vmatprep.subr.mxu0 0.0
    %471 = vmatpush1.msra.mxu0 0.0
    %472 = vmatprep.subr.mxu0 0.0
    %473 = vmatpush1.msra.mxu0 0.0
    %474 = vmatprep.subr.mxu0 0.0
    %475 = vmatpush1.msra.mxu0 0.0
    %476 = vmatprep.subr.mxu0 0.0
    %477 = vmatpush1.msra.mxu0 0.0
    %478 = vmatprep.subr.mxu0 0.0
    %479 = vmatpush1.msra.mxu0 0.0
    %480 = vmatprep.subr.mxu0 0.0
    %481 = vmatpush1.msra.mxu0 0.0
    %482 = vmatprep.subr.mxu0 0.0
    %483 = vmatpush1.msra.mxu0 0.0
    %484 = vmatprep.subr.mxu0 0.0
    %485 = vmatpush1.msra.mxu0 0.0
    %486 = vmatprep.subr.mxu0 0.0
    %487 = vmatpush1.msra.mxu0 0.0
    %488 = vmatprep.subr.mxu0 0.0
    %489 = vmatpush1.msra.mxu0 0.0
    %490 = vmatprep.subr.mxu0 0.0
    %491 = vmatpush1.msra.mxu0 0.0
    %492 = vmatprep.subr.mxu0 0.0
    %493 = vmatpush1.msra.mxu0 0.0
    %494 = vmatprep.subr.mxu0 0.0
    %495 = vmatpush1.msra.mxu0 0.0
    %496 = vmatprep.subr.mxu0 0.0
    %497 = vmatpush1.msra.mxu0 0.0
    %498 = vmatprep.subr.mxu0 0.0
    %499 = vmatpush1.msra.mxu0 0.0
    %500 = vmatprep.subr.mxu0 0.0
    %501 = vmatpush1.msra.mxu0 0.0
    %502 = vmatprep.subr.mxu0 0.0
    %503 = vmatpush1.msra.mxu0 0.0
    %504 = vmatprep.subr.mxu0 0.0
    %505 = vmatpush1.msra.mxu0 0.0
    %506 = vmatprep.subr.mxu0 0.0
    %507 = vmatpush1.msra.mxu0 0.0
    %508 = vmatprep.subr.mxu0 0.0
    %509 = vmatpush1.msra.mxu0 0.0
    %510 = vmatprep.subr.mxu0 0.0
    %511 = vmatpush1.msra.mxu0 0.0
    %512 = vmatprep.subr.mxu0 0.0
    %513 = vmatpush1.msra.mxu0 0.0
    %514 = vmatprep.mubr.f32.mxu0 0.0
    %515 = vmatmul.mubr.f32.gmra.mrb[0].mxu0 %v448
    %v516 = vpop.f32.mrb[0].mxu0
    %v517 = vadd.f32 0.0, %v516
    %v518 = vpop.f32.mrb[0].mxu0
    %519 = vdwg.mxu0
    %521 = vrot.lane.b32.xlu0 %v517, 16
    %v522 = vpop.permute.xlu0 %521
    %vm524 = vcmask 261248
    %525 = vst.msk [vmem:[#allocation2] sm:$0xff] %vm524, %v522
    %v526 = vlaneseq
    %v527 = vshrl.u32 %v526, 7
    %v528 = vsub.s32 1, %v527
    %v529 = vrot.slane %v70, %v528
    %531 = vrot.lane.b32.xlu0 %v181, 96
    %v532 = vpop.permute.xlu0 %531
    %v533 = vsel %vm191, %v181, 0
    %v535 = vsel %vm191, %v532, 0
    %537 = vmatprep.subr.mxu0 0.0
    %538 = vmatpush1.xpose.msra.mxu0 %v535
    %539 = vmatprep.subr.mxu0 0.0
    %540 = vmatpush1.xpose.msra.mxu0 0.0
    %541 = vmatprep.subr.mxu0 0.0
    %542 = vmatpush1.xpose.msra.mxu0 0.0
    %543 = vmatprep.subr.mxu0 0.0
    %544 = vmatpush1.xpose.msra.mxu0 0.0
    %545 = vmatprep.subr.mxu0 0.0
    %546 = vmatpush1.xpose.msra.mxu0 0.0
    %547 = vmatprep.subr.mxu0 0.0
    %548 = vmatpush1.xpose.msra.mxu0 0.0
    %549 = vmatprep.subr.mxu0 0.0
    %550 = vmatpush1.xpose.msra.mxu0 0.0
    %551 = vmatprep.subr.mxu0 0.0
    %552 = vmatpush1.xpose.msra.mxu0 0.0
    %553 = vmatprep.subr.mxu0 0.0
    %554 = vmatpush1.xpose.msra.mxu0 0.0
    %555 = vmatprep.subr.mxu0 0.0
    %556 = vmatpush1.xpose.msra.mxu0 0.0
    %557 = vmatprep.subr.mxu0 0.0
    %558 = vmatpush1.xpose.msra.mxu0 0.0
    %559 = vmatprep.subr.mxu0 0.0
    %560 = vmatpush1.xpose.msra.mxu0 0.0
    %561 = vmatprep.subr.mxu0 0.0
    %562 = vmatpush1.xpose.msra.mxu0 0.0
    %563 = vmatprep.subr.mxu0 0.0
    %564 = vmatpush1.xpose.msra.mxu0 0.0
    %565 = vmatprep.subr.mxu0 0.0
    %566 = vmatpush1.xpose.msra.mxu0 0.0
    %567 = vmatprep.subr.mxu0 0.0
    %568 = vmatpush1.xpose.msra.mxu0 0.0
    %569 = vmatprep.subr.mxu0 0.0
    %570 = vmatpush1.xpose.msra.mxu0 0.0
    %571 = vmatprep.subr.mxu0 0.0
    %572 = vmatpush1.xpose.msra.mxu0 0.0
    %573 = vmatprep.subr.mxu0 0.0
    %574 = vmatpush1.xpose.msra.mxu0 0.0
    %575 = vmatprep.subr.mxu0 0.0
    %576 = vmatpush1.xpose.msra.mxu0 0.0
    %577 = vmatprep.subr.mxu0 0.0
    %578 = vmatpush1.xpose.msra.mxu0 0.0
    %579 = vmatprep.subr.mxu0 0.0
    %580 = vmatpush1.xpose.msra.mxu0 0.0
    %581 = vmatprep.subr.mxu0 0.0
    %582 = vmatpush1.xpose.msra.mxu0 0.0
    %583 = vmatprep.subr.mxu0 0.0
    %584 = vmatpush1.xpose.msra.mxu0 0.0
    %585 = vmatprep.subr.mxu0 0.0
    %586 = vmatpush1.xpose.msra.mxu0 0.0
    %587 = vmatprep.subr.mxu0 0.0
    %588 = vmatpush1.xpose.msra.mxu0 0.0
    %589 = vmatprep.subr.mxu0 0.0
    %590 = vmatpush1.xpose.msra.mxu0 0.0
    %591 = vmatprep.subr.mxu0 0.0
    %592 = vmatpush1.xpose.msra.mxu0 0.0
    %593 = vmatprep.subr.mxu0 0.0
    %594 = vmatpush1.xpose.msra.mxu0 0.0
    %595 = vmatprep.subr.mxu0 0.0
    %596 = vmatpush1.xpose.msra.mxu0 0.0
    %597 = vmatprep.subr.mxu0 0.0
    %598 = vmatpush1.xpose.msra.mxu0 0.0
    %599 = vmatprep.subr.mxu0 0.0
    %600 = vmatpush1.xpose.msra.mxu0 0.0
    %601 = vmatprep.mubr.f32.mxu0 0.0
    %602 = vmatmul.mubr.f32.gmra.mrb[0].mxu0 %v533
    %v603 = vpop.f32.mrb[0].mxu0
    %v604 = vadd.f32 %v529, %v603
    %v605 = vpop.f32.mrb[0].mxu0
    %606 = vdwg.mxu0
    %v607 = vsel %vm266, %v604, -inf
    %608 = vmax.xlane.f32.xlu0 %v607
    %v609 = vpop.xlane.xlu0 %608
    %v610 = vsub.f32 %v604, %v609
    %v611 = vmul.f32 %v610, 1.442695
    %v612 = vpow.pop %v611
    %v613 = vsel %vm266, %v612, 0.0
    %614 = vadd.xlane.f32.xlu0 %v613
    %v615 = vpop.xlane.xlu0 %614
    %v616 = vrcp.pop %v615
    %v617 = vmul.f32 %v612, %v616
    %618 = vrot.lane.b32.xlu0 %v181, 64
    %v619 = vpop.permute.xlu0 %618
    %v622 = vsel %vm266, %v617, 0
    %624 = vmatprep.subr.mxu0 0.0
    %625 = vmatpush1.msra.mxu0 %v619
    %626 = vmatprep.subr.mxu0 0.0
    %627 = vmatpush1.msra.mxu0 0.0
    %628 = vmatprep.subr.mxu0 0.0
    %629 = vmatpush1.msra.mxu0 0.0
    %630 = vmatprep.subr.mxu0 0.0
    %631 = vmatpush1.msra.mxu0 0.0
    %632 = vmatprep.subr.mxu0 0.0
    %633 = vmatpush1.msra.mxu0 0.0
    %634 = vmatprep.subr.mxu0 0.0
    %635 = vmatpush1.msra.mxu0 0.0
    %636 = vmatprep.subr.mxu0 0.0
    %637 = vmatpush1.msra.mxu0 0.0
    %638 = vmatprep.subr.mxu0 0.0
    %639 = vmatpush1.msra.mxu0 0.0
    %640 = vmatprep.subr.mxu0 0.0
    %641 = vmatpush1.msra.mxu0 0.0
    %642 = vmatprep.subr.mxu0 0.0
    %643 = vmatpush1.msra.mxu0 0.0
    %644 = vmatprep.subr.mxu0 0.0
    %645 = vmatpush1.msra.mxu0 0.0
    %646 = vmatprep.subr.mxu0 0.0
    %647 = vmatpush1.msra.mxu0 0.0
    %648 = vmatprep.subr.mxu0 0.0
    %649 = vmatpush1.msra.mxu0 0.0
    %650 = vmatprep.subr.mxu0 0.0
    %651 = vmatpush1.msra.mxu0 0.0
    %652 = vmatprep.subr.mxu0 0.0
    %653 = vmatpush1.msra.mxu0 0.0
    %654 = vmatprep.subr.mxu0 0.0
    %655 = vmatpush1.msra.mxu0 0.0
    %656 = vmatprep.subr.mxu0 0.0
    %657 = vmatpush1.msra.mxu0 0.0
    %658 = vmatprep.subr.mxu0 0.0
    %659 = vmatpush1.msra.mxu0 0.0
    %660 = vmatprep.subr.mxu0 0.0
    %661 = vmatpush1.msra.mxu0 0.0
    %662 = vmatprep.subr.mxu0 0.0
    %663 = vmatpush1.msra.mxu0 0.0
    %664 = vmatprep.subr.mxu0 0.0
    %665 = vmatpush1.msra.mxu0 0.0
    %666 = vmatprep.subr.mxu0 0.0
    %667 = vmatpush1.msra.mxu0 0.0
    %668 = vmatprep.subr.mxu0 0.0
    %669 = vmatpush1.msra.mxu0 0.0
    %670 = vmatprep.subr.mxu0 0.0
    %671 = vmatpush1.msra.mxu0 0.0
    %672 = vmatprep.subr.mxu0 0.0
    %673 = vmatpush1.msra.mxu0 0.0
    %674 = vmatprep.subr.mxu0 0.0
    %675 = vmatpush1.msra.mxu0 0.0
    %676 = vmatprep.subr.mxu0 0.0
    %677 = vmatpush1.msra.mxu0 0.0
    %678 = vmatprep.subr.mxu0 0.0
    %679 = vmatpush1.msra.mxu0 0.0
    %680 = vmatprep.subr.mxu0 0.0
    %681 = vmatpush1.msra.mxu0 0.0
    %682 = vmatprep.subr.mxu0 0.0
    %683 = vmatpush1.msra.mxu0 0.0
    %684 = vmatprep.subr.mxu0 0.0
    %685 = vmatpush1.msra.mxu0 0.0
    %686 = vmatprep.subr.mxu0 0.0
    %687 = vmatpush1.msra.mxu0 0.0
    %688 = vmatprep.mubr.f32.mxu0 0.0
    %689 = vmatmul.mubr.f32.gmra.mrb[0].mxu0 %v622
    %v690 = vpop.f32.mrb[0].mxu0
    %v691 = vadd.f32 0.0, %v690
    %v692 = vpop.f32.mrb[0].mxu0
    %693 = vdwg.mxu0
    %694 = vst.msk [vmem:[#allocation2 + $0x8] sm:$0xff] %vm191, %v691
    %695 = vrot.lane.b32.xlu0 %v181, 112
    %v696 = vpop.permute.xlu0 %695
    %697 = vrot.lane.b32.xlu0 %v181, 80
    %v698 = vpop.permute.xlu0 %697
    %v699 = vsel %vm191, %v696, 0
    %v701 = vsel %vm191, %v698, 0
    %703 = vmatprep.subr.mxu0 0.0
    %704 = vmatpush1.xpose.msra.mxu0 %v701
    %705 = vmatprep.subr.mxu0 0.0
    %706 = vmatpush1.xpose.msra.mxu0 0.0
    %707 = vmatprep.subr.mxu0 0.0
    %708 = vmatpush1.xpose.msra.mxu0 0.0
    %709 = vmatprep.subr.mxu0 0.0
    %710 = vmatpush1.xpose.msra.mxu0 0.0
    %711 = vmatprep.subr.mxu0 0.0
    %712 = vmatpush1.xpose.msra.mxu0 0.0
    %713 = vmatprep.subr.mxu0 0.0
    %714 = vmatpush1.xpose.msra.mxu0 0.0
    %715 = vmatprep.subr.mxu0 0.0
    %716 = vmatpush1.xpose.msra.mxu0 0.0
    %717 = vmatprep.subr.mxu0 0.0
    %718 = vmatpush1.xpose.msra.mxu0 0.0
    %719 = vmatprep.subr.mxu0 0.0
    %720 = vmatpush1.xpose.msra.mxu0 0.0
    %721 = vmatprep.subr.mxu0 0.0
    %722 = vmatpush1.xpose.msra.mxu0 0.0
    %723 = vmatprep.subr.mxu0 0.0
    %724 = vmatpush1.xpose.msra.mxu0 0.0
    %725 = vmatprep.subr.mxu0 0.0
    %726 = vmatpush1.xpose.msra.mxu0 0.0
    %727 = vmatprep.subr.mxu0 0.0
    %728 = vmatpush1.xpose.msra.mxu0 0.0
    %729 = vmatprep.subr.mxu0 0.0
    %730 = vmatpush1.xpose.msra.mxu0 0.0
    %731 = vmatprep.subr.mxu0 0.0
    %732 = vmatpush1.xpose.msra.mxu0 0.0
    %733 = vmatprep.subr.mxu0 0.0
    %734 = vmatpush1.xpose.msra.mxu0 0.0
    %735 = vmatprep.subr.mxu0 0.0
    %736 = vmatpush1.xpose.msra.mxu0 0.0
    %737 = vmatprep.subr.mxu0 0.0
    %738 = vmatpush1.xpose.msra.mxu0 0.0
    %739 = vmatprep.subr.mxu0 0.0
    %740 = vmatpush1.xpose.msra.mxu0 0.0
    %741 = vmatprep.subr.mxu0 0.0
    %742 = vmatpush1.xpose.msra.mxu0 0.0
    %743 = vmatprep.subr.mxu0 0.0
    %744 = vmatpush1.xpose.msra.mxu0 0.0
    %745 = vmatprep.subr.mxu0 0.0
    %746 = vmatpush1.xpose.msra.mxu0 0.0
    %747 = vmatprep.subr.mxu0 0.0
    %748 = vmatpush1.xpose.msra.mxu0 0.0
    %749 = vmatprep.subr.mxu0 0.0
    %750 = vmatpush1.xpose.msra.mxu0 0.0
    %751 = vmatprep.subr.mxu0 0.0
    %752 = vmatpush1.xpose.msra.mxu0 0.0
    %753 = vmatprep.subr.mxu0 0.0
    %754 = vmatpush1.xpose.msra.mxu0 0.0
    %755 = vmatprep.subr.mxu0 0.0
    %756 = vmatpush1.xpose.msra.mxu0 0.0
    %757 = vmatprep.subr.mxu0 0.0
    %758 = vmatpush1.xpose.msra.mxu0 0.0
    %759 = vmatprep.subr.mxu0 0.0
    %760 = vmatpush1.xpose.msra.mxu0 0.0
    %761 = vmatprep.subr.mxu0 0.0
    %762 = vmatpush1.xpose.msra.mxu0 0.0
    %763 = vmatprep.subr.mxu0 0.0
    %764 = vmatpush1.xpose.msra.mxu0 0.0
    %765 = vmatprep.subr.mxu0 0.0
    %766 = vmatpush1.xpose.msra.mxu0 0.0
    %767 = vmatprep.mubr.f32.mxu0 0.0
    %768 = vmatmul.mubr.f32.gmra.mrb[0].mxu0 %v699
    %v769 = vpop.f32.mrb[0].mxu0
    %v770 = vadd.f32 %v529, %v769
    %v771 = vpop.f32.mrb[0].mxu0
    %772 = vdwg.mxu0
    %v773 = vsel %vm266, %v770, -inf
    %774 = vmax.xlane.f32.xlu0 %v773
    %v775 = vpop.xlane.xlu0 %774
    %v776 = vsub.f32 %v770, %v775
    %v777 = vmul.f32 %v776, 1.442695
    %v778 = vpow.pop %v777
    %v779 = vsel %vm266, %v778, 0.0
    %780 = vadd.xlane.f32.xlu0 %v779
    %v781 = vpop.xlane.xlu0 %780
    %v782 = vrcp.pop %v781
    %v783 = vmul.f32 %v778, %v782
    %784 = vrot.lane.b32.xlu0 %v181, 48
    %v785 = vpop.permute.xlu0 %784
    %v788 = vsel %vm266, %v783, 0
    %790 = vmatprep.subr.mxu0 0.0
    %791 = vmatpush1.msra.mxu0 %v785
    %792 = vmatprep.subr.mxu0 0.0
    %793 = vmatpush1.msra.mxu0 0.0
    %794 = vmatprep.subr.mxu0 0.0
    %795 = vmatpush1.msra.mxu0 0.0
    %796 = vmatprep.subr.mxu0 0.0
    %797 = vmatpush1.msra.mxu0 0.0
    %798 = vmatprep.subr.mxu0 0.0
    %799 = vmatpush1.msra.mxu0 0.0
    %800 = vmatprep.subr.mxu0 0.0
    %801 = vmatpush1.msra.mxu0 0.0
    %802 = vmatprep.subr.mxu0 0.0
    %803 = vmatpush1.msra.mxu0 0.0
    %804 = vmatprep.subr.mxu0 0.0
    %805 = vmatpush1.msra.mxu0 0.0
    %806 = vmatprep.subr.mxu0 0.0
    %807 = vmatpush1.msra.mxu0 0.0
    %808 = vmatprep.subr.mxu0 0.0
    %809 = vmatpush1.msra.mxu0 0.0
    %810 = vmatprep.subr.mxu0 0.0
    %811 = vmatpush1.msra.mxu0 0.0
    %812 = vmatprep.subr.mxu0 0.0
    %813 = vmatpush1.msra.mxu0 0.0
    %814 = vmatprep.subr.mxu0 0.0
    %815 = vmatpush1.msra.mxu0 0.0
    %816 = vmatprep.subr.mxu0 0.0
    %817 = vmatpush1.msra.mxu0 0.0
    %818 = vmatprep.subr.mxu0 0.0
    %819 = vmatpush1.msra.mxu0 0.0
    %820 = vmatprep.subr.mxu0 0.0
    %821 = vmatpush1.msra.mxu0 0.0
    %822 = vmatprep.subr.mxu0 0.0
    %823 = vmatpush1.msra.mxu0 0.0
    %824 = vmatprep.subr.mxu0 0.0
    %825 = vmatpush1.msra.mxu0 0.0
    %826 = vmatprep.subr.mxu0 0.0
    %827 = vmatpush1.msra.mxu0 0.0
    %828 = vmatprep.subr.mxu0 0.0
    %829 = vmatpush1.msra.mxu0 0.0
    %830 = vmatprep.subr.mxu0 0.0
    %831 = vmatpush1.msra.mxu0 0.0
    %832 = vmatprep.subr.mxu0 0.0
    %833 = vmatpush1.msra.mxu0 0.0
    %834 = vmatprep.subr.mxu0 0.0
    %835 = vmatpush1.msra.mxu0 0.0
    %836 = vmatprep.subr.mxu0 0.0
    %837 = vmatpush1.msra.mxu0 0.0
    %838 = vmatprep.subr.mxu0 0.0
    %839 = vmatpush1.msra.mxu0 0.0
    %840 = vmatprep.subr.mxu0 0.0
    %841 = vmatpush1.msra.mxu0 0.0
    %842 = vmatprep.subr.mxu0 0.0
    %843 = vmatpush1.msra.mxu0 0.0
    %844 = vmatprep.subr.mxu0 0.0
    %845 = vmatpush1.msra.mxu0 0.0
    %846 = vmatprep.subr.mxu0 0.0
    %847 = vmatpush1.msra.mxu0 0.0
    %848 = vmatprep.subr.mxu0 0.0
    %849 = vmatpush1.msra.mxu0 0.0
    %850 = vmatprep.subr.mxu0 0.0
    %851 = vmatpush1.msra.mxu0 0.0
    %852 = vmatprep.subr.mxu0 0.0
    %853 = vmatpush1.msra.mxu0 0.0
    %854 = vmatprep.mubr.f32.mxu0 0.0
    %855 = vmatmul.mubr.f32.gmra.mrb[0].mxu0 %v788
    %v856 = vpop.f32.mrb[0].mxu0
    %v857 = vadd.f32 0.0, %v856
    %v858 = vpop.f32.mrb[0].mxu0
    %859 = vdwg.mxu0
    %861 = vrot.lane.b32.xlu0 %v857, 16
    %v862 = vpop.permute.xlu0 %861
    %864 = vst.msk [vmem:[#allocation2 + $0x8] sm:$0xff] %vm524, %v862
    %v865 = vld [vmem:[#allocation2] sm:$0xff]
    %v866 = vld [vmem:[#allocation2 + $0x8] sm:$0xff]
    %v867 = vlaneseq
    %v868 = vshrl.u32 %v867, 7
    %v869 = vsub.s32 0, %v868
    %v870 = vrot.slane %v92, %v869
    %v872 = vsel %vm28, %v865, 0
    %v875 = vsel %vm28, %v866, 0
    %877 = vmatprep.subr.mxu0 0.0
    %878 = vmatpush1.msra.mxu0 %v75
    %879 = vmatprep.subr.mxu0 0.0
    %880 = vmatpush1.msra.mxu0 %v76
    %881 = vmatprep.subr.mxu0 0.0
    %882 = vmatpush1.msra.mxu0 %v77
    %883 = vmatprep.subr.mxu0 0.0
    %884 = vmatpush1.msra.mxu0 %v78
    %885 = vmatprep.subr.mxu0 0.0
    %886 = vmatpush1.msra.mxu0 0.0
    %887 = vmatprep.subr.mxu0 0.0
    %888 = vmatpush1.msra.mxu0 0.0
    %889 = vmatprep.subr.mxu0 0.0
    %890 = vmatpush1.msra.mxu0 0.0
    %891 = vmatprep.subr.mxu0 0.0
    %892 = vmatpush1.msra.mxu0 0.0
    %893 = vmatprep.subr.mxu0 0.0
    %894 = vmatpush1.msra.mxu0 0.0
    %895 = vmatprep.subr.mxu0 0.0
    %896 = vmatpush1.msra.mxu0 0.0
    %897 = vmatprep.subr.mxu0 0.0
    %898 = vmatpush1.msra.mxu0 0.0
    %899 = vmatprep.subr.mxu0 0.0
    %900 = vmatpush1.msra.mxu0 0.0
    %901 = vmatprep.subr.mxu0 0.0
    %902 = vmatpush1.msra.mxu0 0.0
    %903 = vmatprep.subr.mxu0 0.0
    %904 = vmatpush1.msra.mxu0 0.0
    %905 = vmatprep.subr.mxu0 0.0
    %906 = vmatpush1.msra.mxu0 0.0
    %907 = vmatprep.subr.mxu0 0.0
    %908 = vmatpush1.msra.mxu0 0.0
    %909 = vmatprep.subr.mxu0 0.0
    %910 = vmatpush1.msra.mxu0 0.0
    %911 = vmatprep.subr.mxu0 0.0
    %912 = vmatpush1.msra.mxu0 0.0
    %913 = vmatprep.subr.mxu0 0.0
    %914 = vmatpush1.msra.mxu0 0.0
    %915 = vmatprep.subr.mxu0 0.0
    %916 = vmatpush1.msra.mxu0 0.0
    %917 = vmatprep.subr.mxu0 0.0
    %918 = vmatpush1.msra.mxu0 0.0
    %919 = vmatprep.subr.mxu0 0.0
    %920 = vmatpush1.msra.mxu0 0.0
    %921 = vmatprep.subr.mxu0 0.0
    %922 = vmatpush1.msra.mxu0 0.0
    %923 = vmatprep.subr.mxu0 0.0
    %924 = vmatpush1.msra.mxu0 0.0
    %925 = vmatprep.subr.mxu0 0.0
    %926 = vmatpush1.msra.mxu0 0.0
    %927 = vmatprep.subr.mxu0 0.0
    %928 = vmatpush1.msra.mxu0 0.0
    %929 = vmatprep.subr.mxu0 0.0
    %930 = vmatpush1.msra.mxu0 0.0
    %931 = vmatprep.subr.mxu0 0.0
    %932 = vmatpush1.msra.mxu0 0.0
    %933 = vmatprep.subr.mxu0 0.0
    %934 = vmatpush1.msra.mxu0 0.0
    %935 = vmatprep.subr.mxu0 0.0
    %936 = vmatpush1.msra.mxu0 0.0
    %937 = vmatprep.subr.mxu0 0.0
    %938 = vmatpush1.msra.mxu0 0.0
    %939 = vmatprep.subr.mxu0 0.0
    %940 = vmatpush1.msra.mxu0 0.0
    %941 = vmatprep.mubr.f32.mxu0 0.0
    %942 = vmatmul.mubr.f32.gmra.mrb[0].mxu0 %v872
    %v943 = vpop.f32.mrb[0].mxu0
    %v944 = vadd.f32 %v870, %v943
    %v945 = vpop.f32.mrb[0].mxu0
    %946 = vmatprep.mubr.f32.mxu0 0.0
    %947 = vmatmul.mubr.f32.gmra.mrb[0].mxu0 %v875
    %v948 = vpop.f32.mrb[0].mxu0
    %v949 = vadd.f32 %v870, %v948
    %v950 = vpop.f32.mrb[0].mxu0
    %951 = vdwg.mxu0
    %v952 = vadd.f32 %v944, %v66
    %v953 = vadd.f32 %v949, %v67
    %v954 = vsel %vm28, %v952, 0.0
    %955 = vadd.xlane.f32.xlu0 %v954
    %v956 = vpop.xlane.xlu0 %955
    %v957 = vsel %vm28, %v953, 0.0
    %958 = vadd.xlane.f32.xlu0 %v957
    %v959 = vpop.xlane.xlu0 %958
    %v960 = vmul.f32 %v956, %v35
    %v961 = vmul.f32 %v959, %v35
    %v962 = vsub.f32 %v952, %v960
    %v963 = vsub.f32 %v953, %v961
    %v964 = vmul.f32 %v962, %v962
    %v965 = vmul.f32 %v963, %v963
    %v966 = vsel %vm28, %v964, 0.0
    %967 = vadd.xlane.f32.xlu0 %v966
    %v968 = vpop.xlane.xlu0 %967
    %v969 = vsel %vm28, %v965, 0.0
    %970 = vadd.xlane.f32.xlu0 %v969
    %v971 = vpop.xlane.xlu0 %970
    %v972 = vmul.f32 %v968, %v35
    %v973 = vmul.f32 %v971, %v35
    %v974 = vadd.f32 %v972, 1e-12
    %v975 = vadd.f32 %v973, 1e-12
    %v976 = vrsqrt.pop %v974
    %v977 = vrsqrt.pop %v975
    %v978 = vmul.f32 %v962, %v976
    %v979 = vmul.f32 %v963, %v977
    %v980 = vlaneseq
    %v981 = vshrl.u32 %v980, 7
    %v982 = vsub.s32 0, %v981
    %v983 = vrot.slane %v93, %v982
    %v984 = vmul.f32 %v978, %v983
    %v985 = vmul.f32 %v979, %v983
    %v986 = vlaneseq
    %v987 = vshrl.u32 %v986, 7
    %v988 = vsub.s32 0, %v987
    %v989 = vrot.slane %v94, %v988
    %v990 = vadd.f32 %v984, %v989
    %v991 = vadd.f32 %v985, %v989
    %v992 = vlaneseq
    %v993 = vshrl.u32 %v992, 7
    %v994 = vsub.s32 0, %v993
    %v995 = vrot.slane %v95, %v994
    %v997 = vsel %vm28, %v990, 0
    %v1000 = vsel %vm28, %v991, 0
    %1002 = vmatprep.subr.mxu0 0.0
    %1003 = vmatpush1.msra.mxu0 %v79
    %1004 = vmatprep.subr.mxu0 0.0
    %1005 = vmatpush1.msra.mxu0 %v80
    %1006 = vmatprep.subr.mxu0 0.0
    %1007 = vmatpush1.msra.mxu0 %v81
    %1008 = vmatprep.subr.mxu0 0.0
    %1009 = vmatpush1.msra.mxu0 %v82
    %1010 = vmatprep.subr.mxu0 0.0
    %1011 = vmatpush1.msra.mxu0 0.0
    %1012 = vmatprep.subr.mxu0 0.0
    %1013 = vmatpush1.msra.mxu0 0.0
    %1014 = vmatprep.subr.mxu0 0.0
    %1015 = vmatpush1.msra.mxu0 0.0
    %1016 = vmatprep.subr.mxu0 0.0
    %1017 = vmatpush1.msra.mxu0 0.0
    %1018 = vmatprep.subr.mxu0 0.0
    %1019 = vmatpush1.msra.mxu0 0.0
    %1020 = vmatprep.subr.mxu0 0.0
    %1021 = vmatpush1.msra.mxu0 0.0
    %1022 = vmatprep.subr.mxu0 0.0
    %1023 = vmatpush1.msra.mxu0 0.0
    %1024 = vmatprep.subr.mxu0 0.0
    %1025 = vmatpush1.msra.mxu0 0.0
    %1026 = vmatprep.subr.mxu0 0.0
    %1027 = vmatpush1.msra.mxu0 0.0
    %1028 = vmatprep.subr.mxu0 0.0
    %1029 = vmatpush1.msra.mxu0 0.0
    %1030 = vmatprep.subr.mxu0 0.0
    %1031 = vmatpush1.msra.mxu0 0.0
    %1032 = vmatprep.subr.mxu0 0.0
    %1033 = vmatpush1.msra.mxu0 0.0
    %1034 = vmatprep.subr.mxu0 0.0
    %1035 = vmatpush1.msra.mxu0 0.0
    %1036 = vmatprep.subr.mxu0 0.0
    %1037 = vmatpush1.msra.mxu0 0.0
    %1038 = vmatprep.subr.mxu0 0.0
    %1039 = vmatpush1.msra.mxu0 0.0
    %1040 = vmatprep.subr.mxu0 0.0
    %1041 = vmatpush1.msra.mxu0 0.0
    %1042 = vmatprep.subr.mxu0 0.0
    %1043 = vmatpush1.msra.mxu0 0.0
    %1044 = vmatprep.subr.mxu0 0.0
    %1045 = vmatpush1.msra.mxu0 0.0
    %1046 = vmatprep.subr.mxu0 0.0
    %1047 = vmatpush1.msra.mxu0 0.0
    %1048 = vmatprep.subr.mxu0 0.0
    %1049 = vmatpush1.msra.mxu0 0.0
    %1050 = vmatprep.subr.mxu0 0.0
    %1051 = vmatpush1.msra.mxu0 0.0
    %1052 = vmatprep.subr.mxu0 0.0
    %1053 = vmatpush1.msra.mxu0 0.0
    %1054 = vmatprep.subr.mxu0 0.0
    %1055 = vmatpush1.msra.mxu0 0.0
    %1056 = vmatprep.subr.mxu0 0.0
    %1057 = vmatpush1.msra.mxu0 0.0
    %1058 = vmatprep.subr.mxu0 0.0
    %1059 = vmatpush1.msra.mxu0 0.0
    %1060 = vmatprep.subr.mxu0 0.0
    %1061 = vmatpush1.msra.mxu0 0.0
    %1062 = vmatprep.subr.mxu0 0.0
    %1063 = vmatpush1.msra.mxu0 0.0
    %1064 = vmatprep.subr.mxu0 0.0
    %1065 = vmatpush1.msra.mxu0 0.0
    %1066 = vmatprep.mubr.f32.mxu0 0.0
    %1067 = vmatmul.mubr.f32.gmra.mrb[0].mxu0 %v997
    %v1068 = vpop.f32.mrb[0].mxu0
    %v1069 = vadd.f32 %v995, %v1068
    %v1070 = vpop.f32.mrb[0].mxu0
    %1071 = vmatprep.mubr.f32.mxu0 0.0
    %1072 = vmatmul.mubr.f32.gmra.mrb[0].mxu0 %v1000
    %v1073 = vpop.f32.mrb[0].mxu0
    %v1074 = vadd.f32 %v995, %v1073
    %v1075 = vpop.f32.mrb[0].mxu0
    %1076 = vdwg.mxu0
    %v1077 = vmul.f32 %v1069, 0.5
    %v1078 = vmul.f32 %v1074, 0.5
    %v1079 = vmul.f32 %v1069, 0.044715
    %v1080 = vmul.f32 %v1074, 0.044715
    %v1081 = vmul.f32 %v1079, %v1069
    %v1082 = vmul.f32 %v1080, %v1074
    %v1083 = vmul.f32 %v1081, %v1069
    %v1084 = vmul.f32 %v1082, %v1074
    %v1085 = vadd.f32 %v1069, %v1083
    %v1086 = vadd.f32 %v1074, %v1084
    %v1087 = vmul.f32 %v1085, 0.7978846
    %v1088 = vmul.f32 %v1086, 0.7978846
    %v1089 = vtanh.pop %v1087
    %v1090 = vtanh.pop %v1088
    %v1091 = vadd.f32 %v1089, 1.0
    %v1092 = vadd.f32 %v1090, 1.0
    %v1093 = vmul.f32 %v1077, %v1091
    %v1094 = vmul.f32 %v1078, %v1092
    %v1095 = vlaneseq
    %v1096 = vshrl.u32 %v1095, 7
    %v1097 = vsub.s32 0, %v1096
    %v1098 = vrot.slane %v96, %v1097
    %vm1099 = vcmask 523264
    %v1101 = vsel %vm1099, %v1093, 0
    %v1104 = vsel %vm1099, %v1094, 0
    %1106 = vmatprep.subr.mxu0 0.0
    %1107 = vmatpush1.msra.mxu0 %v83
    %1108 = vmatprep.subr.mxu0 0.0
    %1109 = vmatpush1.msra.mxu0 %v84
    %1110 = vmatprep.subr.mxu0 0.0
    %1111 = vmatpush1.msra.mxu0 %v85
    %1112 = vmatprep.subr.mxu0 0.0
    %1113 = vmatpush1.msra.mxu0 %v86
    %1114 = vmatprep.subr.mxu0 0.0
    %1115 = vmatpush1.msra.mxu0 %v87
    %1116 = vmatprep.subr.mxu0 0.0
    %1117 = vmatpush1.msra.mxu0 %v88
    %1118 = vmatprep.subr.mxu0 0.0
    %1119 = vmatpush1.msra.mxu0 %v89
    %1120 = vmatprep.subr.mxu0 0.0
    %1121 = vmatpush1.msra.mxu0 %v90
    %1122 = vmatprep.subr.mxu0 0.0
    %1123 = vmatpush1.msra.mxu0 0.0
    %1124 = vmatprep.subr.mxu0 0.0
    %1125 = vmatpush1.msra.mxu0 0.0
    %1126 = vmatprep.subr.mxu0 0.0
    %1127 = vmatpush1.msra.mxu0 0.0
    %1128 = vmatprep.subr.mxu0 0.0
    %1129 = vmatpush1.msra.mxu0 0.0
    %1130 = vmatprep.subr.mxu0 0.0
    %1131 = vmatpush1.msra.mxu0 0.0
    %1132 = vmatprep.subr.mxu0 0.0
    %1133 = vmatpush1.msra.mxu0 0.0
    %1134 = vmatprep.subr.mxu0 0.0
    %1135 = vmatpush1.msra.mxu0 0.0
    %1136 = vmatprep.subr.mxu0 0.0
    %1137 = vmatpush1.msra.mxu0 0.0
    %1138 = vmatprep.subr.mxu0 0.0
    %1139 = vmatpush1.msra.mxu0 0.0
    %1140 = vmatprep.subr.mxu0 0.0
    %1141 = vmatpush1.msra.mxu0 0.0
    %1142 = vmatprep.subr.mxu0 0.0
    %1143 = vmatpush1.msra.mxu0 0.0
    %1144 = vmatprep.subr.mxu0 0.0
    %1145 = vmatpush1.msra.mxu0 0.0
    %1146 = vmatprep.subr.mxu0 0.0
    %1147 = vmatpush1.msra.mxu0 0.0
    %1148 = vmatprep.subr.mxu0 0.0
    %1149 = vmatpush1.msra.mxu0 0.0
    %1150 = vmatprep.subr.mxu0 0.0
    %1151 = vmatpush1.msra.mxu0 0.0
    %1152 = vmatprep.subr.mxu0 0.0
    %1153 = vmatpush1.msra.mxu0 0.0
    %1154 = vmatprep.subr.mxu0 0.0
    %1155 = vmatpush1.msra.mxu0 0.0
    %1156 = vmatprep.subr.mxu0 0.0
    %1157 = vmatpush1.msra.mxu0 0.0
    %1158 = vmatprep.subr.mxu0 0.0
    %1159 = vmatpush1.msra.mxu0 0.0
    %1160 = vmatprep.subr.mxu0 0.0
    %1161 = vmatpush1.msra.mxu0 0.0
    %1162 = vmatprep.subr.mxu0 0.0
    %1163 = vmatpush1.msra.mxu0 0.0
    %1164 = vmatprep.subr.mxu0 0.0
    %1165 = vmatpush1.msra.mxu0 0.0
    %1166 = vmatprep.subr.mxu0 0.0
    %1167 = vmatpush1.msra.mxu0 0.0
    %1168 = vmatprep.subr.mxu0 0.0
    %1169 = vmatpush1.msra.mxu0 0.0
    %1170 = vmatprep.mubr.f32.mxu0 0.0
    %1171 = vmatmul.mubr.f32.gmra.mrb[0].mxu0 %v1101
    %v1172 = vpop.f32.mrb[0].mxu0
    %v1173 = vadd.f32 %v1098, %v1172
    %v1174 = vpop.f32.mrb[0].mxu0
    %1175 = vmatprep.mubr.f32.mxu0 0.0
    %1176 = vmatmul.mubr.f32.gmra.mrb[0].mxu0 %v1104
    %v1177 = vpop.f32.mrb[0].mxu0
    %v1178 = vadd.f32 %v1098, %v1177
    %v1179 = vpop.f32.mrb[0].mxu0
    %1180 = vdwg.mxu0
    %v1181 = vadd.f32 %v1173, %v990
    %v1182 = vadd.f32 %v1178, %v991
    %v1183 = vsel %vm28, %v1181, 0.0
    %1184 = vadd.xlane.f32.xlu0 %v1183
    %v1185 = vpop.xlane.xlu0 %1184
    %v1186 = vsel %vm28, %v1182, 0.0
    %1187 = vadd.xlane.f32.xlu0 %v1186
    %v1188 = vpop.xlane.xlu0 %1187
    %v1189 = vmul.f32 %v1185, %v35
    %v1190 = vmul.f32 %v1188, %v35
    %v1191 = vsub.f32 %v1181, %v1189
    %v1192 = vsub.f32 %v1182, %v1190
    %v1193 = vmul.f32 %v1191, %v1191
    %v1194 = vmul.f32 %v1192, %v1192
    %v1195 = vsel %vm28, %v1193, 0.0
    %1196 = vadd.xlane.f32.xlu0 %v1195
    %v1197 = vpop.xlane.xlu0 %1196
    %v1198 = vsel %vm28, %v1194, 0.0
    %1199 = vadd.xlane.f32.xlu0 %v1198
    %v1200 = vpop.xlane.xlu0 %1199
    %v1201 = vmul.f32 %v1197, %v35
    %v1202 = vmul.f32 %v1200, %v35
    %v1203 = vadd.f32 %v1201, 1e-12
    %v1204 = vadd.f32 %v1202, 1e-12
    %v1205 = vrsqrt.pop %v1203
    %v1206 = vrsqrt.pop %v1204
    %v1207 = vmul.f32 %v1191, %v1205
    %v1208 = vmul.f32 %v1192, %v1206
    %v1209 = vlaneseq
    %v1210 = vshrl.u32 %v1209, 7
    %v1211 = vsub.s32 0, %v1210
    %v1212 = vrot.slane %v97, %v1211
    %v1213 = vmul.f32 %v1207, %v1212
    %v1214 = vmul.f32 %v1208, %v1212
    %v1215 = vlaneseq
    %v1216 = vshrl.u32 %v1215, 7
    %v1217 = vsub.s32 0, %v1216
    %v1218 = vrot.slane %v98, %v1217
    %v1219 = vadd.f32 %v1213, %v1218
    %v1220 = vadd.f32 %v1214, %v1218
    %v1221 = vld [vmem:[%s3 + $0xa0] sm:$0xff]
    %v1222 = vld [vmem:[%s3 + $0xa8] sm:$0xff]
    %v1223 = vld [vmem:[%s3 + $0xb0] sm:$0xff]
    %v1224 = vld [vmem:[%s3 + $0xb8] sm:$0xff]
    %v1225 = vld [vmem:[%s3 + $0xc0] sm:$0xff]
    %v1226 = vld [vmem:[%s3 + $0xc8] sm:$0xff]
    %v1227 = vld [vmem:[%s3 + $0xd0] sm:$0xff]
    %v1228 = vld [vmem:[%s3 + $0xd8] sm:$0xff]
    %v1229 = vld [vmem:[%s3 + $0xe0] sm:$0xff]
    %v1230 = vld [vmem:[%s3 + $0xe8] sm:$0xff]
    %v1231 = vld [vmem:[%s3 + $0xf0] sm:$0xff]
    %v1232 = vld [vmem:[%s3 + $0xf8] sm:$0xff]
    %v1233 = vld [vmem:[%s3 + $0x100] sm:$0xff]
    %v1234 = vld [vmem:[%s3 + $0x108] sm:$0xff]
    %v1235 = vld [vmem:[%s3 + $0x110] sm:$0xff]
    %v1236 = vld [vmem:[%s3 + $0x118] sm:$0xff]
    %v1237 = vld [vmem:[%s3 + $0x120] sm:$0xff]
    %v1238 = vld [vmem:[%s3 + $0x128] sm:$0xff]
    %v1239 = vld [vmem:[%s3 + $0x130] sm:$0xff]
    %v1240 = vld [vmem:[%s3 + $0x138] sm:$0xff]
    %v1241 = vld [vmem:[%s4 + $0xa] sm:$0x1]
    %v1242 = vld [vmem:[%s4 + $0xb] sm:$0x1]
    %v1243 = vld [vmem:[%s4 + $0xc] sm:$0x1]
    %v1244 = vld [vmem:[%s4 + $0xd] sm:$0x1]
    %v1245 = vld [vmem:[%s4 + $0xe] sm:$0x1]
    %v1246 = vld [vmem:[%s4 + $0xf] sm:$0x1]
    %v1247 = vld [vmem:[%s4 + $0x10] sm:$0x1]
    %v1248 = vld [vmem:[%s4 + $0x11] sm:$0x1]
    %v1249 = vlaneseq
    %v1250 = vshrl.u32 %v1249, 7
    %v1251 = vsub.s32 0, %v1250
    %v1252 = vrot.slane %v1241, %v1251
    %v1254 = vsel %vm28, %v1219, 0
    %v1257 = vsel %vm28, %v1220, 0
    %1259 = vmatprep.subr.mxu0 0.0
    %1260 = vmatpush1.msra.mxu0 %v1221
    %1261 = vmatprep.subr.mxu0 0.0
    %1262 = vmatpush1.msra.mxu0 %v1222
    %1263 = vmatprep.subr.mxu0 0.0
    %1264 = vmatpush1.msra.mxu0 %v1223
    %1265 = vmatprep.subr.mxu0 0.0
    %1266 = vmatpush1.msra.mxu0 %v1224
    %1267 = vmatprep.subr.mxu0 0.0
    %1268 = vmatpush1.msra.mxu0 0.0
    %1269 = vmatprep.subr.mxu0 0.0
    %1270 = vmatpush1.msra.mxu0 0.0
    %1271 = vmatprep.subr.mxu0 0.0
    %1272 = vmatpush1.msra.mxu0 0.0
    %1273 = vmatprep.subr.mxu0 0.0
    %1274 = vmatpush1.msra.mxu0 0.0
    %1275 = vmatprep.subr.mxu0 0.0
    %1276 = vmatpush1.msra.mxu0 0.0
    %1277 = vmatprep.subr.mxu0 0.0
    %1278 = vmatpush1.msra.mxu0 0.0
    %1279 = vmatprep.subr.mxu0 0.0
    %1280 = vmatpush1.msra.mxu0 0.0
    %1281 = vmatprep.subr.mxu0 0.0
    %1282 = vmatpush1.msra.mxu0 0.0
    %1283 = vmatprep.subr.mxu0 0.0
    %1284 = vmatpush1.msra.mxu0 0.0
    %1285 = vmatprep.subr.mxu0 0.0
    %1286 = vmatpush1.msra.mxu0 0.0
    %1287 = vmatprep.subr.mxu0 0.0
    %1288 = vmatpush1.msra.mxu0 0.0
    %1289 = vmatprep.subr.mxu0 0.0
    %1290 = vmatpush1.msra.mxu0 0.0
    %1291 = vmatprep.subr.mxu0 0.0
    %1292 = vmatpush1.msra.mxu0 0.0
    %1293 = vmatprep.subr.mxu0 0.0
    %1294 = vmatpush1.msra.mxu0 0.0
    %1295 = vmatprep.subr.mxu0 0.0
    %1296 = vmatpush1.msra.mxu0 0.0
    %1297 = vmatprep.subr.mxu0 0.0
    %1298 = vmatpush1.msra.mxu0 0.0
    %1299 = vmatprep.subr.mxu0 0.0
    %1300 = vmatpush1.msra.mxu0 0.0
    %1301 = vmatprep.subr.mxu0 0.0
    %1302 = vmatpush1.msra.mxu0 0.0
    %1303 = vmatprep.subr.mxu0 0.0
    %1304 = vmatpush1.msra.mxu0 0.0
    %1305 = vmatprep.subr.mxu0 0.0
    %1306 = vmatpush1.msra.mxu0 0.0
    %1307 = vmatprep.subr.mxu0 0.0
    %1308 = vmatpush1.msra.mxu0 0.0
    %1309 = vmatprep.subr.mxu0 0.0
    %1310 = vmatpush1.msra.mxu0 0.0
    %1311 = vmatprep.subr.mxu0 0.0
    %1312 = vmatpush1.msra.mxu0 0.0
    %1313 = vmatprep.subr.mxu0 0.0
    %1314 = vmatpush1.msra.mxu0 0.0
    %1315 = vmatprep.subr.mxu0 0.0
    %1316 = vmatpush1.msra.mxu0 0.0
    %1317 = vmatprep.subr.mxu0 0.0
    %1318 = vmatpush1.msra.mxu0 0.0
    %1319 = vmatprep.subr.mxu0 0.0
    %1320 = vmatpush1.msra.mxu0 0.0
    %1321 = vmatprep.subr.mxu0 0.0
    %1322 = vmatpush1.msra.mxu0 0.0
    %1323 = vmatprep.mubr.f32.mxu0 0.0
    %1324 = vmatmul.mubr.f32.gmra.mrb[0].mxu0 %v1254
    %v1325 = vpop.f32.mrb[0].mxu0
    %v1326 = vadd.f32 %v1252, %v1325
    %v1327 = vpop.f32.mrb[0].mxu0
    %1328 = vmatprep.mubr.f32.mxu0 0.0
    %1329 = vmatmul.mubr.f32.gmra.mrb[0].mxu0 %v1257
    %v1330 = vpop.f32.mrb[0].mxu0
    %v1331 = vadd.f32 %v1252, %v1330
    %v1332 = vpop.f32.mrb[0].mxu0
    %1333 = vdwg.mxu0
    %1335 = vrot.lane.b32.xlu0 %v1326, 96
    %v1336 = vpop.permute.xlu0 %1335
    %v1337 = vsel %vm191, %v1326, 0
    %v1339 = vsel %vm191, %v1336, 0
    %1341 = vmatprep.subr.mxu0 0.0
    %1342 = vmatpush1.xpose.msra.mxu0 %v1339
    %1343 = vmatprep.subr.mxu0 0.0
    %1344 = vmatpush1.xpose.msra.mxu0 0.0
    %1345 = vmatprep.subr.mxu0 0.0
    %1346 = vmatpush1.xpose.msra.mxu0 0.0
    %1347 = vmatprep.subr.mxu0 0.0
    %1348 = vmatpush1.xpose.msra.mxu0 0.0
    %1349 = vmatprep.subr.mxu0 0.0
    %1350 = vmatpush1.xpose.msra.mxu0 0.0
    %1351 = vmatprep.subr.mxu0 0.0
    %1352 = vmatpush1.xpose.msra.mxu0 0.0
    %1353 = vmatprep.subr.mxu0 0.0
    %1354 = vmatpush1.xpose.msra.mxu0 0.0
    %1355 = vmatprep.subr.mxu0 0.0
    %1356 = vmatpush1.xpose.msra.mxu0 0.0
    %1357 = vmatprep.subr.mxu0 0.0
    %1358 = vmatpush1.xpose.msra.mxu0 0.0
    %1359 = vmatprep.subr.mxu0 0.0
    %1360 = vmatpush1.xpose.msra.mxu0 0.0
    %1361 = vmatprep.subr.mxu0 0.0
    %1362 = vmatpush1.xpose.msra.mxu0 0.0
    %1363 = vmatprep.subr.mxu0 0.0
    %1364 = vmatpush1.xpose.msra.mxu0 0.0
    %1365 = vmatprep.subr.mxu0 0.0
    %1366 = vmatpush1.xpose.msra.mxu0 0.0
    %1367 = vmatprep.subr.mxu0 0.0
    %1368 = vmatpush1.xpose.msra.mxu0 0.0
    %1369 = vmatprep.subr.mxu0 0.0
    %1370 = vmatpush1.xpose.msra.mxu0 0.0
    %1371 = vmatprep.subr.mxu0 0.0
    %1372 = vmatpush1.xpose.msra.mxu0 0.0
    %1373 = vmatprep.subr.mxu0 0.0
    %1374 = vmatpush1.xpose.msra.mxu0 0.0
    %1375 = vmatprep.subr.mxu0 0.0
    %1376 = vmatpush1.xpose.msra.mxu0 0.0
    %1377 = vmatprep.subr.mxu0 0.0
    %1378 = vmatpush1.xpose.msra.mxu0 0.0
    %1379 = vmatprep.subr.mxu0 0.0
    %1380 = vmatpush1.xpose.msra.mxu0 0.0
    %1381 = vmatprep.subr.mxu0 0.0
    %1382 = vmatpush1.xpose.msra.mxu0 0.0
    %1383 = vmatprep.subr.mxu0 0.0
    %1384 = vmatpush1.xpose.msra.mxu0 0.0
    %1385 = vmatprep.subr.mxu0 0.0
    %1386 = vmatpush1.xpose.msra.mxu0 0.0
    %1387 = vmatprep.subr.mxu0 0.0
    %1388 = vmatpush1.xpose.msra.mxu0 0.0
    %1389 = vmatprep.subr.mxu0 0.0
    %1390 = vmatpush1.xpose.msra.mxu0 0.0
    %1391 = vmatprep.subr.mxu0 0.0
    %1392 = vmatpush1.xpose.msra.mxu0 0.0
    %1393 = vmatprep.subr.mxu0 0.0
    %1394 = vmatpush1.xpose.msra.mxu0 0.0
    %1395 = vmatprep.subr.mxu0 0.0
    %1396 = vmatpush1.xpose.msra.mxu0 0.0
    %1397 = vmatprep.subr.mxu0 0.0
    %1398 = vmatpush1.xpose.msra.mxu0 0.0
    %1399 = vmatprep.subr.mxu0 0.0
    %1400 = vmatpush1.xpose.msra.mxu0 0.0
    %1401 = vmatprep.subr.mxu0 0.0
    %1402 = vmatpush1.xpose.msra.mxu0 0.0
    %1403 = vmatprep.subr.mxu0 0.0
    %1404 = vmatpush1.xpose.msra.mxu0 0.0
    %1405 = vmatprep.mubr.f32.mxu0 0.0
    %1406 = vmatmul.mubr.f32.gmra.mrb[0].mxu0 %v1337
    %v1407 = vpop.f32.mrb[0].mxu0
    %v1408 = vadd.f32 %v187, %v1407
    %v1409 = vpop.f32.mrb[0].mxu0
    %1410 = vdwg.mxu0
    %v1411 = vsel %vm266, %v1408, -inf
    %1412 = vmax.xlane.f32.xlu0 %v1411
    %v1413 = vpop.xlane.xlu0 %1412
    %v1414 = vsub.f32 %v1408, %v1413
    %v1415 = vmul.f32 %v1414, 1.442695
    %v1416 = vpow.pop %v1415
    %v1417 = vsel %vm266, %v1416, 0.0
    %1418 = vadd.xlane.f32.xlu0 %v1417
    %v1419 = vpop.xlane.xlu0 %1418
    %v1420 = vrcp.pop %v1419
    %v1421 = vmul.f32 %v1416, %v1420
    %1422 = vrot.lane.b32.xlu0 %v1326, 64
    %v1423 = vpop.permute.xlu0 %1422
    %v1426 = vsel %vm266, %v1421, 0
    %1428 = vmatprep.subr.mxu0 0.0
    %1429 = vmatpush1.msra.mxu0 %v1423
    %1430 = vmatprep.subr.mxu0 0.0
    %1431 = vmatpush1.msra.mxu0 0.0
    %1432 = vmatprep.subr.mxu0 0.0
    %1433 = vmatpush1.msra.mxu0 0.0
    %1434 = vmatprep.subr.mxu0 0.0
    %1435 = vmatpush1.msra.mxu0 0.0
    %1436 = vmatprep.subr.mxu0 0.0
    %1437 = vmatpush1.msra.mxu0 0.0
    %1438 = vmatprep.subr.mxu0 0.0
    %1439 = vmatpush1.msra.mxu0 0.0
    %1440 = vmatprep.subr.mxu0 0.0
    %1441 = vmatpush1.msra.mxu0 0.0
    %1442 = vmatprep.subr.mxu0 0.0
    %1443 = vmatpush1.msra.mxu0 0.0
    %1444 = vmatprep.subr.mxu0 0.0
    %1445 = vmatpush1.msra.mxu0 0.0
    %1446 = vmatprep.subr.mxu0 0.0
    %1447 = vmatpush1.msra.mxu0 0.0
    %1448 = vmatprep.subr.mxu0 0.0
    %1449 = vmatpush1.msra.mxu0 0.0
    %1450 = vmatprep.subr.mxu0 0.0
    %1451 = vmatpush1.msra.mxu0 0.0
    %1452 = vmatprep.subr.mxu0 0.0
    %1453 = vmatpush1.msra.mxu0 0.0
    %1454 = vmatprep.subr.mxu0 0.0
    %1455 = vmatpush1.msra.mxu0 0.0
    %1456 = vmatprep.subr.mxu0 0.0
    %1457 = vmatpush1.msra.mxu0 0.0
    %1458 = vmatprep.subr.mxu0 0.0
    %1459 = vmatpush1.msra.mxu0 0.0
    %1460 = vmatprep.subr.mxu0 0.0
    %1461 = vmatpush1.msra.mxu0 0.0
    %1462 = vmatprep.subr.mxu0 0.0
    %1463 = vmatpush1.msra.mxu0 0.0
    %1464 = vmatprep.subr.mxu0 0.0
    %1465 = vmatpush1.msra.mxu0 0.0
    %1466 = vmatprep.subr.mxu0 0.0
    %1467 = vmatpush1.msra.mxu0 0.0
    %1468 = vmatprep.subr.mxu0 0.0
    %1469 = vmatpush1.msra.mxu0 0.0
    %1470 = vmatprep.subr.mxu0 0.0
    %1471 = vmatpush1.msra.mxu0 0.0
    %1472 = vmatprep.subr.mxu0 0.0
    %1473 = vmatpush1.msra.mxu0 0.0
    %1474 = vmatprep.subr.mxu0 0.0
    %1475 = vmatpush1.msra.mxu0 0.0
    %1476 = vmatprep.subr.mxu0 0.0
    %1477 = vmatpush1.msra.mxu0 0.0
    %1478 = vmatprep.subr.mxu0 0.0
    %1479 = vmatpush1.msra.mxu0 0.0
    %1480 = vmatprep.subr.mxu0 0.0
    %1481 = vmatpush1.msra.mxu0 0.0
    %1482 = vmatprep.subr.mxu0 0.0
    %1483 = vmatpush1.msra.mxu0 0.0
    %1484 = vmatprep.subr.mxu0 0.0
    %1485 = vmatpush1.msra.mxu0 0.0
    %1486 = vmatprep.subr.mxu0 0.0
    %1487 = vmatpush1.msra.mxu0 0.0
    %1488 = vmatprep.subr.mxu0 0.0
    %1489 = vmatpush1.msra.mxu0 0.0
    %1490 = vmatprep.subr.mxu0 0.0
    %1491 = vmatpush1.msra.mxu0 0.0
    %1492 = vmatprep.mubr.f32.mxu0 0.0
    %1493 = vmatmul.mubr.f32.gmra.mrb[0].mxu0 %v1426
    %v1494 = vpop.f32.mrb[0].mxu0
    %v1495 = vadd.f32 0.0, %v1494
    %v1496 = vpop.f32.mrb[0].mxu0
    %1497 = vdwg.mxu0
    %1498 = vst.msk [vmem:[#allocation2] sm:$0xff] %vm191, %v1495
    %1499 = vrot.lane.b32.xlu0 %v1326, 112
    %v1500 = vpop.permute.xlu0 %1499
    %1501 = vrot.lane.b32.xlu0 %v1326, 80
    %v1502 = vpop.permute.xlu0 %1501
    %v1503 = vsel %vm191, %v1500, 0
    %v1505 = vsel %vm191, %v1502, 0
    %1507 = vmatprep.subr.mxu0 0.0
    %1508 = vmatpush1.xpose.msra.mxu0 %v1505
    %1509 = vmatprep.subr.mxu0 0.0
    %1510 = vmatpush1.xpose.msra.mxu0 0.0
    %1511 = vmatprep.subr.mxu0 0.0
    %1512 = vmatpush1.xpose.msra.mxu0 0.0
    %1513 = vmatprep.subr.mxu0 0.0
    %1514 = vmatpush1.xpose.msra.mxu0 0.0
    %1515 = vmatprep.subr.mxu0 0.0
    %1516 = vmatpush1.xpose.msra.mxu0 0.0
    %1517 = vmatprep.subr.mxu0 0.0
    %1518 = vmatpush1.xpose.msra.mxu0 0.0
    %1519 = vmatprep.subr.mxu0 0.0
    %1520 = vmatpush1.xpose.msra.mxu0 0.0
    %1521 = vmatprep.subr.mxu0 0.0
    %1522 = vmatpush1.xpose.msra.mxu0 0.0
    %1523 = vmatprep.subr.mxu0 0.0
    %1524 = vmatpush1.xpose.msra.mxu0 0.0
    %1525 = vmatprep.subr.mxu0 0.0
    %1526 = vmatpush1.xpose.msra.mxu0 0.0
    %1527 = vmatprep.subr.mxu0 0.0
    %1528 = vmatpush1.xpose.msra.mxu0 0.0
    %1529 = vmatprep.subr.mxu0 0.0
    %1530 = vmatpush1.xpose.msra.mxu0 0.0
    %1531 = vmatprep.subr.mxu0 0.0
    %1532 = vmatpush1.xpose.msra.mxu0 0.0
    %1533 = vmatprep.subr.mxu0 0.0
    %1534 = vmatpush1.xpose.msra.mxu0 0.0
    %1535 = vmatprep.subr.mxu0 0.0
    %1536 = vmatpush1.xpose.msra.mxu0 0.0
    %1537 = vmatprep.subr.mxu0 0.0
    %1538 = vmatpush1.xpose.msra.mxu0 0.0
    %1539 = vmatprep.subr.mxu0 0.0
    %1540 = vmatpush1.xpose.msra.mxu0 0.0
    %1541 = vmatprep.subr.mxu0 0.0
    %1542 = vmatpush1.xpose.msra.mxu0 0.0
    %1543 = vmatprep.subr.mxu0 0.0
    %1544 = vmatpush1.xpose.msra.mxu0 0.0
    %1545 = vmatprep.subr.mxu0 0.0
    %1546 = vmatpush1.xpose.msra.mxu0 0.0
    %1547 = vmatprep.subr.mxu0 0.0
    %1548 = vmatpush1.xpose.msra.mxu0 0.0
    %1549 = vmatprep.subr.mxu0 0.0
    %1550 = vmatpush1.xpose.msra.mxu0 0.0
    %1551 = vmatprep.subr.mxu0 0.0
    %1552 = vmatpush1.xpose.msra.mxu0 0.0
    %1553 = vmatprep.subr.mxu0 0.0
    %1554 = vmatpush1.xpose.msra.mxu0 0.0
    %1555 = vmatprep.subr.mxu0 0.0
    %1556 = vmatpush1.xpose.msra.mxu0 0.0
    %1557 = vmatprep.subr.mxu0 0.0
    %1558 = vmatpush1.xpose.msra.mxu0 0.0
    %1559 = vmatprep.subr.mxu0 0.0
    %1560 = vmatpush1.xpose.msra.mxu0 0.0
    %1561 = vmatprep.subr.mxu0 0.0
    %1562 = vmatpush1.xpose.msra.mxu0 0.0
    %1563 = vmatprep.subr.mxu0 0.0
    %1564 = vmatpush1.xpose.msra.mxu0 0.0
    %1565 = vmatprep.subr.mxu0 0.0
    %1566 = vmatpush1.xpose.msra.mxu0 0.0
    %1567 = vmatprep.subr.mxu0 0.0
    %1568 = vmatpush1.xpose.msra.mxu0 0.0
    %1569 = vmatprep.subr.mxu0 0.0
    %1570 = vmatpush1.xpose.msra.mxu0 0.0
    %1571 = vmatprep.mubr.f32.mxu0 0.0
    %1572 = vmatmul.mubr.f32.gmra.mrb[0].mxu0 %v1503
    %v1573 = vpop.f32.mrb[0].mxu0
    %v1574 = vadd.f32 %v187, %v1573
    %v1575 = vpop.f32.mrb[0].mxu0
    %1576 = vdwg.mxu0
    %v1577 = vsel %vm266, %v1574, -inf
    %1578 = vmax.xlane.f32.xlu0 %v1577
    %v1579 = vpop.xlane.xlu0 %1578
    %v1580 = vsub.f32 %v1574, %v1579
    %v1581 = vmul.f32 %v1580, 1.442695
    %v1582 = vpow.pop %v1581
    %v1583 = vsel %vm266, %v1582, 0.0
    %1584 = vadd.xlane.f32.xlu0 %v1583
    %v1585 = vpop.xlane.xlu0 %1584
    %v1586 = vrcp.pop %v1585
    %v1587 = vmul.f32 %v1582, %v1586
    %1588 = vrot.lane.b32.xlu0 %v1326, 48
    %v1589 = vpop.permute.xlu0 %1588
    %v1592 = vsel %vm266, %v1587, 0
    %1594 = vmatprep.subr.mxu0 0.0
    %1595 = vmatpush1.msra.mxu0 %v1589
    %1596 = vmatprep.subr.mxu0 0.0
    %1597 = vmatpush1.msra.mxu0 0.0
    %1598 = vmatprep.subr.mxu0 0.0
    %1599 = vmatpush1.msra.mxu0 0.0
    %1600 = vmatprep.subr.mxu0 0.0
    %1601 = vmatpush1.msra.mxu0 0.0
    %1602 = vmatprep.subr.mxu0 0.0
    %1603 = vmatpush1.msra.mxu0 0.0
    %1604 = vmatprep.subr.mxu0 0.0
    %1605 = vmatpush1.msra.mxu0 0.0
    %1606 = vmatprep.subr.mxu0 0.0
    %1607 = vmatpush1.msra.mxu0 0.0
    %1608 = vmatprep.subr.mxu0 0.0
    %1609 = vmatpush1.msra.mxu0 0.0
    %1610 = vmatprep.subr.mxu0 0.0
    %1611 = vmatpush1.msra.mxu0 0.0
    %1612 = vmatprep.subr.mxu0 0.0
    %1613 = vmatpush1.msra.mxu0 0.0
    %1614 = vmatprep.subr.mxu0 0.0
    %1615 = vmatpush1.msra.mxu0 0.0
    %1616 = vmatprep.subr.mxu0 0.0
    %1617 = vmatpush1.msra.mxu0 0.0
    %1618 = vmatprep.subr.mxu0 0.0
    %1619 = vmatpush1.msra.mxu0 0.0
    %1620 = vmatprep.subr.mxu0 0.0
    %1621 = vmatpush1.msra.mxu0 0.0
    %1622 = vmatprep.subr.mxu0 0.0
    %1623 = vmatpush1.msra.mxu0 0.0
    %1624 = vmatprep.subr.mxu0 0.0
    %1625 = vmatpush1.msra.mxu0 0.0
    %1626 = vmatprep.subr.mxu0 0.0
    %1627 = vmatpush1.msra.mxu0 0.0
    %1628 = vmatprep.subr.mxu0 0.0
    %1629 = vmatpush1.msra.mxu0 0.0
    %1630 = vmatprep.subr.mxu0 0.0
    %1631 = vmatpush1.msra.mxu0 0.0
    %1632 = vmatprep.subr.mxu0 0.0
    %1633 = vmatpush1.msra.mxu0 0.0
    %1634 = vmatprep.subr.mxu0 0.0
    %1635 = vmatpush1.msra.mxu0 0.0
    %1636 = vmatprep.subr.mxu0 0.0
    %1637 = vmatpush1.msra.mxu0 0.0
    %1638 = vmatprep.subr.mxu0 0.0
    %1639 = vmatpush1.msra.mxu0 0.0
    %1640 = vmatprep.subr.mxu0 0.0
    %1641 = vmatpush1.msra.mxu0 0.0
    %1642 = vmatprep.subr.mxu0 0.0
    %1643 = vmatpush1.msra.mxu0 0.0
    %1644 = vmatprep.subr.mxu0 0.0
    %1645 = vmatpush1.msra.mxu0 0.0
    %1646 = vmatprep.subr.mxu0 0.0
    %1647 = vmatpush1.msra.mxu0 0.0
    %1648 = vmatprep.subr.mxu0 0.0
    %1649 = vmatpush1.msra.mxu0 0.0
    %1650 = vmatprep.subr.mxu0 0.0
    %1651 = vmatpush1.msra.mxu0 0.0
    %1652 = vmatprep.subr.mxu0 0.0
    %1653 = vmatpush1.msra.mxu0 0.0
    %1654 = vmatprep.subr.mxu0 0.0
    %1655 = vmatpush1.msra.mxu0 0.0
    %1656 = vmatprep.subr.mxu0 0.0
    %1657 = vmatpush1.msra.mxu0 0.0
    %1658 = vmatprep.mubr.f32.mxu0 0.0
    %1659 = vmatmul.mubr.f32.gmra.mrb[0].mxu0 %v1592
    %v1660 = vpop.f32.mrb[0].mxu0
    %v1661 = vadd.f32 0.0, %v1660
    %v1662 = vpop.f32.mrb[0].mxu0
    %1663 = vdwg.mxu0
    %1665 = vrot.lane.b32.xlu0 %v1661, 16
    %v1666 = vpop.permute.xlu0 %1665
    %1668 = vst.msk [vmem:[#allocation2] sm:$0xff] %vm524, %v1666
    %1670 = vrot.lane.b32.xlu0 %v1331, 96
    %v1671 = vpop.permute.xlu0 %1670
    %v1672 = vsel %vm191, %v1331, 0
    %v1674 = vsel %vm191, %v1671, 0
    %1676 = vmatprep.subr.mxu0 0.0
    %1677 = vmatpush1.xpose.msra.mxu0 %v1674
    %1678 = vmatprep.subr.mxu0 0.0
    %1679 = vmatpush1.xpose.msra.mxu0 0.0
    %1680 = vmatprep.subr.mxu0 0.0
    %1681 = vmatpush1.xpose.msra.mxu0 0.0
    %1682 = vmatprep.subr.mxu0 0.0
    %1683 = vmatpush1.xpose.msra.mxu0 0.0
    %1684 = vmatprep.subr.mxu0 0.0
    %1685 = vmatpush1.xpose.msra.mxu0 0.0
    %1686 = vmatprep.subr.mxu0 0.0
    %1687 = vmatpush1.xpose.msra.mxu0 0.0
    %1688 = vmatprep.subr.mxu0 0.0
    %1689 = vmatpush1.xpose.msra.mxu0 0.0
    %1690 = vmatprep.subr.mxu0 0.0
    %1691 = vmatpush1.xpose.msra.mxu0 0.0
    %1692 = vmatprep.subr.mxu0 0.0
    %1693 = vmatpush1.xpose.msra.mxu0 0.0
    %1694 = vmatprep.subr.mxu0 0.0
    %1695 = vmatpush1.xpose.msra.mxu0 0.0
    %1696 = vmatprep.subr.mxu0 0.0
    %1697 = vmatpush1.xpose.msra.mxu0 0.0
    %1698 = vmatprep.subr.mxu0 0.0
    %1699 = vmatpush1.xpose.msra.mxu0 0.0
    %1700 = vmatprep.subr.mxu0 0.0
    %1701 = vmatpush1.xpose.msra.mxu0 0.0
    %1702 = vmatprep.subr.mxu0 0.0
    %1703 = vmatpush1.xpose.msra.mxu0 0.0
    %1704 = vmatprep.subr.mxu0 0.0
    %1705 = vmatpush1.xpose.msra.mxu0 0.0
    %1706 = vmatprep.subr.mxu0 0.0
    %1707 = vmatpush1.xpose.msra.mxu0 0.0
    %1708 = vmatprep.subr.mxu0 0.0
    %1709 = vmatpush1.xpose.msra.mxu0 0.0
    %1710 = vmatprep.subr.mxu0 0.0
    %1711 = vmatpush1.xpose.msra.mxu0 0.0
    %1712 = vmatprep.subr.mxu0 0.0
    %1713 = vmatpush1.xpose.msra.mxu0 0.0
    %1714 = vmatprep.subr.mxu0 0.0
    %1715 = vmatpush1.xpose.msra.mxu0 0.0
    %1716 = vmatprep.subr.mxu0 0.0
    %1717 = vmatpush1.xpose.msra.mxu0 0.0
    %1718 = vmatprep.subr.mxu0 0.0
    %1719 = vmatpush1.xpose.msra.mxu0 0.0
    %1720 = vmatprep.subr.mxu0 0.0
    %1721 = vmatpush1.xpose.msra.mxu0 0.0
    %1722 = vmatprep.subr.mxu0 0.0
    %1723 = vmatpush1.xpose.msra.mxu0 0.0
    %1724 = vmatprep.subr.mxu0 0.0
    %1725 = vmatpush1.xpose.msra.mxu0 0.0
    %1726 = vmatprep.subr.mxu0 0.0
    %1727 = vmatpush1.xpose.msra.mxu0 0.0
    %1728 = vmatprep.subr.mxu0 0.0
    %1729 = vmatpush1.xpose.msra.mxu0 0.0
    %1730 = vmatprep.subr.mxu0 0.0
    %1731 = vmatpush1.xpose.msra.mxu0 0.0
    %1732 = vmatprep.subr.mxu0 0.0
    %1733 = vmatpush1.xpose.msra.mxu0 0.0
    %1734 = vmatprep.subr.mxu0 0.0
    %1735 = vmatpush1.xpose.msra.mxu0 0.0
    %1736 = vmatprep.subr.mxu0 0.0
    %1737 = vmatpush1.xpose.msra.mxu0 0.0
    %1738 = vmatprep.subr.mxu0 0.0
    %1739 = vmatpush1.xpose.msra.mxu0 0.0
    %1740 = vmatprep.mubr.f32.mxu0 0.0
    %1741 = vmatmul.mubr.f32.gmra.mrb[0].mxu0 %v1672
    %v1742 = vpop.f32.mrb[0].mxu0
    %v1743 = vadd.f32 %v529, %v1742
    %v1744 = vpop.f32.mrb[0].mxu0
    %1745 = vdwg.mxu0
    %v1746 = vsel %vm266, %v1743, -inf
    %1747 = vmax.xlane.f32.xlu0 %v1746
    %v1748 = vpop.xlane.xlu0 %1747
    %v1749 = vsub.f32 %v1743, %v1748
    %v1750 = vmul.f32 %v1749, 1.442695
    %v1751 = vpow.pop %v1750
    %v1752 = vsel %vm266, %v1751, 0.0
    %1753 = vadd.xlane.f32.xlu0 %v1752
    %v1754 = vpop.xlane.xlu0 %1753
    %v1755 = vrcp.pop %v1754
    %v1756 = vmul.f32 %v1751, %v1755
    %1757 = vrot.lane.b32.xlu0 %v1331, 64
    %v1758 = vpop.permute.xlu0 %1757
    %v1761 = vsel %vm266, %v1756, 0
    %1763 = vmatprep.subr.mxu0 0.0
    %1764 = vmatpush1.msra.mxu0 %v1758
    %1765 = vmatprep.subr.mxu0 0.0
    %1766 = vmatpush1.msra.mxu0 0.0
    %1767 = vmatprep.subr.mxu0 0.0
    %1768 = vmatpush1.msra.mxu0 0.0
    %1769 = vmatprep.subr.mxu0 0.0
    %1770 = vmatpush1.msra.mxu0 0.0
    %1771 = vmatprep.subr.mxu0 0.0
    %1772 = vmatpush1.msra.mxu0 0.0
    %1773 = vmatprep.subr.mxu0 0.0
    %1774 = vmatpush1.msra.mxu0 0.0
    %1775 = vmatprep.subr.mxu0 0.0
    %1776 = vmatpush1.msra.mxu0 0.0
    %1777 = vmatprep.subr.mxu0 0.0
    %1778 = vmatpush1.msra.mxu0 0.0
    %1779 = vmatprep.subr.mxu0 0.0
    %1780 = vmatpush1.msra.mxu0 0.0
    %1781 = vmatprep.subr.mxu0 0.0
    %1782 = vmatpush1.msra.mxu0 0.0
    %1783 = vmatprep.subr.mxu0 0.0
    %1784 = vmatpush1.msra.mxu0 0.0
    %1785 = vmatprep.subr.mxu0 0.0
    %1786 = vmatpush1.msra.mxu0 0.0
    %1787 = vmatprep.subr.mxu0 0.0
    %1788 = vmatpush1.msra.mxu0 0.0
    %1789 = vmatprep.subr.mxu0 0.0
    %1790 = vmatpush1.msra.mxu0 0.0
    %1791 = vmatprep.subr.mxu0 0.0
    %1792 = vmatpush1.msra.mxu0 0.0
    %1793 = vmatprep.subr.mxu0 0.0
    %1794 = vmatpush1.msra.mxu0 0.0
    %1795 = vmatprep.subr.mxu0 0.0
    %1796 = vmatpush1.msra.mxu0 0.0
    %1797 = vmatprep.subr.mxu0 0.0
    %1798 = vmatpush1.msra.mxu0 0.0
    %1799 = vmatprep.subr.mxu0 0.0
    %1800 = vmatpush1.msra.mxu0 0.0
    %1801 = vmatprep.subr.mxu0 0.0
    %1802 = vmatpush1.msra.mxu0 0.0
    %1803 = vmatprep.subr.mxu0 0.0
    %1804 = vmatpush1.msra.mxu0 0.0
    %1805 = vmatprep.subr.mxu0 0.0
    %1806 = vmatpush1.msra.mxu0 0.0
    %1807 = vmatprep.subr.mxu0 0.0
    %1808 = vmatpush1.msra.mxu0 0.0
    %1809 = vmatprep.subr.mxu0 0.0
    %1810 = vmatpush1.msra.mxu0 0.0
    %1811 = vmatprep.subr.mxu0 0.0
    %1812 = vmatpush1.msra.mxu0 0.0
    %1813 = vmatprep.subr.mxu0 0.0
    %1814 = vmatpush1.msra.mxu0 0.0
    %1815 = vmatprep.subr.mxu0 0.0
    %1816 = vmatpush1.msra.mxu0 0.0
    %1817 = vmatprep.subr.mxu0 0.0
    %1818 = vmatpush1.msra.mxu0 0.0
    %1819 = vmatprep.subr.mxu0 0.0
    %1820 = vmatpush1.msra.mxu0 0.0
    %1821 = vmatprep.subr.mxu0 0.0
    %1822 = vmatpush1.msra.mxu0 0.0
    %1823 = vmatprep.subr.mxu0 0.0
    %1824 = vmatpush1.msra.mxu0 0.0
    %1825 = vmatprep.subr.mxu0 0.0
    %1826 = vmatpush1.msra.mxu0 0.0
    %1827 = vmatprep.mubr.f32.mxu0 0.0
    %1828 = vmatmul.mubr.f32.gmra.mrb[0].mxu0 %v1761
    %v1829 = vpop.f32.mrb[0].mxu0
    %v1830 = vadd.f32 0.0, %v1829
    %v1831 = vpop.f32.mrb[0].mxu0
    %1832 = vdwg.mxu0
    %1833 = vst.msk [vmem:[#allocation2 + $0x8] sm:$0xff] %vm191, %v1830
    %1834 = vrot.lane.b32.xlu0 %v1331, 112
    %v1835 = vpop.permute.xlu0 %1834
    %1836 = vrot.lane.b32.xlu0 %v1331, 80
    %v1837 = vpop.permute.xlu0 %1836
    %v1838 = vsel %vm191, %v1835, 0
    %v1840 = vsel %vm191, %v1837, 0
    %1842 = vmatprep.subr.mxu0 0.0
    %1843 = vmatpush1.xpose.msra.mxu0 %v1840
    %1844 = vmatprep.subr.mxu0 0.0
    %1845 = vmatpush1.xpose.msra.mxu0 0.0
    %1846 = vmatprep.subr.mxu0 0.0
    %1847 = vmatpush1.xpose.msra.mxu0 0.0
    %1848 = vmatprep.subr.mxu0 0.0
    %1849 = vmatpush1.xpose.msra.mxu0 0.0
    %1850 = vmatprep.subr.mxu0 0.0
    %1851 = vmatpush1.xpose.msra.mxu0 0.0
    %1852 = vmatprep.subr.mxu0 0.0
    %1853 = vmatpush1.xpose.msra.mxu0 0.0
    %1854 = vmatprep.subr.mxu0 0.0
    %1855 = vmatpush1.xpose.msra.mxu0 0.0
    %1856 = vmatprep.subr.mxu0 0.0
    %1857 = vmatpush1.xpose.msra.mxu0 0.0
    %1858 = vmatprep.subr.mxu0 0.0
    %1859 = vmatpush1.xpose.msra.mxu0 0.0
    %1860 = vmatprep.subr.mxu0 0.0
    %1861 = vmatpush1.xpose.msra.mxu0 0.0
    %1862 = vmatprep.subr.mxu0 0.0
    %1863 = vmatpush1.xpose.msra.mxu0 0.0
    %1864 = vmatprep.subr.mxu0 0.0
    %1865 = vmatpush1.xpose.msra.mxu0 0.0
    %1866 = vmatprep.subr.mxu0 0.0
    %1867 = vmatpush1.xpose.msra.mxu0 0.0
    %1868 = vmatprep.subr.mxu0 0.0
    %1869 = vmatpush1.xpose.msra.mxu0 0.0
    %1870 = vmatprep.subr.mxu0 0.0
    %1871 = vmatpush1.xpose.msra.mxu0 0.0
    %1872 = vmatprep.subr.mxu0 0.0
    %1873 = vmatpush1.xpose.msra.mxu0 0.0
    %1874 = vmatprep.subr.mxu0 0.0
    %1875 = vmatpush1.xpose.msra.mxu0 0.0
    %1876 = vmatprep.subr.mxu0 0.0
    %1877 = vmatpush1.xpose.msra.mxu0 0.0
    %1878 = vmatprep.subr.mxu0 0.0
    %1879 = vmatpush1.xpose.msra.mxu0 0.0
    %1880 = vmatprep.subr.mxu0 0.0
    %1881 = vmatpush1.xpose.msra.mxu0 0.0
    %1882 = vmatprep.subr.mxu0 0.0
    %1883 = vmatpush1.xpose.msra.mxu0 0.0
    %1884 = vmatprep.subr.mxu0 0.0
    %1885 = vmatpush1.xpose.msra.mxu0 0.0
    %1886 = vmatprep.subr.mxu0 0.0
    %1887 = vmatpush1.xpose.msra.mxu0 0.0
    %1888 = vmatprep.subr.mxu0 0.0
    %1889 = vmatpush1.xpose.msra.mxu0 0.0
    %1890 = vmatprep.subr.mxu0 0.0
    %1891 = vmatpush1.xpose.msra.mxu0 0.0
    %1892 = vmatprep.subr.mxu0 0.0
    %1893 = vmatpush1.xpose.msra.mxu0 0.0
    %1894 = vmatprep.subr.mxu0 0.0
    %1895 = vmatpush1.xpose.msra.mxu0 0.0
    %1896 = vmatprep.subr.mxu0 0.0
    %1897 = vmatpush1.xpose.msra.mxu0 0.0
    %1898 = vmatprep.subr.mxu0 0.0
    %1899 = vmatpush1.xpose.msra.mxu0 0.0
    %1900 = vmatprep.subr.mxu0 0.0
    %1901 = vmatpush1.xpose.msra.mxu0 0.0
    %1902 = vmatprep.subr.mxu0 0.0
    %1903 = vmatpush1.xpose.msra.mxu0 0.0
    %1904 = vmatprep.subr.mxu0 0.0
    %1905 = vmatpush1.xpose.msra.mxu0 0.0
    %1906 = vmatprep.mubr.f32.mxu0 0.0
    %1907 = vmatmul.mubr.f32.gmra.mrb[0].mxu0 %v1838
    %v1908 = vpop.f32.mrb[0].mxu0
    %v1909 = vadd.f32 %v529, %v1908
    %v1910 = vpop.f32.mrb[0].mxu0
    %1911 = vdwg.mxu0
    %v1912 = vsel %vm266, %v1909, -inf
    %1913 = vmax.xlane.f32.xlu0 %v1912
    %v1914 = vpop.xlane.xlu0 %1913
    %v1915 = vsub.f32 %v1909, %v1914
    %v1916 = vmul.f32 %v1915, 1.442695
    %v1917 = vpow.pop %v1916
    %v1918 = vsel %vm266, %v1917, 0.0
    %1919 = vadd.xlane.f32.xlu0 %v1918
    %v1920 = vpop.xlane.xlu0 %1919
    %v1921 = vrcp.pop %v1920
    %v1922 = vmul.f32 %v1917, %v1921
    %1923 = vrot.lane.b32.xlu0 %v1331, 48
    %v1924 = vpop.permute.xlu0 %1923
    %v1927 = vsel %vm266, %v1922, 0
    %1929 = vmatprep.subr.mxu0 0.0
    %1930 = vmatpush1.msra.mxu0 %v1924
    %1931 = vmatprep.subr.mxu0 0.0
    %1932 = vmatpush1.msra.mxu0 0.0
    %1933 = vmatprep.subr.mxu0 0.0
    %1934 = vmatpush1.msra.mxu0 0.0
    %1935 = vmatprep.subr.mxu0 0.0
    %1936 = vmatpush1.msra.mxu0 0.0
    %1937 = vmatprep.subr.mxu0 0.0
    %1938 = vmatpush1.msra.mxu0 0.0
    %1939 = vmatprep.subr.mxu0 0.0
    %1940 = vmatpush1.msra.mxu0 0.0
    %1941 = vmatprep.subr.mxu0 0.0
    %1942 = vmatpush1.msra.mxu0 0.0
    %1943 = vmatprep.subr.mxu0 0.0
    %1944 = vmatpush1.msra.mxu0 0.0
    %1945 = vmatprep.subr.mxu0 0.0
    %1946 = vmatpush1.msra.mxu0 0.0
    %1947 = vmatprep.subr.mxu0 0.0
    %1948 = vmatpush1.msra.mxu0 0.0
    %1949 = vmatprep.subr.mxu0 0.0
    %1950 = vmatpush1.msra.mxu0 0.0
    %1951 = vmatprep.subr.mxu0 0.0
    %1952 = vmatpush1.msra.mxu0 0.0
    %1953 = vmatprep.subr.mxu0 0.0
    %1954 = vmatpush1.msra.mxu0 0.0
    %1955 = vmatprep.subr.mxu0 0.0
    %1956 = vmatpush1.msra.mxu0 0.0
    %1957 = vmatprep.subr.mxu0 0.0
    %1958 = vmatpush1.msra.mxu0 0.0
    %1959 = vmatprep.subr.mxu0 0.0
    %1960 = vmatpush1.msra.mxu0 0.0
    %1961 = vmatprep.subr.mxu0 0.0
    %1962 = vmatpush1.msra.mxu0 0.0
    %1963 = vmatprep.subr.mxu0 0.0
    %1964 = vmatpush1.msra.mxu0 0.0
    %1965 = vmatprep.subr.mxu0 0.0
    %1966 = vmatpush1.msra.mxu0 0.0
    %1967 = vmatprep.subr.mxu0 0.0
    %1968 = vmatpush1.msra.mxu0 0.0
    %1969 = vmatprep.subr.mxu0 0.0
    %1970 = vmatpush1.msra.mxu0 0.0
    %1971 = vmatprep.subr.mxu0 0.0
    %1972 = vmatpush1.msra.mxu0 0.0
    %1973 = vmatprep.subr.mxu0 0.0
    %1974 = vmatpush1.msra.mxu0 0.0
    %1975 = vmatprep.subr.mxu0 0.0
    %1976 = vmatpush1.msra.mxu0 0.0
    %1977 = vmatprep.subr.mxu0 0.0
    %1978 = vmatpush1.msra.mxu0 0.0
    %1979 = vmatprep.subr.mxu0 0.0
    %1980 = vmatpush1.msra.mxu0 0.0
    %1981 = vmatprep.subr.mxu0 0.0
    %1982 = vmatpush1.msra.mxu0 0.0
    %1983 = vmatprep.subr.mxu0 0.0
    %1984 = vmatpush1.msra.mxu0 0.0
    %1985 = vmatprep.subr.mxu0 0.0
    %1986 = vmatpush1.msra.mxu0 0.0
    %1987 = vmatprep.subr.mxu0 0.0
    %1988 = vmatpush1.msra.mxu0 0.0
    %1989 = vmatprep.subr.mxu0 0.0
    %1990 = vmatpush1.msra.mxu0 0.0
    %1991 = vmatprep.subr.mxu0 0.0
    %1992 = vmatpush1.msra.mxu0 0.0
    %1993 = vmatprep.mubr.f32.mxu0 0.0
    %1994 = vmatmul.mubr.f32.gmra.mrb[0].mxu0 %v1927
    %v1995 = vpop.f32.mrb[0].mxu0
    %v1996 = vadd.f32 0.0, %v1995
    %v1997 = vpop.f32.mrb[0].mxu0
    %1998 = vdwg.mxu0
    %2000 = vrot.lane.b32.xlu0 %v1996, 16
    %v2001 = vpop.permute.xlu0 %2000
    %2003 = vst.msk [vmem:[#allocation2 + $0x8] sm:$0xff] %vm524, %v2001
    %v2004 = vld [vmem:[#allocation2] sm:$0xff]
    %v2005 = vld [vmem:[#allocation2 + $0x8] sm:$0xff]
    %v2006 = vlaneseq
    %v2007 = vshrl.u32 %v2006, 7
    %v2008 = vsub.s32 0, %v2007
    %v2009 = vrot.slane %v1242, %v2008
    %v2011 = vsel %vm28, %v2004, 0
    %v2014 = vsel %vm28, %v2005, 0
    %2016 = vmatprep.subr.mxu0 0.0
    %2017 = vmatpush1.msra.mxu0 %v1225
    %2018 = vmatprep.subr.mxu0 0.0
    %2019 = vmatpush1.msra.mxu0 %v1226
    %2020 = vmatprep.subr.mxu0 0.0
    %2021 = vmatpush1.msra.mxu0 %v1227
    %2022 = vmatprep.subr.mxu0 0.0
    %2023 = vmatpush1.msra.mxu0 %v1228
    %2024 = vmatprep.subr.mxu0 0.0
    %2025 = vmatpush1.msra.mxu0 0.0
    %2026 = vmatprep.subr.mxu0 0.0
    %2027 = vmatpush1.msra.mxu0 0.0
    %2028 = vmatprep.subr.mxu0 0.0
    %2029 = vmatpush1.msra.mxu0 0.0
    %2030 = vmatprep.subr.mxu0 0.0
    %2031 = vmatpush1.msra.mxu0 0.0
    %2032 = vmatprep.subr.mxu0 0.0
    %2033 = vmatpush1.msra.mxu0 0.0
    %2034 = vmatprep.subr.mxu0 0.0
    %2035 = vmatpush1.msra.mxu0 0.0
    %2036 = vmatprep.subr.mxu0 0.0
    %2037 = vmatpush1.msra.mxu0 0.0
    %2038 = vmatprep.subr.mxu0 0.0
    %2039 = vmatpush1.msra.mxu0 0.0
    %2040 = vmatprep.subr.mxu0 0.0
    %2041 = vmatpush1.msra.mxu0 0.0
    %2042 = vmatprep.subr.mxu0 0.0
    %2043 = vmatpush1.msra.mxu0 0.0
    %2044 = vmatprep.subr.mxu0 0.0
    %2045 = vmatpush1.msra.mxu0 0.0
    %2046 = vmatprep.subr.mxu0 0.0
    %2047 = vmatpush1.msra.mxu0 0.0
    %2048 = vmatprep.subr.mxu0 0.0
    %2049 = vmatpush1.msra.mxu0 0.0
    %2050 = vmatprep.subr.mxu0 0.0
    %2051 = vmatpush1.msra.mxu0 0.0
    %2052 = vmatprep.subr.mxu0 0.0
    %2053 = vmatpush1.msra.mxu0 0.0
    %2054 = vmatprep.subr.mxu0 0.0
    %2055 = vmatpush1.msra.mxu0 0.0
    %2056 = vmatprep.subr.mxu0 0.0
    %2057 = vmatpush1.msra.mxu0 0.0
    %2058 = vmatprep.subr.mxu0 0.0
    %2059 = vmatpush1.msra.mxu0 0.0
    %2060 = vmatprep.subr.mxu0 0.0
    %2061 = vmatpush1.msra.mxu0 0.0
    %2062 = vmatprep.subr.mxu0 0.0
    %2063 = vmatpush1.msra.mxu0 0.0
    %2064 = vmatprep.subr.mxu0 0.0
    %2065 = vmatpush1.msra.mxu0 0.0
    %2066 = vmatprep.subr.mxu0 0.0
    %2067 = vmatpush1.msra.mxu0 0.0
    %2068 = vmatprep.subr.mxu0 0.0
    %2069 = vmatpush1.msra.mxu0 0.0
    %2070 = vmatprep.subr.mxu0 0.0
    %2071 = vmatpush1.msra.mxu0 0.0
    %2072 = vmatprep.subr.mxu0 0.0
    %2073 = vmatpush1.msra.mxu0 0.0
    %2074 = vmatprep.subr.mxu0 0.0
    %2075 = vmatpush1.msra.mxu0 0.0
    %2076 = vmatprep.subr.mxu0 0.0
    %2077 = vmatpush1.msra.mxu0 0.0
    %2078 = vmatprep.subr.mxu0 0.0
    %2079 = vmatpush1.msra.mxu0 0.0
    %2080 = vmatprep.mubr.f32.mxu0 0.0
    %2081 = vmatmul.mubr.f32.gmra.mrb[0].mxu0 %v2011
    %v2082 = vpop.f32.mrb[0].mxu0
    %v2083 = vadd.f32 %v2009, %v2082
    %v2084 = vpop.f32.mrb[0].mxu0
    %2085 = vmatprep.mubr.f32.mxu0 0.0
    %2086 = vmatmul.mubr.f32.gmra.mrb[0].mxu0 %v2014
    %v2087 = vpop.f32.mrb[0].mxu0
    %v2088 = vadd.f32 %v2009, %v2087
    %v2089 = vpop.f32.mrb[0].mxu0
    %2090 = vdwg.mxu0
    %v2091 = vadd.f32 %v2083, %v1219
    %v2092 = vadd.f32 %v2088, %v1220
    %v2093 = vsel %vm28, %v2091, 0.0
    %2094 = vadd.xlane.f32.xlu0 %v2093
    %v2095 = vpop.xlane.xlu0 %2094
    %v2096 = vsel %vm28, %v2092, 0.0
    %2097 = vadd.xlane.f32.xlu0 %v2096
    %v2098 = vpop.xlane.xlu0 %2097
    %v2099 = vmul.f32 %v2095, %v35
    %v2100 = vmul.f32 %v2098, %v35
    %v2101 = vsub.f32 %v2091, %v2099
    %v2102 = vsub.f32 %v2092, %v2100
    %v2103 = vmul.f32 %v2101, %v2101
    %v2104 = vmul.f32 %v2102, %v2102
    %v2105 = vsel %vm28, %v2103, 0.0
    %2106 = vadd.xlane.f32.xlu0 %v2105
    %v2107 = vpop.xlane.xlu0 %2106
    %v2108 = vsel %vm28, %v2104, 0.0
    %2109 = vadd.xlane.f32.xlu0 %v2108
    %v2110 = vpop.xlane.xlu0 %2109
    %v2111 = vmul.f32 %v2107, %v35
    %v2112 = vmul.f32 %v2110, %v35
    %v2113 = vadd.f32 %v2111, 1e-12
    %v2114 = vadd.f32 %v2112, 1e-12
    %v2115 = vrsqrt.pop %v2113
    %v2116 = vrsqrt.pop %v2114
    %v2117 = vmul.f32 %v2101, %v2115
    %v2118 = vmul.f32 %v2102, %v2116
    %v2119 = vlaneseq
    %v2120 = vshrl.u32 %v2119, 7
    %v2121 = vsub.s32 0, %v2120
    %v2122 = vrot.slane %v1243, %v2121
    %v2123 = vmul.f32 %v2117, %v2122
    %v2124 = vmul.f32 %v2118, %v2122
    %v2125 = vlaneseq
    %v2126 = vshrl.u32 %v2125, 7
    %v2127 = vsub.s32 0, %v2126
    %v2128 = vrot.slane %v1244, %v2127
    %v2129 = vadd.f32 %v2123, %v2128
    %v2130 = vadd.f32 %v2124, %v2128
    %v2131 = vlaneseq
    %v2132 = vshrl.u32 %v2131, 7
    %v2133 = vsub.s32 0, %v2132
    %v2134 = vrot.slane %v1245, %v2133
    %v2136 = vsel %vm28, %v2129, 0
    %v2139 = vsel %vm28, %v2130, 0
    %2141 = vmatprep.subr.mxu0 0.0
    %2142 = vmatpush1.msra.mxu0 %v1229
    %2143 = vmatprep.subr.mxu0 0.0
    %2144 = vmatpush1.msra.mxu0 %v1230
    %2145 = vmatprep.subr.mxu0 0.0
    %2146 = vmatpush1.msra.mxu0 %v1231
    %2147 = vmatprep.subr.mxu0 0.0
    %2148 = vmatpush1.msra.mxu0 %v1232
    %2149 = vmatprep.subr.mxu0 0.0
    %2150 = vmatpush1.msra.mxu0 0.0
    %2151 = vmatprep.subr.mxu0 0.0
    %2152 = vmatpush1.msra.mxu0 0.0
    %2153 = vmatprep.subr.mxu0 0.0
    %2154 = vmatpush1.msra.mxu0 0.0
    %2155 = vmatprep.subr.mxu0 0.0
    %2156 = vmatpush1.msra.mxu0 0.0
    %2157 = vmatprep.subr.mxu0 0.0
    %2158 = vmatpush1.msra.mxu0 0.0
    %2159 = vmatprep.subr.mxu0 0.0
    %2160 = vmatpush1.msra.mxu0 0.0
    %2161 = vmatprep.subr.mxu0 0.0
    %2162 = vmatpush1.msra.mxu0 0.0
    %2163 = vmatprep.subr.mxu0 0.0
    %2164 = vmatpush1.msra.mxu0 0.0
    %2165 = vmatprep.subr.mxu0 0.0
    %2166 = vmatpush1.msra.mxu0 0.0
    %2167 = vmatprep.subr.mxu0 0.0
    %2168 = vmatpush1.msra.mxu0 0.0
    %2169 = vmatprep.subr.mxu0 0.0
    %2170 = vmatpush1.msra.mxu0 0.0
    %2171 = vmatprep.subr.mxu0 0.0
    %2172 = vmatpush1.msra.mxu0 0.0
    %2173 = vmatprep.subr.mxu0 0.0
    %2174 = vmatpush1.msra.mxu0 0.0
    %2175 = vmatprep.subr.mxu0 0.0
    %2176 = vmatpush1.msra.mxu0 0.0
    %2177 = vmatprep.subr.mxu0 0.0
    %2178 = vmatpush1.msra.mxu0 0.0
    %2179 = vmatprep.subr.mxu0 0.0
    %2180 = vmatpush1.msra.mxu0 0.0
    %2181 = vmatprep.subr.mxu0 0.0
    %2182 = vmatpush1.msra.mxu0 0.0
    %2183 = vmatprep.subr.mxu0 0.0
    %2184 = vmatpush1.msra.mxu0 0.0
    %2185 = vmatprep.subr.mxu0 0.0
    %2186 = vmatpush1.msra.mxu0 0.0
    %2187 = vmatprep.subr.mxu0 0.0
    %2188 = vmatpush1.msra.mxu0 0.0
    %2189 = vmatprep.subr.mxu0 0.0
    %2190 = vmatpush1.msra.mxu0 0.0
    %2191 = vmatprep.subr.mxu0 0.0
    %2192 = vmatpush1.msra.mxu0 0.0
    %2193 = vmatprep.subr.mxu0 0.0
    %2194 = vmatpush1.msra.mxu0 0.0
    %2195 = vmatprep.subr.mxu0 0.0
    %2196 = vmatpush1.msra.mxu0 0.0
    %2197 = vmatprep.subr.mxu0 0.0
    %2198 = vmatpush1.msra.mxu0 0.0
    %2199 = vmatprep.subr.mxu0 0.0
    %2200 = vmatpush1.msra.mxu0 0.0
    %2201 = vmatprep.subr.mxu0 0.0
    %2202 = vmatpush1.msra.mxu0 0.0
    %2203 = vmatprep.subr.mxu0 0.0
    %2204 = vmatpush1.msra.mxu0 0.0
    %2205 = vmatprep.mubr.f32.mxu0 0.0
    %2206 = vmatmul.mubr.f32.gmra.mrb[0].mxu0 %v2136
    %v2207 = vpop.f32.mrb[0].mxu0
    %v2208 = vadd.f32 %v2134, %v2207
    %v2209 = vpop.f32.mrb[0].mxu0
    %2210 = vmatprep.mubr.f32.mxu0 0.0
    %2211 = vmatmul.mubr.f32.gmra.mrb[0].mxu0 %v2139
    %v2212 = vpop.f32.mrb[0].mxu0
    %v2213 = vadd.f32 %v2134, %v2212
    %v2214 = vpop.f32.mrb[0].mxu0
    %2215 = vdwg.mxu0
    %v2216 = vmul.f32 %v2208, 0.5
    %v2217 = vmul.f32 %v2213, 0.5
    %v2218 = vmul.f32 %v2208, 0.044715
    %v2219 = vmul.f32 %v2213, 0.044715
    %v2220 = vmul.f32 %v2218, %v2208
    %v2221 = vmul.f32 %v2219, %v2213
    %v2222 = vmul.f32 %v2220, %v2208
    %v2223 = vmul.f32 %v2221, %v2213
    %v2224 = vadd.f32 %v2208, %v2222
    %v2225 = vadd.f32 %v2213, %v2223
    %v2226 = vmul.f32 %v2224, 0.7978846
    %v2227 = vmul.f32 %v2225, 0.7978846
    %v2228 = vtanh.pop %v2226
    %v2229 = vtanh.pop %v2227
    %v2230 = vadd.f32 %v2228, 1.0
    %v2231 = vadd.f32 %v2229, 1.0
    %v2232 = vmul.f32 %v2216, %v2230
    %v2233 = vmul.f32 %v2217, %v2231
    %v2234 = vlaneseq
    %v2235 = vshrl.u32 %v2234, 7
    %v2236 = vsub.s32 0, %v2235
    %v2237 = vrot.slane %v1246, %v2236
    %v2239 = vsel %vm1099, %v2232, 0
    %v2242 = vsel %vm1099, %v2233, 0
    %2244 = vmatprep.subr.mxu0 0.0
    %2245 = vmatpush1.msra.mxu0 %v1233
    %2246 = vmatprep.subr.mxu0 0.0
    %2247 = vmatpush1.msra.mxu0 %v1234
    %2248 = vmatprep.subr.mxu0 0.0
    %2249 = vmatpush1.msra.mxu0 %v1235
    %2250 = vmatprep.subr.mxu0 0.0
    %2251 = vmatpush1.msra.mxu0 %v1236
    %2252 = vmatprep.subr.mxu0 0.0
    %2253 = vmatpush1.msra.mxu0 %v1237
    %2254 = vmatprep.subr.mxu0 0.0
    %2255 = vmatpush1.msra.mxu0 %v1238
    %2256 = vmatprep.subr.mxu0 0.0
    %2257 = vmatpush1.msra.mxu0 %v1239
    %2258 = vmatprep.subr.mxu0 0.0
    %2259 = vmatpush1.msra.mxu0 %v1240
    %2260 = vmatprep.subr.mxu0 0.0
    %2261 = vmatpush1.msra.mxu0 0.0
    %2262 = vmatprep.subr.mxu0 0.0
    %2263 = vmatpush1.msra.mxu0 0.0
    %2264 = vmatprep.subr.mxu0 0.0
    %2265 = vmatpush1.msra.mxu0 0.0
    %2266 = vmatprep.subr.mxu0 0.0
    %2267 = vmatpush1.msra.mxu0 0.0
    %2268 = vmatprep.subr.mxu0 0.0
    %2269 = vmatpush1.msra.mxu0 0.0
    %2270 = vmatprep.subr.mxu0 0.0
    %2271 = vmatpush1.msra.mxu0 0.0
    %2272 = vmatprep.subr.mxu0 0.0
    %2273 = vmatpush1.msra.mxu0 0.0
    %2274 = vmatprep.subr.mxu0 0.0
    %2275 = vmatpush1.msra.mxu0 0.0
    %2276 = vmatprep.subr.mxu0 0.0
    %2277 = vmatpush1.msra.mxu0 0.0
    %2278 = vmatprep.subr.mxu0 0.0
    %2279 = vmatpush1.msra.mxu0 0.0
    %2280 = vmatprep.subr.mxu0 0.0
    %2281 = vmatpush1.msra.mxu0 0.0
    %2282 = vmatprep.subr.mxu0 0.0
    %2283 = vmatpush1.msra.mxu0 0.0
    %2284 = vmatprep.subr.mxu0 0.0
    %2285 = vmatpush1.msra.mxu0 0.0
    %2286 = vmatprep.subr.mxu0 0.0
    %2287 = vmatpush1.msra.mxu0 0.0
    %2288 = vmatprep.subr.mxu0 0.0
    %2289 = vmatpush1.msra.mxu0 0.0
    %2290 = vmatprep.subr.mxu0 0.0
    %2291 = vmatpush1.msra.mxu0 0.0
    %2292 = vmatprep.subr.mxu0 0.0
    %2293 = vmatpush1.msra.mxu0 0.0
    %2294 = vmatprep.subr.mxu0 0.0
    %2295 = vmatpush1.msra.mxu0 0.0
    %2296 = vmatprep.subr.mxu0 0.0
    %2297 = vmatpush1.msra.mxu0 0.0
    %2298 = vmatprep.subr.mxu0 0.0
    %2299 = vmatpush1.msra.mxu0 0.0
    %2300 = vmatprep.subr.mxu0 0.0
    %2301 = vmatpush1.msra.mxu0 0.0
    %2302 = vmatprep.subr.mxu0 0.0
    %2303 = vmatpush1.msra.mxu0 0.0
    %2304 = vmatprep.subr.mxu0 0.0
    %2305 = vmatpush1.msra.mxu0 0.0
    %2306 = vmatprep.subr.mxu0 0.0
    %2307 = vmatpush1.msra.mxu0 0.0
    %2308 = vmatprep.mubr.f32.mxu0 0.0
    %2309 = vmatmul.mubr.f32.gmra.mrb[0].mxu0 %v2239
    %v2310 = vpop.f32.mrb[0].mxu0
    %v2311 = vadd.f32 %v2237, %v2310
    %v2312 = vpop.f32.mrb[0].mxu0
    %2313 = vmatprep.mubr.f32.mxu0 0.0
    %2314 = vmatmul.mubr.f32.gmra.mrb[0].mxu0 %v2242
    %v2315 = vpop.f32.mrb[0].mxu0
    %v2316 = vadd.f32 %v2237, %v2315
    %v2317 = vpop.f32.mrb[0].mxu0
    %2318 = vdwg.mxu0
    %v2319 = vadd.f32 %v2311, %v2129
    %v2320 = vadd.f32 %v2316, %v2130
    %v2321 = vsel %vm28, %v2319, 0.0
    %2322 = vadd.xlane.f32.xlu0 %v2321
    %v2323 = vpop.xlane.xlu0 %2322
    %v2324 = vsel %vm28, %v2320, 0.0
    %2325 = vadd.xlane.f32.xlu0 %v2324
    %v2326 = vpop.xlane.xlu0 %2325
    %v2327 = vmul.f32 %v2323, %v35
    %v2328 = vmul.f32 %v2326, %v35
    %v2329 = vsub.f32 %v2319, %v2327
    %v2330 = vsub.f32 %v2320, %v2328
    %v2331 = vmul.f32 %v2329, %v2329
    %v2332 = vmul.f32 %v2330, %v2330
    %v2333 = vsel %vm28, %v2331, 0.0
    %2334 = vadd.xlane.f32.xlu0 %v2333
    %v2335 = vpop.xlane.xlu0 %2334
    %v2336 = vsel %vm28, %v2332, 0.0
    %2337 = vadd.xlane.f32.xlu0 %v2336
    %v2338 = vpop.xlane.xlu0 %2337
    %v2339 = vmul.f32 %v2335, %v35
    %v2340 = vmul.f32 %v2338, %v35
    %v2341 = vadd.f32 %v2339, 1e-12
    %v2342 = vadd.f32 %v2340, 1e-12
    %v2343 = vrsqrt.pop %v2341
    %v2344 = vrsqrt.pop %v2342
    %v2345 = vmul.f32 %v2329, %v2343
    %v2346 = vmul.f32 %v2330, %v2344
    %v2347 = vlaneseq
    %v2348 = vshrl.u32 %v2347, 7
    %v2349 = vsub.s32 0, %v2348
    %v2350 = vrot.slane %v1247, %v2349
    %v2351 = vmul.f32 %v2345, %v2350
    %v2352 = vmul.f32 %v2346, %v2350
    %v2353 = vlaneseq
    %v2354 = vshrl.u32 %v2353, 7
    %v2355 = vsub.s32 0, %v2354
    %v2356 = vrot.slane %v1248, %v2355
    %v2357 = vadd.f32 %v2351, %v2356
    %v2358 = vadd.f32 %v2352, %v2356
    %v2359 = vld [vmem:[%s3 + $0x140] sm:$0xff]
    %v2360 = vld [vmem:[%s3 + $0x148] sm:$0xff]
    %v2361 = vld [vmem:[%s3 + $0x150] sm:$0xff]
    %v2362 = vld [vmem:[%s3 + $0x158] sm:$0xff]
    %v2363 = vld [vmem:[%s3 + $0x160] sm:$0xff]
    %v2364 = vld [vmem:[%s3 + $0x168] sm:$0xff]
    %v2365 = vld [vmem:[%s3 + $0x170] sm:$0xff]
    %v2366 = vld [vmem:[%s3 + $0x178] sm:$0xff]
    %v2367 = vld [vmem:[%s4 + $0x12] sm:$0x1]
    %v2368 = vld [vmem:[%s4 + $0x13] sm:$0x1]
    %2369 = vst.msk [vmem:[#allocation2] sm:$0xff] %vm28, %v2357
    %2370 = vst.msk [vmem:[#allocation2 + $0x8] sm:$0xff] %vm28, %v2358
    %v2371 = vld [vmem:[#allocation2] ss:$8 sm:$0x3]
    %v2372 = vlaneseq
    %v2373 = vshrl.u32 %v2372, 7
    %v2374 = vsub.s32 0, %v2373
    %v2375 = vrot.slane %v2367, %v2374
    %v2377 = vsel %vm28, %v2371, 0
    %2379 = vmatprep.subr.mxu0 0.0
    %2380 = vmatpush1.msra.mxu0 %v2359
    %2381 = vmatprep.subr.mxu0 0.0
    %2382 = vmatpush1.msra.mxu0 %v2360
    %2383 = vmatprep.subr.mxu0 0.0
    %2384 = vmatpush1.msra.mxu0 %v2361
    %2385 = vmatprep.subr.mxu0 0.0
    %2386 = vmatpush1.msra.mxu0 %v2362
    %2387 = vmatprep.subr.mxu0 0.0
    %2388 = vmatpush1.msra.mxu0 0.0
    %2389 = vmatprep.subr.mxu0 0.0
    %2390 = vmatpush1.msra.mxu0 0.0
    %2391 = vmatprep.subr.mxu0 0.0
    %2392 = vmatpush1.msra.mxu0 0.0
    %2393 = vmatprep.subr.mxu0 0.0
    %2394 = vmatpush1.msra.mxu0 0.0
    %2395 = vmatprep.subr.mxu0 0.0
    %2396 = vmatpush1.msra.mxu0 0.0
    %2397 = vmatprep.subr.mxu0 0.0
    %2398 = vmatpush1.msra.mxu0 0.0
    %2399 = vmatprep.subr.mxu0 0.0
    %2400 = vmatpush1.msra.mxu0 0.0
    %2401 = vmatprep.subr.mxu0 0.0
    %2402 = vmatpush1.msra.mxu0 0.0
    %2403 = vmatprep.subr.mxu0 0.0
    %2404 = vmatpush1.msra.mxu0 0.0
    %2405 = vmatprep.subr.mxu0 0.0
    %2406 = vmatpush1.msra.mxu0 0.0
    %2407 = vmatprep.subr.mxu0 0.0
    %2408 = vmatpush1.msra.mxu0 0.0
    %2409 = vmatprep.subr.mxu0 0.0
    %2410 = vmatpush1.msra.mxu0 0.0
    %2411 = vmatprep.subr.mxu0 0.0
    %2412 = vmatpush1.msra.mxu0 0.0
    %2413 = vmatprep.subr.mxu0 0.0
    %2414 = vmatpush1.msra.mxu0 0.0
    %2415 = vmatprep.subr.mxu0 0.0
    %2416 = vmatpush1.msra.mxu0 0.0
    %2417 = vmatprep.subr.mxu0 0.0
    %2418 = vmatpush1.msra.mxu0 0.0
    %2419 = vmatprep.subr.mxu0 0.0
    %2420 = vmatpush1.msra.mxu0 0.0
    %2421 = vmatprep.subr.mxu0 0.0
    %2422 = vmatpush1.msra.mxu0 0.0
    %2423 = vmatprep.subr.mxu0 0.0
    %2424 = vmatpush1.msra.mxu0 0.0
    %2425 = vmatprep.subr.mxu0 0.0
    %2426 = vmatpush1.msra.mxu0 0.0
    %2427 = vmatprep.subr.mxu0 0.0
    %2428 = vmatpush1.msra.mxu0 0.0
    %2429 = vmatprep.subr.mxu0 0.0
    %2430 = vmatpush1.msra.mxu0 0.0
    %2431 = vmatprep.subr.mxu0 0.0
    %2432 = vmatpush1.msra.mxu0 0.0
    %2433 = vmatprep.subr.mxu0 0.0
    %2434 = vmatpush1.msra.mxu0 0.0
    %2435 = vmatprep.subr.mxu0 0.0
    %2436 = vmatpush1.msra.mxu0 0.0
    %2437 = vmatprep.subr.mxu0 0.0
    %2438 = vmatpush1.msra.mxu0 0.0
    %2439 = vmatprep.subr.mxu0 0.0
    %2440 = vmatpush1.msra.mxu0 0.0
    %2441 = vmatprep.subr.mxu0 0.0
    %2442 = vmatpush1.msra.mxu0 0.0
    %2443 = vmatprep.mubr.f32.mxu0 0.0
    %2444 = vmatmul.mubr.f32.gmra.mrb[0].mxu0 %v2377
    %v2445 = vpop.f32.mrb[0].mxu0
    %v2446 = vadd.f32 %v2375, %v2445
    %v2447 = vpop.f32.mrb[0].mxu0
    %2448 = vdwg.mxu0
    %v2449 = vtanh.pop %v2446
    %v2450 = vlaneseq
    %v2451 = vshrl.u32 %v2450, 7
    %v2452 = vsub.s32 0, %v2451
    %v2453 = vrot.slane %v2368, %v2452
    %v2455 = vsel %vm28, %v2449, 0
    %2457 = vmatprep.subr.mxu0 0.0
    %2458 = vmatpush1.msra.mxu0 %v2363
    %2459 = vmatprep.subr.mxu0 0.0
    %2460 = vmatpush1.msra.mxu0 %v2364
    %2461 = vmatprep.subr.mxu0 0.0
    %2462 = vmatpush1.msra.mxu0 %v2365
    %2463 = vmatprep.subr.mxu0 0.0
    %2464 = vmatpush1.msra.mxu0 %v2366
    %2465 = vmatprep.subr.mxu0 0.0
    %2466 = vmatpush1.msra.mxu0 0.0
    %2467 = vmatprep.subr.mxu0 0.0
    %2468 = vmatpush1.msra.mxu0 0.0
    %2469 = vmatprep.subr.mxu0 0.0
    %2470 = vmatpush1.msra.mxu0 0.0
    %2471 = vmatprep.subr.mxu0 0.0
    %2472 = vmatpush1.msra.mxu0 0.0
    %2473 = vmatprep.subr.mxu0 0.0
    %2474 = vmatpush1.msra.mxu0 0.0
    %2475 = vmatprep.subr.mxu0 0.0
    %2476 = vmatpush1.msra.mxu0 0.0
    %2477 = vmatprep.subr.mxu0 0.0
    %2478 = vmatpush1.msra.mxu0 0.0
    %2479 = vmatprep.subr.mxu0 0.0
    %2480 = vmatpush1.msra.mxu0 0.0
    %2481 = vmatprep.subr.mxu0 0.0
    %2482 = vmatpush1.msra.mxu0 0.0
    %2483 = vmatprep.subr.mxu0 0.0
    %2484 = vmatpush1.msra.mxu0 0.0
    %2485 = vmatprep.subr.mxu0 0.0
    %2486 = vmatpush1.msra.mxu0 0.0
    %2487 = vmatprep.subr.mxu0 0.0
    %2488 = vmatpush1.msra.mxu0 0.0
    %2489 = vmatprep.subr.mxu0 0.0
    %2490 = vmatpush1.msra.mxu0 0.0
    %2491 = vmatprep.subr.mxu0 0.0
    %2492 = vmatpush1.msra.mxu0 0.0
    %2493 = vmatprep.subr.mxu0 0.0
    %2494 = vmatpush1.msra.mxu0 0.0
    %2495 = vmatprep.subr.mxu0 0.0
    %2496 = vmatpush1.msra.mxu0 0.0
    %2497 = vmatprep.subr.mxu0 0.0
    %2498 = vmatpush1.msra.mxu0 0.0
    %2499 = vmatprep.subr.mxu0 0.0
    %2500 = vmatpush1.msra.mxu0 0.0
    %2501 = vmatprep.subr.mxu0 0.0
    %2502 = vmatpush1.msra.mxu0 0.0
    %2503 = vmatprep.subr.mxu0 0.0
    %2504 = vmatpush1.msra.mxu0 0.0
    %2505 = vmatprep.subr.mxu0 0.0
    %2506 = vmatpush1.msra.mxu0 0.0
    %2507 = vmatprep.subr.mxu0 0.0
    %2508 = vmatpush1.msra.mxu0 0.0
    %2509 = vmatprep.subr.mxu0 0.0
    %2510 = vmatpush1.msra.mxu0 0.0
    %2511 = vmatprep.subr.mxu0 0.0
    %2512 = vmatpush1.msra.mxu0 0.0
    %2513 = vmatprep.subr.mxu0 0.0
    %2514 = vmatpush1.msra.mxu0 0.0
    %2515 = vmatprep.subr.mxu0 0.0
    %2516 = vmatpush1.msra.mxu0 0.0
    %2517 = vmatprep.subr.mxu0 0.0
    %2518 = vmatpush1.msra.mxu0 0.0
    %2519 = vmatprep.subr.mxu0 0.0
    %2520 = vmatpush1.msra.mxu0 0.0
    %2521 = vmatprep.mubr.f32.mxu0 0.0
    %2522 = vmatmul.mubr.f32.gmra.mrb[0].mxu0 %v2455
    %v2523 = vpop.f32.mrb[0].mxu0
    %v2524 = vadd.f32 %v2453, %v2523
    %v2525 = vpop.f32.mrb[0].mxu0
    %2526 = vdwg.mxu0
    %vm2527 = vcmask 9216
    %2528 = vst.msk [vmem:[#allocation3] sm:$0x3] %vm2527, %v2524
    %v2529 = vld [vmem:[%s2] sm:$0x3]
    %v2530 = vsel %vm2527, %v2524, -inf
    %2531 = vmax.xlane.f32.xlu0 %v2530
    %v2532 = vpop.xlane.xlu0 %2531
    %v2533 = vsub.f32 %v2524, %v2532
    %v2534 = vmul.f32 %v2533, 1.442695
    %v2535 = vpow.pop %v2534
    %v2536 = vsel %vm2527, %v2535, 0.0
    %2537 = vadd.xlane.f32.xlu0 %v2536
    %v2538 = vpop.xlane.xlu0 %2537
    %v2539 = vlog2.pop %v2538
    %v2540 = vmul.f32 %v2539, 0.6931472
    %v2541 = vadd.f32 %v2532, %v2540
    %v2542 = vlaneseq
    %v2543 = vand.u32 %v2542, 127
    %2544 = vset.pattern.permute.xlu0 0
    %2545 = vperm.xlu0 %2544, %v2529
    %v2546 = vpop.permute.xlu0 %2545
    %vm2547 = vcmp.eq.s32.totalorder %v2543, %v2546
    %v2548 = vsel %vm2547, 1, 0
    %v2549 = vcvt.s32.f32 %v2548
    %v2550 = vmul.f32 %v2549, %v2524
    %v2551 = vsel %vm2527, %v2550, 0.0
    %2552 = vadd.xlane.f32.xlu0 %v2551
    %v2553 = vpop.xlane.xlu0 %2552
    %v2554 = vsub.f32 %v2541, %v2553
    %vm2555 = vcmask 1041408
    %v2556 = vsel %vm2555, %v2554, 0.0
    %v2557 = vrot.slane %v2556, 4
    %v2558 = vadd.f32 %v2556, %v2557
    %v2559 = vrot.slane %v2558, 2
    %v2560 = vadd.f32 %v2558, %v2559
    %v2561 = vrot.slane %v2560, 1
    %v2562 = vadd.f32 %v2560, %v2561
    %v2563 = vmul.f32 %v2562, 0.5
    %vm2564 = vcmask 0
    %2565 = vst.msk [vmem:[#allocation5] sm:$0x1] %vm2564, %v2563
    // Predicated region
    $region22: #{tpu_custom_call.1} parent=1 // pred_check
      _
    $region23: #{tpu_custom_call.1} parent=1 // pred_check_branch
      %2567 = sbr.rel (0) target = $region25
    $region24: #{tpu_custom_call.1} parent=1 // pred_region
      %s2569 = ssub.s32 32, 32
      %2570 = vsyncadd [#allocation4], %s2569
      %s2572 = sshll.u32 [#allocation3], 4
      %s2573 = int_to_ptr.vmem [resolvable:$true] %s2572
      %2575 = dma.vmem_to_hbm [thread:$0]  %s2573, 32, %s5, [#allocation4]
    $region25: #{tpu_custom_call.1} parent=1 // pred_fallthru
      _
    // Predicated region
    $region26: #{tpu_custom_call.1} parent=1 // pred_check
      _
    $region27: #{tpu_custom_call.1} parent=1 // pred_check_branch
      %2577 = sbr.rel (0) target = $region29
    $region28: #{tpu_custom_call.1} parent=1 // pred_region
      %s2579 = ssub.s32 16, 16
      %2580 = vsyncadd [#allocation6], %s2579
      %s2582 = sshll.u32 [#allocation5], 4
      %s2583 = int_to_ptr.vmem [resolvable:$true] %s2582
      %2585 = dma.vmem_to_hbm [thread:$0]  %s2583, 16, %s6, [#allocation6]
    $region29: #{tpu_custom_call.1} parent=1 // pred_fallthru
      _
    // Predicated region
    $region30: #{tpu_custom_call.1} parent=1 // pred_check
      _
    $region31: #{tpu_custom_call.1} parent=1 // pred_check_branch
      %2587 = sbr.rel (0) target = $region33
    $region32: #{tpu_custom_call.1} parent=1 // pred_region
      %2588 = dma.done [#allocation4], 32
    $region33: #{tpu_custom_call.1} parent=1 // pred_fallthru
      _
    // Predicated region
    $region34: #{tpu_custom_call.1} parent=1 // pred_check
      _
    $region35: #{tpu_custom_call.1} parent=1 // pred_check_branch
      %2590 = sbr.rel (0) target = $region37
    $region36: #{tpu_custom_call.1} parent=1 // pred_region
      %2591 = dma.done [#allocation6], 16
    $region37: #{tpu_custom_call.1} parent=1 // pred_fallthru
      _
    %2592 = vsyncpa [#allocation4], 1
    %2593 = vsyncpa [#allocation6], 1

</llo_original>
